<compile_context>
chip_gen: v5e
topology: v5e:2x2
jax: 0.10.0
libtpu: 0.0.40
codegen_flags: <defaults>
</compile_context>

<pallas_src>
import functools

import jax
import jax.numpy as jnp
import numpy as np
from jax.experimental import pallas as pl
from jax.experimental.pallas import tpu as pltpu


def _round_up(x, m):
    return (x + m - 1) // m * m


def _device_kind():
    try:
        return jax.devices()[0].device_kind.lower()
    except Exception:
        return ""


def _vmem_budget_bytes():
    """Conservative per-core VMEM budget by generation (headroom for Mosaic scratch)."""
    kind = _device_kind()
    if "v5" in kind or "v6" in kind:
        return 96 * 1024 * 1024   # 128 MiB physical VMEM
    return 44 * 1024 * 1024       # v7x has 64 MiB physical; unknown -> be conservative


def _vmem_need(tile_n, tile_f, tile_o, f_pp, in_f_p, fbytes):
    """Estimated VMEM bytes for one grid step (double-buffered operands + scratch)."""
    need = 2 * tile_n * in_f_p * 4          # compact x tile
    need += 2 * in_f_p * tile_f * 4         # Rk chunk
    need += 2 * 8 * tile_f * 4              # phase row (sublane-padded)
    need += 2 * tile_f * tile_o * fbytes    # fused weight chunk
    need += 2 * 8 * tile_o * 4              # bias row
    need += 2 * tile_n * tile_o * 4         # output tile
    need += tile_n * f_pp * fbytes          # feature cache scratch
    need += tile_n * tile_o * 4             # f32 accumulator scratch
    return need


def fkan_kernel(x_ref, rk_ref, phase_ref, w_ref, bias_ref, o_ref,
                feats_ref, acc_ref, *, tile_f, feature_dtype):
    """Grid = (batch tiles, out tiles, F chunks); o and f axes run sequentially.

    x_ref:     (TN, in_p)   compact input tile (block index constant over o, f).
    rk_ref:    (in_p, TF)   frequency/replication matrix chunk: theta = x @ Rk + phase.
    phase_ref: (1, TF)      0 for the sin half, pi/2 for the cos half (cos = sin(.+pi/2)).
    w_ref:     (TF, TO)     fused [A_sin ; B_cos] weight chunk.
    bias_ref:  (1, TO)      folded k = 0 bias.
    o_ref:     (TN, TO)     output tile.
    feats_ref: (TN, F_pp)   VMEM cache of ALL Fourier features for the current batch tile.
    acc_ref:   (TN, TO)     f32 accumulator across F chunks.
    """
    o_idx = pl.program_id(1)
    f_idx = pl.program_id(2)
    col0 = pl.multiple_of(f_idx * tile_f, tile_f)

    # Build this chunk's Fourier features once per batch tile (first out tile only):
    # a tiny MXU matmul lane-replicates/scales x, a VPU add applies the cos phase,
    # and a single EUP sin() pass yields both sin and cos features.
    @pl.when(o_idx == 0)
    def _():
        theta = jnp.dot(x_ref[...], rk_ref[...],
                        preferred_element_type=jnp.float32) + phase_ref[...]
        feats_ref[:, pl.ds(col0, tile_f)] = jnp.sin(theta).astype(feature_dtype)

    @pl.when(f_idx == 0)
    def _():
        acc_ref[...] = jnp.zeros_like(acc_ref)

    feats = feats_ref[:, pl.ds(col0, tile_f)]
    acc_ref[...] += jnp.dot(feats, w_ref[...], preferred_element_type=jnp.float32)

    @pl.when(f_idx == pl.num_programs(2) - 1)
    def _():
        o_ref[...] = (acc_ref[...] + bias_ref[...]).astype(o_ref.dtype)


def pack_fkan_params(a_params, b_params, K, in_features, out_features,
                     *, feature_dtype=jnp.bfloat16, min_out_tile=None):
    """Repack per-(o,i) Fourier coefficients into fused matmul operands.

    Call once per parameter update (inference: once), not per forward call.
    a_params / b_params: (out_features*in_features, K), row index o*in_features + i
    (same packing as the PyTorch ParameterList).
    """
    a3 = jnp.asarray(a_params, jnp.float32).reshape(out_features, in_features, K)
    b3 = jnp.asarray(b_params, jnp.float32).reshape(out_features, in_features, K)

    # k = 0 terms: sin(0) = 0 (dead weight), cos(0) = 1 (pure bias).
    bias = jnp.sum(b3[:, :, 0], axis=1)                                # (out_f,)
    if K == 1:
        return dict(kind="bias_only", bias=bias, out_features=out_features)

    fbytes = np.dtype(feature_dtype).itemsize
    in_f_p = _round_up(in_features, 8)
    if min_out_tile is None:
        # >=256-wide out tiles keep the 256x256 MXU (v6e/v7x) full; 128 is fine on v5e.
        min_out_tile = 128 if "v5" in _device_kind() else 256
    out_p = _round_up(out_features, min_out_tile)
    tile_o = 512 if out_p % 512 == 0 else (256 if out_p % 256 == 0 else 128)

    F = 2 * (K - 1) * in_features
    F_p = _round_up(F, 128)

    # Chunk the contraction axis only if the fused weight tile would blow VMEM.
    budget = _vmem_budget_bytes()
    tile_f = F_p
    while tile_f > 512 and _vmem_need(256, tile_f, tile_o, _round_up(F_p, tile_f),
                                      in_f_p, fbytes) > budget:
        tile_f = max(512, _round_up(tile_f // 2, 128))
    F_pp = _round_up(F_p, tile_f)

    # Fused weight matrix: row (k-1)*in + i          -> sin(k*x_i) coeff (from a),
    #                      row (K-1)*in + (k-1)*in+i -> cos(k*x_i) coeff (from b).
    w_sin = jnp.transpose(a3[:, :, 1:], (2, 1, 0)).reshape((K - 1) * in_features, out_features)
    w_cos = jnp.transpose(b3[:, :, 1:], (2, 1, 0)).reshape((K - 1) * in_features, out_features)
    W = jnp.concatenate([w_sin, w_cos], axis=0)                        # (F, out_f)
    W_p = jnp.zeros((F_pp, out_p), jnp.float32).at[:F, :out_features].set(W)
    W_p = W_p.astype(feature_dtype)
    bias_p = jnp.zeros((1, out_p), jnp.float32).at[0, :out_features].set(bias)

    # Constant replicate-and-scale matrix:  theta = x @ Rk + phase  gives
    #   theta[:, (k-1)*in+i]           = k * x_i            (sin half)
    #   theta[:, (K-1)*in+(k-1)*in+i]  = k * x_i + pi/2     (cos half)
    ks = np.repeat(np.arange(1, K, dtype=np.float32), in_features)
    kvec = np.concatenate([ks, ks])
    cols = np.tile(np.arange(in_features), 2 * (K - 1))
    rk = np.zeros((in_f_p, F_pp), np.float32)
    rk[cols, np.arange(F)] = kvec
    phase = np.zeros((1, F_pp), np.float32)
    phase[0, (K - 1) * in_features:F] = np.pi / 2.0

    return dict(kind="fourier", w=W_p, bias=bias_p, rk=jnp.asarray(rk),
                phase=jnp.asarray(phase), feature_dtype=feature_dtype,
                in_features=in_features, out_features=out_features,
                in_f_p=in_f_p, out_p=out_p, tile_o=tile_o, F_pp=F_pp, tile_f=tile_f)


def fkan_apply(x, packed):
    """Forward pass with pre-packed parameters. x: (N, in_features) f32."""
    x = jnp.asarray(x, jnp.float32)
    N = x.shape[0]
    if packed["kind"] == "bias_only":                       # K == 1: output is a pure bias
        return jnp.broadcast_to(packed["bias"][None, :], (N, packed["out_features"]))

    in_f, out_f = packed["in_features"], packed["out_features"]
    in_f_p, out_p = packed["in_f_p"], packed["out_p"]
    tile_o, tile_f, F_pp = packed["tile_o"], packed["tile_f"], packed["F_pp"]
    feature_dtype = packed["feature_dtype"]
    fbytes = np.dtype(feature_dtype).itemsize

    # Largest batch tile that fits the per-generation VMEM budget.
    budget = _vmem_budget_bytes()
    tile_n, need = None, 0
    for tn in (512, 256, 128):
        tn_eff = min(tn, _round_up(N, 8))
        need = _vmem_need(tn_eff, tile_f, tile_o, F_pp, in_f_p, fbytes)
        if need <= budget:
            tile_n = tn_eff
            break
    if tile_n is None:
        tile_n = min(128, _round_up(N, 8))
        need = _vmem_need(tile_n, tile_f, tile_o, F_pp, in_f_p, fbytes)
    n_p = _round_up(N, tile_n)

    x_p = jnp.zeros((n_p, in_f_p), jnp.float32).at[:N, :in_f].set(x)

    grid = (n_p // tile_n, out_p // tile_o, F_pp // tile_f)

    cost = pl.CostEstimate(
        flops=int(2 * n_p * F_pp * out_p            # fused features @ W
                  + 2 * n_p * in_f_p * F_pp         # theta = x @ Rk (once per batch tile)
                  + 3 * n_p * out_p),
        transcendentals=int(n_p * F_pp),            # one sin pass per batch tile (cached)
        bytes_accessed=int(4 * n_p * in_f_p + 4 * n_p * out_p
                           + grid[0] * fbytes * F_pp * out_p
                           + grid[0] * grid[1] * 4 * (in_f_p + 1) * F_pp),
    )

    kernel = functools.partial(fkan_kernel, tile_f=tile_f, feature_dtype=feature_dtype)

    y_p = pl.pallas_call(
        kernel,
        out_shape=jax.ShapeDtypeStruct((n_p, out_p), jnp.float32),
        grid=grid,
        in_specs=[
            pl.BlockSpec((tile_n, in_f_p), lambda n, o, f: (n, 0)),   # compact x
            pl.BlockSpec((in_f_p, tile_f), lambda n, o, f: (0, f)),   # Rk chunk
            pl.BlockSpec((1, tile_f), lambda n, o, f: (0, f)),        # phase row chunk
            pl.BlockSpec((tile_f, tile_o), lambda n, o, f: (f, o)),   # fused weights
            pl.BlockSpec((1, tile_o), lambda n, o, f: (0, o)),        # k=0 bias
        ],
        out_specs=pl.BlockSpec((tile_n, tile_o), lambda n, o, f: (n, o)),
        scratch_shapes=[
            pltpu.VMEM((tile_n, F_pp), feature_dtype),   # Fourier feature cache
            pltpu.VMEM((tile_n, tile_o), jnp.float32),   # f32 accumulator over F chunks
        ],
        compiler_params=pltpu.CompilerParams(
            dimension_semantics=("parallel", "arbitrary", "arbitrary"),
            vmem_limit_bytes=int(min(budget, max(need + 8 * 1024 * 1024,
                                                 32 * 1024 * 1024))),
        ),
        cost_estimate=cost,
    )(x_p, packed["rk"], packed["phase"], packed["w"], packed["bias"])

    return y_p[:N, :out_f]


def fkan_forward(x, a_params, b_params, K, *, feature_dtype=jnp.bfloat16):
    """Convenience wrapper: pack (per-call) + apply. Prefer pack once + fkan_apply."""
    in_f = x.shape[1]
    out_f = a_params.shape[0] // in_f
    packed = pack_fkan_params(a_params, b_params, K, in_f, out_f,
                              feature_dtype=feature_dtype)
    return fkan_apply(x, packed)


if __name__ == "__main__":
    K = 8
    in_features = 4
    out_features = 8
    batch = 256

    key = jax.random.PRNGKey(0)
    kx, ka, kb = jax.random.split(key, 3)

    # Deterministic init matching torch: (2*rand(K)-1)/(K*out_features), packed as
    # (out*in, K) with row index o*in_features + i.
    a_params = (2.0 * jax.random.uniform(ka, (out_features * in_features, K)) - 1.0) / (
        K * out_features)
    b_params = (2.0 * jax.random.uniform(kb, (out_features * in_features, K)) - 1.0) / (
        K * out_features)
    x = jax.random.normal(kx, (batch, in_features), dtype=jnp.float32)

    # Pure-JAX reference of the PyTorch forward.
    k_arr = jnp.arange(K, dtype=jnp.float32)
    s = jnp.sin(x[:, :, None] * k_arr)
    c = jnp.cos(x[:, :, None] * k_arr)
    a3 = a_params.reshape(out_features, in_features, K)
    b3 = b_params.reshape(out_features, in_features, K)
    y_ref = np.asarray(jnp.einsum("nik,oik->no", s, a3) + jnp.einsum("nik,oik->no", c, b3))

    # Production default: bf16 MXU operands, f32 accumulation.
    packed_bf16 = pack_fkan_params(a_params, b_params, K, in_features, out_features)
    y_bf16 = jax.block_until_ready(fkan_apply(x, packed_bf16))
    np.testing.assert_allclose(np.asarray(y_bf16), y_ref, rtol=2e-2, atol=5e-3)

    # Strict check: f32 operands reproduce the reference tightly.
    packed_f32 = pack_fkan_params(a_params, b_params, K, in_features, out_features,
                                  feature_dtype=jnp.float32)
    y_f32 = jax.block_until_ready(fkan_apply(x, packed_f32))
    np.testing.assert_allclose(np.asarray(y_f32), y_ref, rtol=1e-5, atol=1e-5)

    print("KERNEL_OK")
</pallas_src>

<mosaic_0001>
module attributes {stable_mosaic.version = 11 : i64} {
  func.func @fkan_kernel(%arg0: i32, %arg1: i32, %arg2: i32, %arg3: memref<256x8xf32, #tpu.memory_space<vmem>>, %arg4: memref<8x128xf32, #tpu.memory_space<vmem>>, %arg5: memref<1x128xf32, #tpu.memory_space<vmem>>, %arg6: memref<128x256xbf16, #tpu.memory_space<vmem>>, %arg7: memref<1x256xf32, #tpu.memory_space<vmem>>, %arg8: memref<256x256xf32, #tpu.memory_space<vmem>>, %arg9: memref<256x128xbf16, #tpu.memory_space<vmem>>, %arg10: memref<256x256xf32, #tpu.memory_space<vmem>>) attributes {dimension_semantics = [#tpu.dimension_semantics<parallel>, #tpu.dimension_semantics<arbitrary>, #tpu.dimension_semantics<arbitrary>], iteration_bounds = array<i64: 1, 1, 1>, scalar_prefetch = 0 : i64, scratch_operands = 2 : i64, tpu.core_type = #tpu.core_type<tc>, window_params = [{transform_indices = @transform_0, window_bounds = array<i64: 256, 8>}, {transform_indices = @transform_1, window_bounds = array<i64: 8, 128>}, {transform_indices = @transform_2, window_bounds = array<i64: 1, 128>}, {transform_indices = @transform_3, window_bounds = array<i64: 128, 256>}, {transform_indices = @transform_4, window_bounds = array<i64: 1, 256>}, {transform_indices = @transform_5, window_bounds = array<i64: 256, 256>}]} {
    %c128_i32 = arith.constant 128 : i32
    %0 = arith.muli %arg2, %c128_i32 : i32
    %1 = tpu.assume_multiple %0, 128 : i32
    %c0_i32 = arith.constant 0 : i32
    %2 = arith.cmpi eq, %arg1, %c0_i32 : i32
    %3 = arith.extui %2 : i1 to i32
    %c0_i32_0 = arith.constant 0 : i32
    %4 = arith.cmpi ne, %3, %c0_i32_0 : i32
    scf.if %4 {
      %c0_11 = arith.constant 0 : index
      %c0_12 = arith.constant 0 : index
      %18 = vector.load %arg3[%c0_11, %c0_12] : memref<256x8xf32, #tpu.memory_space<vmem>>, vector<256x8xf32>
      %c0_13 = arith.constant 0 : index
      %c0_14 = arith.constant 0 : index
      %19 = vector.load %arg4[%c0_13, %c0_14] : memref<8x128xf32, #tpu.memory_space<vmem>>, vector<8x128xf32>
      %cst_15 = arith.constant dense<0.000000e+00> : vector<256x128xf32>
      %20 = tpu.matmul %18, %19, %cst_15 {dimension_numbers = #tpu.dot_dimension_numbers<[1], [0], [0], [1], [0, 0, 1, 1], [], []>} : vector<256x8xf32>, vector<8x128xf32>, vector<256x128xf32> -> vector<256x128xf32>
      %c0_16 = arith.constant 0 : index
      %c0_17 = arith.constant 0 : index
      %21 = vector.load %arg5[%c0_16, %c0_17] : memref<1x128xf32, #tpu.memory_space<vmem>>, vector<1x128xf32>
      %22 = vector.broadcast %21 : vector<1x128xf32> to vector<256x128xf32>
      %23 = arith.addf %20, %22 : vector<256x128xf32>
      %24 = math.sin %23 : vector<256x128xf32>
      %25 = arith.truncf %24 : vector<256x128xf32> to vector<256x128xbf16>
      %c0_18 = arith.constant 0 : index
      %26 = arith.index_cast %1 : i32 to index
      %27 = vector.load %arg9[%c0_18, %26] : memref<256x128xbf16, #tpu.memory_space<vmem>>, vector<256x128xbf16>
      tpu.vector_store %arg9[%c0_18, %26], %25 {strides = array<i32>} : memref<256x128xbf16, #tpu.memory_space<vmem>>, vector<256x128xbf16>,
    } else {
    }
    %c0_i32_1 = arith.constant 0 : i32
    %5 = arith.cmpi eq, %arg2, %c0_i32_1 : i32
    %6 = arith.extui %5 : i1 to i32
    %c0_i32_2 = arith.constant 0 : i32
    %7 = arith.cmpi ne, %6, %c0_i32_2 : i32
    scf.if %7 {
      %cst_11 = arith.constant 0.000000e+00 : f32
      %18 = vector.broadcast %cst_11 : f32 to vector<256x256xf32>
      %c0_12 = arith.constant 0 : index
      %c0_13 = arith.constant 0 : index
      %19 = vector.load %arg10[%c0_12, %c0_13] : memref<256x256xf32, #tpu.memory_space<vmem>>, vector<256x256xf32>
      tpu.vector_store %arg10[%c0_12, %c0_13], %18 {strides = array<i32>} : memref<256x256xf32, #tpu.memory_space<vmem>>, vector<256x256xf32>,
    } else {
    }
    %c0 = arith.constant 0 : index
    %8 = arith.index_cast %1 : i32 to index
    %9 = vector.load %arg9[%c0, %8] : memref<256x128xbf16, #tpu.memory_space<vmem>>, vector<256x128xbf16>
    %c0_3 = arith.constant 0 : index
    %c0_4 = arith.constant 0 : index
    %10 = vector.load %arg10[%c0_3, %c0_4] : memref<256x256xf32, #tpu.memory_space<vmem>>, vector<256x256xf32>
    %c0_5 = arith.constant 0 : index
    %c0_6 = arith.constant 0 : index
    %11 = vector.load %arg6[%c0_5, %c0_6] : memref<128x256xbf16, #tpu.memory_space<vmem>>, vector<128x256xbf16>
    %cst = arith.constant dense<0.000000e+00> : vector<256x256xf32>
    %12 = tpu.matmul %9, %11, %cst {dimension_numbers = #tpu.dot_dimension_numbers<[1], [0], [0], [1], [0, 0, 1, 1], [], []>} : vector<256x128xbf16>, vector<128x256xbf16>, vector<256x256xf32> -> vector<256x256xf32>
    %13 = arith.addf %10, %12 : vector<256x256xf32>
    %c0_7 = arith.constant 0 : index
    %c0_8 = arith.constant 0 : index
    %14 = vector.load %arg10[%c0_7, %c0_8] : memref<256x256xf32, #tpu.memory_space<vmem>>, vector<256x256xf32>
    tpu.vector_store %arg10[%c0_7, %c0_8], %13 {strides = array<i32>} : memref<256x256xf32, #tpu.memory_space<vmem>>, vector<256x256xf32>,
    %c0_i32_9 = arith.constant 0 : i32
    %15 = arith.cmpi eq, %arg2, %c0_i32_9 : i32
    %16 = arith.extui %15 : i1 to i32
    %c0_i32_10 = arith.constant 0 : i32
    %17 = arith.cmpi ne, %16, %c0_i32_10 : i32
    scf.if %17 {
      %c0_11 = arith.constant 0 : index
      %c0_12 = arith.constant 0 : index
      %18 = vector.load %arg10[%c0_11, %c0_12] : memref<256x256xf32, #tpu.memory_space<vmem>>, vector<256x256xf32>
      %c0_13 = arith.constant 0 : index
      %c0_14 = arith.constant 0 : index
      %19 = vector.load %arg7[%c0_13, %c0_14] : memref<1x256xf32, #tpu.memory_space<vmem>>, vector<1x256xf32>
      %20 = vector.broadcast %19 : vector<1x256xf32> to vector<256x256xf32>
      %21 = arith.addf %18, %20 : vector<256x256xf32>
      %c0_15 = arith.constant 0 : index
      %c0_16 = arith.constant 0 : index
      %22 = vector.load %arg8[%c0_15, %c0_16] : memref<256x256xf32, #tpu.memory_space<vmem>>, vector<256x256xf32>
      tpu.vector_store %arg8[%c0_15, %c0_16], %21 {strides = array<i32>} : memref<256x256xf32, #tpu.memory_space<vmem>>, vector<256x256xf32>,
    } else {
    }
    return
  }
  func.func @transform_0(%arg0: i32, %arg1: i32, %arg2: i32) -> (i32, i32) {
    %c0_i32 = arith.constant 0 : i32
    %c0_i32_0 = arith.constant 0 : i32
    return %arg0, %c0_i32 : i32, i32
  }
  func.func @transform_1(%arg0: i32, %arg1: i32, %arg2: i32) -> (i32, i32) {
    %c0_i32 = arith.constant 0 : i32
    %c0_i32_0 = arith.constant 0 : i32
    return %c0_i32, %arg2 : i32, i32
  }
  func.func @transform_2(%arg0: i32, %arg1: i32, %arg2: i32) -> (i32, i32) {
    %c0_i32 = arith.constant 0 : i32
    %c0_i32_0 = arith.constant 0 : i32
    return %c0_i32, %arg2 : i32, i32
  }
  func.func @transform_3(%arg0: i32, %arg1: i32, %arg2: i32) -> (i32, i32) {
    %c0_i32 = arith.constant 0 : i32
    return %arg2, %arg1 : i32, i32
  }
  func.func @transform_4(%arg0: i32, %arg1: i32, %arg2: i32) -> (i32, i32) {
    %c0_i32 = arith.constant 0 : i32
    %c0_i32_0 = arith.constant 0 : i32
    return %c0_i32, %arg1 : i32, i32
  }
  func.func @transform_5(%arg0: i32, %arg1: i32, %arg2: i32) -> (i32, i32) {
    %c0_i32 = arith.constant 0 : i32
    return %arg0, %arg1 : i32, i32
  }
}

</mosaic_0001>

<llo_original>
// kernel: tpu_custom_call.1
$region0: #{tpu_custom_call.1}
  #allocation0 [shape = 'u32[]', space=smem, size = 0x4, offset = 0x4, fixed_abs, tag = 'smem constant byte address 0x4 - core index']
  #allocation1 [shape = 'u32[72,128]{1,0:T(1,128)}', space=vmem, size = 0x9000, scoped, tag = 'internal scratch']
  #allocation2 [shape = 'bf16[256,128]{1,0:T(8,128)(2,1)}', space=vmem, size = 0x10000, scoped, tag = 'scratch operand']
  #allocation3 [shape = 'f32[256,256]{1,0:T(8,128)}', space=vmem, size = 0x40000, scoped, tag = 'scratch operand']
  %s0 = inlined_call_operand.vmem [shape: f32[256,8], index: 0, kind: input, shape index: {}]
  %s1 = inlined_call_operand.vmem [shape: f32[8,128], index: 1, kind: input, shape index: {}]
  %s2 = inlined_call_operand.vmem [shape: f32[1,128], index: 2, kind: input, shape index: {}]
  %s3 = inlined_call_operand.vmem [shape: bf16[128,256], index: 3, kind: input, shape index: {}]
  %s4 = inlined_call_operand.vmem [shape: f32[1,256], index: 4, kind: input, shape index: {}]
  %s5 = inlined_call_operand.hbm [shape: f32[256,256], index: 5, kind: output, shape index: {}]
  %s6 = sld [smem:[#allocation0]]
  $region42: #{tpu_custom_call.1} parent=0
    _
  %s8 = ssub.s32 1, %s6
  %s9 = scalar_select 0, %s8, %s6
  $region1: #{tpu_custom_call.1} parent=0
    #allocation4 [shape = 'u8[262144]{0}', space=vmem, size = 0x40000, scoped, tag = 'output window, operand 0, single buffered']
    #allocation5 [shape = 's32[1]{0}', space=sflag, size = 0x4, scoped, tag = 'scoped memory for tpu_custom_call.1']
    %10 = vsyncpa [#allocation5], 0
    // Predicated region
    $region2: #{tpu_custom_call.1} parent=1 // pred_check
      _
    $region3: #{tpu_custom_call.1} parent=1 // pred_check_branch
      %12 = sbr.rel (0) target = $region5
    $region4: #{tpu_custom_call.1} parent=1 // pred_region
      _
    $region5: #{tpu_custom_call.1} parent=1 // pred_fallthru
      _
    // Predicated region
    $region6: #{tpu_custom_call.1} parent=1 // pred_check
      _
    $region7: #{tpu_custom_call.1} parent=1 // pred_check_branch
      %14 = sbr.rel (0) target = $region9
    $region8: #{tpu_custom_call.1} parent=1 // pred_region
      _
    $region9: #{tpu_custom_call.1} parent=1 // pred_fallthru
      _
    // Predicated region
    $region10: #{tpu_custom_call.1} parent=1 // pred_check
      _
    $region11: #{tpu_custom_call.1} parent=1 // pred_check_branch
      %16 = sbr.rel (0) target = $region13
    $region12: #{tpu_custom_call.1} parent=1 // pred_region
      _
    $region13: #{tpu_custom_call.1} parent=1 // pred_fallthru
      _
    // Predicated region
    $region14: #{tpu_custom_call.1} parent=1 // pred_check
      _
    $region15: #{tpu_custom_call.1} parent=1 // pred_check_branch
      %18 = sbr.rel (0) target = $region17
    $region16: #{tpu_custom_call.1} parent=1 // pred_region
      _
    $region17: #{tpu_custom_call.1} parent=1 // pred_fallthru
      _
    // Predicated region
    $region18: #{tpu_custom_call.1} parent=1 // pred_check
      _
    $region19: #{tpu_custom_call.1} parent=1 // pred_check_branch
      %20 = sbr.rel (0) target = $region21
    $region20: #{tpu_custom_call.1} parent=1 // pred_region
      _
    $region21: #{tpu_custom_call.1} parent=1 // pred_fallthru
      _
    %s21 = smul.u32 0, 128
    %p22 = scmp.eq.s32.totalorder 0, 0
    // Predicated region
    $region22: #{tpu_custom_call.1} parent=1 // pred_check
      %p23 = pneg %p22
    $region23: #{tpu_custom_call.1} parent=1 // pred_check_branch
      %25 = sbr.rel (%p23) target = $region25
    $region24: #{tpu_custom_call.1} parent=1 // pred_region
      %v26 = vld [vmem:[%s0] sm:$0xff]
      %v27 = vld [vmem:[%s0 + $0x8] sm:$0xff]
      %v28 = vld [vmem:[%s0 + $0x10] sm:$0xff]
      %v29 = vld [vmem:[%s0 + $0x18] sm:$0xff]
      %v30 = vld [vmem:[%s0 + $0x20] sm:$0xff]
      %v31 = vld [vmem:[%s0 + $0x28] sm:$0xff]
      %v32 = vld [vmem:[%s0 + $0x30] sm:$0xff]
      %v33 = vld [vmem:[%s0 + $0x38] sm:$0xff]
      %v34 = vld [vmem:[%s0 + $0x40] sm:$0xff]
      %v35 = vld [vmem:[%s0 + $0x48] sm:$0xff]
      %v36 = vld [vmem:[%s0 + $0x50] sm:$0xff]
      %v37 = vld [vmem:[%s0 + $0x58] sm:$0xff]
      %v38 = vld [vmem:[%s0 + $0x60] sm:$0xff]
      %v39 = vld [vmem:[%s0 + $0x68] sm:$0xff]
      %v40 = vld [vmem:[%s0 + $0x70] sm:$0xff]
      %v41 = vld [vmem:[%s0 + $0x78] sm:$0xff]
      %v42 = vld [vmem:[%s0 + $0x80] sm:$0xff]
      %v43 = vld [vmem:[%s0 + $0x88] sm:$0xff]
      %v44 = vld [vmem:[%s0 + $0x90] sm:$0xff]
      %v45 = vld [vmem:[%s0 + $0x98] sm:$0xff]
      %v46 = vld [vmem:[%s0 + $0xa0] sm:$0xff]
      %v47 = vld [vmem:[%s0 + $0xa8] sm:$0xff]
      %v48 = vld [vmem:[%s0 + $0xb0] sm:$0xff]
      %v49 = vld [vmem:[%s0 + $0xb8] sm:$0xff]
      %v50 = vld [vmem:[%s0 + $0xc0] sm:$0xff]
      %v51 = vld [vmem:[%s0 + $0xc8] sm:$0xff]
      %v52 = vld [vmem:[%s0 + $0xd0] sm:$0xff]
      %v53 = vld [vmem:[%s0 + $0xd8] sm:$0xff]
      %v54 = vld [vmem:[%s0 + $0xe0] sm:$0xff]
      %v55 = vld [vmem:[%s0 + $0xe8] sm:$0xff]
      %v56 = vld [vmem:[%s0 + $0xf0] sm:$0xff]
      %v57 = vld [vmem:[%s0 + $0xf8] sm:$0xff]
      %v58 = vld [vmem:[%s1] sm:$0xff]
      %v59 = vld [vmem:[%s2] sm:$0x1]
      %v61 = vperm.slane %v59, 0
      %vm63 = vcmask 64512
      %v65 = vsel %vm63, %v26, 0
      %v68 = vsel %vm63, %v27, 0
      %v71 = vsel %vm63, %v28, 0
      %v74 = vsel %vm63, %v29, 0
      %v77 = vsel %vm63, %v30, 0
      %v80 = vsel %vm63, %v31, 0
      %v83 = vsel %vm63, %v32, 0
      %v86 = vsel %vm63, %v33, 0
      %v89 = vsel %vm63, %v34, 0
      %v92 = vsel %vm63, %v35, 0
      %v95 = vsel %vm63, %v36, 0
      %v98 = vsel %vm63, %v37, 0
      %v101 = vsel %vm63, %v38, 0
      %v104 = vsel %vm63, %v39, 0
      %v107 = vsel %vm63, %v40, 0
      %v110 = vsel %vm63, %v41, 0
      %v113 = vsel %vm63, %v42, 0
      %v116 = vsel %vm63, %v43, 0
      %v119 = vsel %vm63, %v44, 0
      %v122 = vsel %vm63, %v45, 0
      %v125 = vsel %vm63, %v46, 0
      %v128 = vsel %vm63, %v47, 0
      %v131 = vsel %vm63, %v48, 0
      %v134 = vsel %vm63, %v49, 0
      %v137 = vsel %vm63, %v50, 0
      %v140 = vsel %vm63, %v51, 0
      %v143 = vsel %vm63, %v52, 0
      %v146 = vsel %vm63, %v53, 0
      %v149 = vsel %vm63, %v54, 0
      %v152 = vsel %vm63, %v55, 0
      %v155 = vsel %vm63, %v56, 0
      %v158 = vsel %vm63, %v57, 0
      %160 = vmatpush.msra.mxu0 0.0
      %161 = vmatpush.msra.mxu0 0.0
      %162 = vmatpush.msra.mxu0 0.0
      %163 = vmatpush.msra.mxu0 0.0
      %164 = vmatpush.msra.mxu0 0.0
      %165 = vmatpush.msra.mxu0 0.0
      %166 = vmatpush.msra.mxu0 0.0
      %167 = vmatpush.msra.mxu0 0.0
      %168 = vmatpush.msra.mxu0 0.0
      %169 = vmatpush.msra.mxu0 0.0
      %170 = vmatpush.msra.mxu0 0.0
      %171 = vmatpush.msra.mxu0 0.0
      %172 = vmatpush.msra.mxu0 0.0
      %173 = vmatpush.msra.mxu0 0.0
      %174 = vmatpush.msra.mxu0 0.0
      %175 = vmatpush.msra.mxu0 %v58
      %176 = vmatmul.f32.gmra.mxu0 %v65
      %v177 = vpop.f32.mrf.mxu0
      %v178 = vadd.f32 %v61, %v177
      %179 = vmatmul.f32.gmra.mxu0 %v68
      %v180 = vpop.f32.mrf.mxu0
      %v181 = vadd.f32 %v61, %v180
      %182 = vmatmul.f32.gmra.mxu0 %v71
      %v183 = vpop.f32.mrf.mxu0
      %v184 = vadd.f32 %v61, %v183
      %185 = vmatmul.f32.gmra.mxu0 %v74
      %v186 = vpop.f32.mrf.mxu0
      %v187 = vadd.f32 %v61, %v186
      %188 = vmatmul.f32.gmra.mxu0 %v77
      %v189 = vpop.f32.mrf.mxu0
      %v190 = vadd.f32 %v61, %v189
      %191 = vmatmul.f32.gmra.mxu0 %v80
      %v192 = vpop.f32.mrf.mxu0
      %v193 = vadd.f32 %v61, %v192
      %194 = vmatmul.f32.gmra.mxu0 %v83
      %v195 = vpop.f32.mrf.mxu0
      %v196 = vadd.f32 %v61, %v195
      %197 = vmatmul.f32.gmra.mxu0 %v86
      %v198 = vpop.f32.mrf.mxu0
      %v199 = vadd.f32 %v61, %v198
      %200 = vmatmul.f32.gmra.mxu0 %v89
      %v201 = vpop.f32.mrf.mxu0
      %v202 = vadd.f32 %v61, %v201
      %203 = vmatmul.f32.gmra.mxu0 %v92
      %v204 = vpop.f32.mrf.mxu0
      %v205 = vadd.f32 %v61, %v204
      %206 = vmatmul.f32.gmra.mxu0 %v95
      %v207 = vpop.f32.mrf.mxu0
      %v208 = vadd.f32 %v61, %v207
      %209 = vmatmul.f32.gmra.mxu0 %v98
      %v210 = vpop.f32.mrf.mxu0
      %v211 = vadd.f32 %v61, %v210
      %212 = vmatmul.f32.gmra.mxu0 %v101
      %v213 = vpop.f32.mrf.mxu0
      %v214 = vadd.f32 %v61, %v213
      %215 = vmatmul.f32.gmra.mxu0 %v104
      %v216 = vpop.f32.mrf.mxu0
      %v217 = vadd.f32 %v61, %v216
      %218 = vmatmul.f32.gmra.mxu0 %v107
      %v219 = vpop.f32.mrf.mxu0
      %v220 = vadd.f32 %v61, %v219
      %221 = vmatmul.f32.gmra.mxu0 %v110
      %v222 = vpop.f32.mrf.mxu0
      %v223 = vadd.f32 %v61, %v222
      %224 = vmatmul.f32.gmra.mxu0 %v113
      %v225 = vpop.f32.mrf.mxu0
      %v226 = vadd.f32 %v61, %v225
      %227 = vmatmul.f32.gmra.mxu0 %v116
      %v228 = vpop.f32.mrf.mxu0
      %v229 = vadd.f32 %v61, %v228
      %230 = vmatmul.f32.gmra.mxu0 %v119
      %v231 = vpop.f32.mrf.mxu0
      %v232 = vadd.f32 %v61, %v231
      %233 = vmatmul.f32.gmra.mxu0 %v122
      %v234 = vpop.f32.mrf.mxu0
      %v235 = vadd.f32 %v61, %v234
      %236 = vmatmul.f32.gmra.mxu0 %v125
      %v237 = vpop.f32.mrf.mxu0
      %v238 = vadd.f32 %v61, %v237
      %239 = vmatmul.f32.gmra.mxu0 %v128
      %v240 = vpop.f32.mrf.mxu0
      %v241 = vadd.f32 %v61, %v240
      %242 = vmatmul.f32.gmra.mxu0 %v131
      %v243 = vpop.f32.mrf.mxu0
      %v244 = vadd.f32 %v61, %v243
      %245 = vmatmul.f32.gmra.mxu0 %v134
      %v246 = vpop.f32.mrf.mxu0
      %v247 = vadd.f32 %v61, %v246
      %248 = vmatmul.f32.gmra.mxu0 %v137
      %v249 = vpop.f32.mrf.mxu0
      %v250 = vadd.f32 %v61, %v249
      %251 = vmatmul.f32.gmra.mxu0 %v140
      %v252 = vpop.f32.mrf.mxu0
      %v253 = vadd.f32 %v61, %v252
      %254 = vmatmul.f32.gmra.mxu0 %v143
      %v255 = vpop.f32.mrf.mxu0
      %v256 = vadd.f32 %v61, %v255
      %257 = vmatmul.f32.gmra.mxu0 %v146
      %v258 = vpop.f32.mrf.mxu0
      %v259 = vadd.f32 %v61, %v258
      %260 = vmatmul.f32.gmra.mxu0 %v149
      %v261 = vpop.f32.mrf.mxu0
      %v262 = vadd.f32 %v61, %v261
      %263 = vmatmul.f32.gmra.mxu0 %v152
      %v264 = vpop.f32.mrf.mxu0
      %v265 = vadd.f32 %v61, %v264
      %266 = vmatmul.f32.gmra.mxu0 %v155
      %v267 = vpop.f32.mrf.mxu0
      %v268 = vadd.f32 %v61, %v267
      %269 = vmatmul.f32.gmra.mxu0 %v158
      %v270 = vpop.f32.mrf.mxu0
      %v271 = vadd.f32 %v61, %v270
      %272 = vdwg.mxu0
      %v273 = vand.u32 2147483647, %v178
      %vm274 = vcmp.le.f32.partialorder %v273, 0.7853982
      %vm275 = vcmp.lt.s32.totalorder %v178, 0
      %v276 = vand.u32 %v178, 2139095040
      %v277 = vshrl.u32 %v276, 23
      %v278 = vsub.s32 %v277, 127
      %v279 = vand.u32 2147483647, %v178
      %v280 = vand.u32 %v279, 8388607
      %v281 = vor.u32 %v280, 8388608
      %v282 = vsub.s32 0, %v281
      %v283 = vadd.s32 %v278, 1
      %vm284 = vcmp.gt.s32.totalorder %v283, 0
      %v285 = vsel %vm284, %v283, 0
      %v286 = vshrl.u32 %v285, 5
      %v287 = vand.u32 %v285, 31
      %v288 = vsub.s32 32, %v287
      %v289 = vshrl.u32 683565275, %v288
      %v290 = vshll.u32 683565275, %v287
      %v291 = vshrl.u32 2475754826, %v288
      %v292 = vor.u32 %v290, %v291
      %v293 = vshll.u32 2475754826, %v287
      %v294 = vshrl.u32 2131351028, %v288
      %v295 = vor.u32 %v293, %v294
      %v296 = vshll.u32 2131351028, %v287
      %v297 = vshrl.u32 2102212464, %v288
      %v298 = vor.u32 %v296, %v297
      %v299 = vshll.u32 2102212464, %v287
      %v300 = vshrl.u32 920167782, %v288
      %v301 = vor.u32 %v299, %v300
      %v302 = vshll.u32 920167782, %v287
      %v303 = vshrl.u32 1326507024, %v288
      %v304 = vor.u32 %v302, %v303
      %vm305 = vcmp.lt.s32.totalorder %v286, 1
      %vm306 = vcmp.lt.s32.totalorder %v286, 2
      %vm307 = vcmp.lt.s32.totalorder %v286, 3
      %vm308 = vcmp.lt.s32.totalorder %v286, 4
      %v309 = vsel %vm305, %v289, %v292
      %v310 = vsel %vm308, %v298, 2102212464
      %v311 = vsel %vm307, %v295, %v310
      %v312 = vsel %vm306, %v309, %v311
      %v313 = vsel %vm305, %v292, %v295
      %v314 = vsel %vm308, %v301, 920167782
      %v315 = vsel %vm307, %v298, %v314
      %v316 = vsel %vm306, %v313, %v315
      %v317 = vsel %vm305, %v295, %v298
      %v318 = vsel %vm308, %v304, 1326507024
      %v319 = vsel %vm307, %v301, %v318
      %v320 = vsel %vm306, %v317, %v319
      %v321 = vshll.u32 %v281, 8
      %v322 = vand.u32 %v321, 65535
      %v323 = vshrl.u32 %v321, 16
      %v324 = vand.u32 %v320, 65535
      %v325 = vshrl.u32 %v320, 16
      %v326 = vmul.u32 %v322, %v324
      %v327 = vmul.u32 %v322, %v325
      %v328 = vmul.u32 %v323, %v324
      %v329 = vmul.u32 %v323, %v325
      %v330 = vshll.u32 %v327, 16
      %v331 = vshrl.u32 %v327, 16
      %v332 = vshll.u32 %v328, 16
      %v333 = vshrl.u32 %v328, 16
      %vm334 = vc.u32 %v326, %v330
      %v335 = vsel %vm334, 1, 0
      %v336 = vadd.s32 %v326, %v330
      %v337 = vadd.s32 %v329, %v335
      %vm338 = vc.u32 %v336, %v332
      %v339 = vsel %vm338, 1, 0
      %v340 = vadd.s32 %v336, %v332
      %v341 = vadd.s32 %v337, %v339
      %v342 = vadd.s32 %v341, %v331
      %v343 = vadd.s32 %v342, %v333
      %v344 = vand.u32 %v321, 65535
      %v345 = vshrl.u32 %v321, 16
      %v346 = vand.u32 %v316, 65535
      %v347 = vshrl.u32 %v316, 16
      %v348 = vmul.u32 %v344, %v346
      %v349 = vmul.u32 %v344, %v347
      %v350 = vmul.u32 %v345, %v346
      %v351 = vmul.u32 %v345, %v347
      %v352 = vshll.u32 %v349, 16
      %v353 = vshrl.u32 %v349, 16
      %v354 = vshll.u32 %v350, 16
      %v355 = vshrl.u32 %v350, 16
      %vm356 = vc.u32 %v348, %v352
      %v357 = vsel %vm356, 1, 0
      %v358 = vadd.s32 %v348, %v352
      %v359 = vadd.s32 %v351, %v357
      %vm360 = vc.u32 %v358, %v354
      %v361 = vsel %vm360, 1, 0
      %v362 = vadd.s32 %v358, %v354
      %v363 = vadd.s32 %v359, %v361
      %v364 = vadd.s32 %v363, %v353
      %v365 = vadd.s32 %v364, %v355
      %v366 = vmul.u32 %v321, %v312
      %v367 = vadd.s32 %v343, %v362
      %vm368 = vc.u32 %v343, %v362
      %v369 = vadd.s32 %v365, 1
      %v370 = vsel %vm368, %v369, %v365
      %v371 = vadd.s32 %v366, %v370
      %v372 = vadd.s32 %v371, 536870912
      %v373 = vshrl.u32 %v372, 30
      %v374 = vshll.u32 %v373, 30
      %v375 = vsub.s32 %v371, %v374
      %vm376 = vcmp.lt.s32.totalorder %v375, 0
      %v377 = vsub.s32 0, %v375
      %v378 = vsel %vm376, %v377, %v375
      %v379 = vclz %v378
      %v380 = vsub.s32 %v379, 2
      %vm381 = vcmp.gt.s32.totalorder 0, %v380
      %v382 = vsel %vm381, 0, %v380
      %v383 = vsub.s32 32, %v382
      %v384 = vshll.u32 %v375, %v382
      %v385 = vshrl.u32 %v367, %v383
      %v386 = vor.u32 %v384, %v385
      %v387 = vsub.s32 4294967266, %v382
      %v388 = vadd.s32 %v387, 127
      %v389 = vshll.u32 %v388, 23
      %v390 = vor.u32 4788187, %v389
      %v391 = vand.u32 2147483647, %v390
      %v393 = vcvt.s32.f32 %v386
      %v394 = vmul.f32 %v393, %v391
      %v395 = vxor.u32 %v394, 2147483648
      %v396 = vsel %vm275, %v395, %v394
      %v397 = vsub.s32 4, %v373
      %v398 = vsel %vm275, %v397, %v373
      %v399 = vsel %vm274, %v178, %v396
      %v400 = vsel %vm274, 0, %v398
      %v401 = vmul.f32 %v399, %v399
      %v402 = vmul.f32 %v401, -0.001358992
      %v403 = vadd.f32 %v402, 0.041655596
      %v404 = vmul.f32 %v401, %v403
      %v405 = vadd.f32 %v404, -0.4999988
      %v406 = vmul.f32 %v401, %v405
      %v407 = vadd.f32 1.0, %v406
      %v408 = vmul.f32 %v399, %v399
      %v409 = vmul.f32 %v408, -0.00019511016
      %v410 = vadd.f32 %v409, 0.008332121
      %v411 = vmul.f32 %v408, %v410
      %v412 = vadd.f32 %v411, -0.16666654
      %v413 = vmul.f32 %v408, %v412
      %v414 = vadd.f32 %v413, 1.0
      %v415 = vmul.f32 %v414, %v399
      %vm416 = vweird.f32 %v178
      %v417 = vadd.s32 %v400, 3
      %v418 = vand.u32 %v417, 3
      %vm419 = vcmp.lt.s32.totalorder %v418, 2
      %vm420 = vcmp.eq.s32.totalorder %v418, 0
      %v421 = vxor.u32 %v415, 2147483648
      %v422 = vsel %vm420, %v407, %v421
      %vm423 = vcmp.eq.s32.totalorder %v418, 2
      %v424 = vxor.u32 %v407, 2147483648
      %v425 = vsel %vm423, %v424, %v415
      %v426 = vsel %vm419, %v422, %v425
      %v427 = vsel %vm416, nan, %v426
      %v428 = vand.u32 2147483647, %v181
      %vm429 = vcmp.le.f32.partialorder %v428, 0.7853982
      %vm430 = vcmp.lt.s32.totalorder %v181, 0
      %v431 = vand.u32 %v181, 2139095040
      %v432 = vshrl.u32 %v431, 23
      %v433 = vsub.s32 %v432, 127
      %v434 = vand.u32 2147483647, %v181
      %v435 = vand.u32 %v434, 8388607
      %v436 = vor.u32 %v435, 8388608
      %v437 = vsub.s32 0, %v436
      %v438 = vadd.s32 %v433, 1
      %vm439 = vcmp.gt.s32.totalorder %v438, 0
      %v440 = vsel %vm439, %v438, 0
      %v441 = vshrl.u32 %v440, 5
      %v442 = vand.u32 %v440, 31
      %v443 = vsub.s32 32, %v442
      %v444 = vshrl.u32 683565275, %v443
      %v445 = vshll.u32 683565275, %v442
      %v446 = vshrl.u32 2475754826, %v443
      %v447 = vor.u32 %v445, %v446
      %v448 = vshll.u32 2475754826, %v442
      %v449 = vshrl.u32 2131351028, %v443
      %v450 = vor.u32 %v448, %v449
      %v451 = vshll.u32 2131351028, %v442
      %v452 = vshrl.u32 2102212464, %v443
      %v453 = vor.u32 %v451, %v452
      %v454 = vshll.u32 2102212464, %v442
      %v455 = vshrl.u32 920167782, %v443
      %v456 = vor.u32 %v454, %v455
      %v457 = vshll.u32 920167782, %v442
      %v458 = vshrl.u32 1326507024, %v443
      %v459 = vor.u32 %v457, %v458
      %vm460 = vcmp.lt.s32.totalorder %v441, 1
      %vm461 = vcmp.lt.s32.totalorder %v441, 2
      %vm462 = vcmp.lt.s32.totalorder %v441, 3
      %vm463 = vcmp.lt.s32.totalorder %v441, 4
      %v464 = vsel %vm460, %v444, %v447
      %v465 = vsel %vm463, %v453, 2102212464
      %v466 = vsel %vm462, %v450, %v465
      %v467 = vsel %vm461, %v464, %v466
      %v468 = vsel %vm460, %v447, %v450
      %v469 = vsel %vm463, %v456, 920167782
      %v470 = vsel %vm462, %v453, %v469
      %v471 = vsel %vm461, %v468, %v470
      %v472 = vsel %vm460, %v450, %v453
      %v473 = vsel %vm463, %v459, 1326507024
      %v474 = vsel %vm462, %v456, %v473
      %v475 = vsel %vm461, %v472, %v474
      %v476 = vshll.u32 %v436, 8
      %v477 = vand.u32 %v476, 65535
      %v478 = vshrl.u32 %v476, 16
      %v479 = vand.u32 %v475, 65535
      %v480 = vshrl.u32 %v475, 16
      %v481 = vmul.u32 %v477, %v479
      %v482 = vmul.u32 %v477, %v480
      %v483 = vmul.u32 %v478, %v479
      %v484 = vmul.u32 %v478, %v480
      %v485 = vshll.u32 %v482, 16
      %v486 = vshrl.u32 %v482, 16
      %v487 = vshll.u32 %v483, 16
      %v488 = vshrl.u32 %v483, 16
      %vm489 = vc.u32 %v481, %v485
      %v490 = vsel %vm489, 1, 0
      %v491 = vadd.s32 %v481, %v485
      %v492 = vadd.s32 %v484, %v490
      %vm493 = vc.u32 %v491, %v487
      %v494 = vsel %vm493, 1, 0
      %v495 = vadd.s32 %v491, %v487
      %v496 = vadd.s32 %v492, %v494
      %v497 = vadd.s32 %v496, %v486
      %v498 = vadd.s32 %v497, %v488
      %v499 = vand.u32 %v476, 65535
      %v500 = vshrl.u32 %v476, 16
      %v501 = vand.u32 %v471, 65535
      %v502 = vshrl.u32 %v471, 16
      %v503 = vmul.u32 %v499, %v501
      %v504 = vmul.u32 %v499, %v502
      %v505 = vmul.u32 %v500, %v501
      %v506 = vmul.u32 %v500, %v502
      %v507 = vshll.u32 %v504, 16
      %v508 = vshrl.u32 %v504, 16
      %v509 = vshll.u32 %v505, 16
      %v510 = vshrl.u32 %v505, 16
      %vm511 = vc.u32 %v503, %v507
      %v512 = vsel %vm511, 1, 0
      %v513 = vadd.s32 %v503, %v507
      %v514 = vadd.s32 %v506, %v512
      %vm515 = vc.u32 %v513, %v509
      %v516 = vsel %vm515, 1, 0
      %v517 = vadd.s32 %v513, %v509
      %v518 = vadd.s32 %v514, %v516
      %v519 = vadd.s32 %v518, %v508
      %v520 = vadd.s32 %v519, %v510
      %v521 = vmul.u32 %v476, %v467
      %v522 = vadd.s32 %v498, %v517
      %vm523 = vc.u32 %v498, %v517
      %v524 = vadd.s32 %v520, 1
      %v525 = vsel %vm523, %v524, %v520
      %v526 = vadd.s32 %v521, %v525
      %v527 = vadd.s32 %v526, 536870912
      %v528 = vshrl.u32 %v527, 30
      %v529 = vshll.u32 %v528, 30
      %v530 = vsub.s32 %v526, %v529
      %vm531 = vcmp.lt.s32.totalorder %v530, 0
      %v532 = vsub.s32 0, %v530
      %v533 = vsel %vm531, %v532, %v530
      %v534 = vclz %v533
      %v535 = vsub.s32 %v534, 2
      %vm536 = vcmp.gt.s32.totalorder 0, %v535
      %v537 = vsel %vm536, 0, %v535
      %v538 = vsub.s32 32, %v537
      %v539 = vshll.u32 %v530, %v537
      %v540 = vshrl.u32 %v522, %v538
      %v541 = vor.u32 %v539, %v540
      %v542 = vsub.s32 4294967266, %v537
      %v543 = vadd.s32 %v542, 127
      %v544 = vshll.u32 %v543, 23
      %v545 = vor.u32 4788187, %v544
      %v546 = vand.u32 2147483647, %v545
      %v548 = vcvt.s32.f32 %v541
      %v549 = vmul.f32 %v548, %v546
      %v550 = vxor.u32 %v549, 2147483648
      %v551 = vsel %vm430, %v550, %v549
      %v552 = vsub.s32 4, %v528
      %v553 = vsel %vm430, %v552, %v528
      %v554 = vsel %vm429, %v181, %v551
      %v555 = vsel %vm429, 0, %v553
      %v556 = vmul.f32 %v554, %v554
      %v557 = vmul.f32 %v556, -0.001358992
      %v558 = vadd.f32 %v557, 0.041655596
      %v559 = vmul.f32 %v556, %v558
      %v560 = vadd.f32 %v559, -0.4999988
      %v561 = vmul.f32 %v556, %v560
      %v562 = vadd.f32 1.0, %v561
      %v563 = vmul.f32 %v554, %v554
      %v564 = vmul.f32 %v563, -0.00019511016
      %v565 = vadd.f32 %v564, 0.008332121
      %v566 = vmul.f32 %v563, %v565
      %v567 = vadd.f32 %v566, -0.16666654
      %v568 = vmul.f32 %v563, %v567
      %v569 = vadd.f32 %v568, 1.0
      %v570 = vmul.f32 %v569, %v554
      %vm571 = vweird.f32 %v181
      %v572 = vadd.s32 %v555, 3
      %v573 = vand.u32 %v572, 3
      %vm574 = vcmp.lt.s32.totalorder %v573, 2
      %vm575 = vcmp.eq.s32.totalorder %v573, 0
      %v576 = vxor.u32 %v570, 2147483648
      %v577 = vsel %vm575, %v562, %v576
      %vm578 = vcmp.eq.s32.totalorder %v573, 2
      %v579 = vxor.u32 %v562, 2147483648
      %v580 = vsel %vm578, %v579, %v570
      %v581 = vsel %vm574, %v577, %v580
      %v582 = vsel %vm571, nan, %v581
      %v583 = vand.u32 2147483647, %v184
      %vm584 = vcmp.le.f32.partialorder %v583, 0.7853982
      %vm585 = vcmp.lt.s32.totalorder %v184, 0
      %v586 = vand.u32 %v184, 2139095040
      %v587 = vshrl.u32 %v586, 23
      %v588 = vsub.s32 %v587, 127
      %v589 = vand.u32 2147483647, %v184
      %v590 = vand.u32 %v589, 8388607
      %v591 = vor.u32 %v590, 8388608
      %v592 = vsub.s32 0, %v591
      %v593 = vadd.s32 %v588, 1
      %vm594 = vcmp.gt.s32.totalorder %v593, 0
      %v595 = vsel %vm594, %v593, 0
      %v596 = vshrl.u32 %v595, 5
      %v597 = vand.u32 %v595, 31
      %v598 = vsub.s32 32, %v597
      %v599 = vshrl.u32 683565275, %v598
      %v600 = vshll.u32 683565275, %v597
      %v601 = vshrl.u32 2475754826, %v598
      %v602 = vor.u32 %v600, %v601
      %v603 = vshll.u32 2475754826, %v597
      %v604 = vshrl.u32 2131351028, %v598
      %v605 = vor.u32 %v603, %v604
      %v606 = vshll.u32 2131351028, %v597
      %v607 = vshrl.u32 2102212464, %v598
      %v608 = vor.u32 %v606, %v607
      %v609 = vshll.u32 2102212464, %v597
      %v610 = vshrl.u32 920167782, %v598
      %v611 = vor.u32 %v609, %v610
      %v612 = vshll.u32 920167782, %v597
      %v613 = vshrl.u32 1326507024, %v598
      %v614 = vor.u32 %v612, %v613
      %vm615 = vcmp.lt.s32.totalorder %v596, 1
      %vm616 = vcmp.lt.s32.totalorder %v596, 2
      %vm617 = vcmp.lt.s32.totalorder %v596, 3
      %vm618 = vcmp.lt.s32.totalorder %v596, 4
      %v619 = vsel %vm615, %v599, %v602
      %v620 = vsel %vm618, %v608, 2102212464
      %v621 = vsel %vm617, %v605, %v620
      %v622 = vsel %vm616, %v619, %v621
      %v623 = vsel %vm615, %v602, %v605
      %v624 = vsel %vm618, %v611, 920167782
      %v625 = vsel %vm617, %v608, %v624
      %v626 = vsel %vm616, %v623, %v625
      %v627 = vsel %vm615, %v605, %v608
      %v628 = vsel %vm618, %v614, 1326507024
      %v629 = vsel %vm617, %v611, %v628
      %v630 = vsel %vm616, %v627, %v629
      %v631 = vshll.u32 %v591, 8
      %v632 = vand.u32 %v631, 65535
      %v633 = vshrl.u32 %v631, 16
      %v634 = vand.u32 %v630, 65535
      %v635 = vshrl.u32 %v630, 16
      %v636 = vmul.u32 %v632, %v634
      %v637 = vmul.u32 %v632, %v635
      %v638 = vmul.u32 %v633, %v634
      %v639 = vmul.u32 %v633, %v635
      %v640 = vshll.u32 %v637, 16
      %v641 = vshrl.u32 %v637, 16
      %v642 = vshll.u32 %v638, 16
      %v643 = vshrl.u32 %v638, 16
      %vm644 = vc.u32 %v636, %v640
      %v645 = vsel %vm644, 1, 0
      %v646 = vadd.s32 %v636, %v640
      %v647 = vadd.s32 %v639, %v645
      %vm648 = vc.u32 %v646, %v642
      %v649 = vsel %vm648, 1, 0
      %v650 = vadd.s32 %v646, %v642
      %v651 = vadd.s32 %v647, %v649
      %v652 = vadd.s32 %v651, %v641
      %v653 = vadd.s32 %v652, %v643
      %v654 = vand.u32 %v631, 65535
      %v655 = vshrl.u32 %v631, 16
      %v656 = vand.u32 %v626, 65535
      %v657 = vshrl.u32 %v626, 16
      %v658 = vmul.u32 %v654, %v656
      %v659 = vmul.u32 %v654, %v657
      %v660 = vmul.u32 %v655, %v656
      %v661 = vmul.u32 %v655, %v657
      %v662 = vshll.u32 %v659, 16
      %v663 = vshrl.u32 %v659, 16
      %v664 = vshll.u32 %v660, 16
      %v665 = vshrl.u32 %v660, 16
      %vm666 = vc.u32 %v658, %v662
      %v667 = vsel %vm666, 1, 0
      %v668 = vadd.s32 %v658, %v662
      %v669 = vadd.s32 %v661, %v667
      %vm670 = vc.u32 %v668, %v664
      %v671 = vsel %vm670, 1, 0
      %v672 = vadd.s32 %v668, %v664
      %v673 = vadd.s32 %v669, %v671
      %v674 = vadd.s32 %v673, %v663
      %v675 = vadd.s32 %v674, %v665
      %v676 = vmul.u32 %v631, %v622
      %v677 = vadd.s32 %v653, %v672
      %vm678 = vc.u32 %v653, %v672
      %v679 = vadd.s32 %v675, 1
      %v680 = vsel %vm678, %v679, %v675
      %v681 = vadd.s32 %v676, %v680
      %v682 = vadd.s32 %v681, 536870912
      %v683 = vshrl.u32 %v682, 30
      %v684 = vshll.u32 %v683, 30
      %v685 = vsub.s32 %v681, %v684
      %vm686 = vcmp.lt.s32.totalorder %v685, 0
      %v687 = vsub.s32 0, %v685
      %v688 = vsel %vm686, %v687, %v685
      %v689 = vclz %v688
      %v690 = vsub.s32 %v689, 2
      %vm691 = vcmp.gt.s32.totalorder 0, %v690
      %v692 = vsel %vm691, 0, %v690
      %v693 = vsub.s32 32, %v692
      %v694 = vshll.u32 %v685, %v692
      %v695 = vshrl.u32 %v677, %v693
      %v696 = vor.u32 %v694, %v695
      %v697 = vsub.s32 4294967266, %v692
      %v698 = vadd.s32 %v697, 127
      %v699 = vshll.u32 %v698, 23
      %v700 = vor.u32 4788187, %v699
      %v701 = vand.u32 2147483647, %v700
      %v703 = vcvt.s32.f32 %v696
      %v704 = vmul.f32 %v703, %v701
      %v705 = vxor.u32 %v704, 2147483648
      %v706 = vsel %vm585, %v705, %v704
      %v707 = vsub.s32 4, %v683
      %v708 = vsel %vm585, %v707, %v683
      %v709 = vsel %vm584, %v184, %v706
      %v710 = vsel %vm584, 0, %v708
      %v711 = vmul.f32 %v709, %v709
      %v712 = vmul.f32 %v711, -0.001358992
      %v713 = vadd.f32 %v712, 0.041655596
      %v714 = vmul.f32 %v711, %v713
      %v715 = vadd.f32 %v714, -0.4999988
      %v716 = vmul.f32 %v711, %v715
      %v717 = vadd.f32 1.0, %v716
      %v718 = vmul.f32 %v709, %v709
      %v719 = vmul.f32 %v718, -0.00019511016
      %v720 = vadd.f32 %v719, 0.008332121
      %v721 = vmul.f32 %v718, %v720
      %v722 = vadd.f32 %v721, -0.16666654
      %v723 = vmul.f32 %v718, %v722
      %v724 = vadd.f32 %v723, 1.0
      %v725 = vmul.f32 %v724, %v709
      %vm726 = vweird.f32 %v184
      %v727 = vadd.s32 %v710, 3
      %v728 = vand.u32 %v727, 3
      %vm729 = vcmp.lt.s32.totalorder %v728, 2
      %vm730 = vcmp.eq.s32.totalorder %v728, 0
      %v731 = vxor.u32 %v725, 2147483648
      %v732 = vsel %vm730, %v717, %v731
      %vm733 = vcmp.eq.s32.totalorder %v728, 2
      %v734 = vxor.u32 %v717, 2147483648
      %v735 = vsel %vm733, %v734, %v725
      %v736 = vsel %vm729, %v732, %v735
      %v737 = vsel %vm726, nan, %v736
      %v738 = vand.u32 2147483647, %v187
      %vm739 = vcmp.le.f32.partialorder %v738, 0.7853982
      %vm740 = vcmp.lt.s32.totalorder %v187, 0
      %v741 = vand.u32 %v187, 2139095040
      %v742 = vshrl.u32 %v741, 23
      %v743 = vsub.s32 %v742, 127
      %v744 = vand.u32 2147483647, %v187
      %v745 = vand.u32 %v744, 8388607
      %v746 = vor.u32 %v745, 8388608
      %v747 = vsub.s32 0, %v746
      %v748 = vadd.s32 %v743, 1
      %vm749 = vcmp.gt.s32.totalorder %v748, 0
      %v750 = vsel %vm749, %v748, 0
      %v751 = vshrl.u32 %v750, 5
      %v752 = vand.u32 %v750, 31
      %v753 = vsub.s32 32, %v752
      %v754 = vshrl.u32 683565275, %v753
      %v755 = vshll.u32 683565275, %v752
      %v756 = vshrl.u32 2475754826, %v753
      %v757 = vor.u32 %v755, %v756
      %v758 = vshll.u32 2475754826, %v752
      %v759 = vshrl.u32 2131351028, %v753
      %v760 = vor.u32 %v758, %v759
      %v761 = vshll.u32 2131351028, %v752
      %v762 = vshrl.u32 2102212464, %v753
      %v763 = vor.u32 %v761, %v762
      %v764 = vshll.u32 2102212464, %v752
      %v765 = vshrl.u32 920167782, %v753
      %v766 = vor.u32 %v764, %v765
      %v767 = vshll.u32 920167782, %v752
      %v768 = vshrl.u32 1326507024, %v753
      %v769 = vor.u32 %v767, %v768
      %vm770 = vcmp.lt.s32.totalorder %v751, 1
      %vm771 = vcmp.lt.s32.totalorder %v751, 2
      %vm772 = vcmp.lt.s32.totalorder %v751, 3
      %vm773 = vcmp.lt.s32.totalorder %v751, 4
      %v774 = vsel %vm770, %v754, %v757
      %v775 = vsel %vm773, %v763, 2102212464
      %v776 = vsel %vm772, %v760, %v775
      %v777 = vsel %vm771, %v774, %v776
      %v778 = vsel %vm770, %v757, %v760
      %v779 = vsel %vm773, %v766, 920167782
      %v780 = vsel %vm772, %v763, %v779
      %v781 = vsel %vm771, %v778, %v780
      %v782 = vsel %vm770, %v760, %v763
      %v783 = vsel %vm773, %v769, 1326507024
      %v784 = vsel %vm772, %v766, %v783
      %v785 = vsel %vm771, %v782, %v784
      %v786 = vshll.u32 %v746, 8
      %v787 = vand.u32 %v786, 65535
      %v788 = vshrl.u32 %v786, 16
      %v789 = vand.u32 %v785, 65535
      %v790 = vshrl.u32 %v785, 16
      %v791 = vmul.u32 %v787, %v789
      %v792 = vmul.u32 %v787, %v790
      %v793 = vmul.u32 %v788, %v789
      %v794 = vmul.u32 %v788, %v790
      %v795 = vshll.u32 %v792, 16
      %v796 = vshrl.u32 %v792, 16
      %v797 = vshll.u32 %v793, 16
      %v798 = vshrl.u32 %v793, 16
      %vm799 = vc.u32 %v791, %v795
      %v800 = vsel %vm799, 1, 0
      %v801 = vadd.s32 %v791, %v795
      %v802 = vadd.s32 %v794, %v800
      %vm803 = vc.u32 %v801, %v797
      %v804 = vsel %vm803, 1, 0
      %v805 = vadd.s32 %v801, %v797
      %v806 = vadd.s32 %v802, %v804
      %v807 = vadd.s32 %v806, %v796
      %v808 = vadd.s32 %v807, %v798
      %v809 = vand.u32 %v786, 65535
      %v810 = vshrl.u32 %v786, 16
      %v811 = vand.u32 %v781, 65535
      %v812 = vshrl.u32 %v781, 16
      %v813 = vmul.u32 %v809, %v811
      %v814 = vmul.u32 %v809, %v812
      %v815 = vmul.u32 %v810, %v811
      %v816 = vmul.u32 %v810, %v812
      %v817 = vshll.u32 %v814, 16
      %v818 = vshrl.u32 %v814, 16
      %v819 = vshll.u32 %v815, 16
      %v820 = vshrl.u32 %v815, 16
      %vm821 = vc.u32 %v813, %v817
      %v822 = vsel %vm821, 1, 0
      %v823 = vadd.s32 %v813, %v817
      %v824 = vadd.s32 %v816, %v822
      %vm825 = vc.u32 %v823, %v819
      %v826 = vsel %vm825, 1, 0
      %v827 = vadd.s32 %v823, %v819
      %v828 = vadd.s32 %v824, %v826
      %v829 = vadd.s32 %v828, %v818
      %v830 = vadd.s32 %v829, %v820
      %v831 = vmul.u32 %v786, %v777
      %v832 = vadd.s32 %v808, %v827
      %vm833 = vc.u32 %v808, %v827
      %v834 = vadd.s32 %v830, 1
      %v835 = vsel %vm833, %v834, %v830
      %v836 = vadd.s32 %v831, %v835
      %v837 = vadd.s32 %v836, 536870912
      %v838 = vshrl.u32 %v837, 30
      %v839 = vshll.u32 %v838, 30
      %v840 = vsub.s32 %v836, %v839
      %vm841 = vcmp.lt.s32.totalorder %v840, 0
      %v842 = vsub.s32 0, %v840
      %v843 = vsel %vm841, %v842, %v840
      %v844 = vclz %v843
      %v845 = vsub.s32 %v844, 2
      %vm846 = vcmp.gt.s32.totalorder 0, %v845
      %v847 = vsel %vm846, 0, %v845
      %v848 = vsub.s32 32, %v847
      %v849 = vshll.u32 %v840, %v847
      %v850 = vshrl.u32 %v832, %v848
      %v851 = vor.u32 %v849, %v850
      %v852 = vsub.s32 4294967266, %v847
      %v853 = vadd.s32 %v852, 127
      %v854 = vshll.u32 %v853, 23
      %v855 = vor.u32 4788187, %v854
      %v856 = vand.u32 2147483647, %v855
      %v858 = vcvt.s32.f32 %v851
      %v859 = vmul.f32 %v858, %v856
      %v860 = vxor.u32 %v859, 2147483648
      %v861 = vsel %vm740, %v860, %v859
      %v862 = vsub.s32 4, %v838
      %v863 = vsel %vm740, %v862, %v838
      %v864 = vsel %vm739, %v187, %v861
      %v865 = vsel %vm739, 0, %v863
      %v866 = vmul.f32 %v864, %v864
      %v867 = vmul.f32 %v866, -0.001358992
      %v868 = vadd.f32 %v867, 0.041655596
      %v869 = vmul.f32 %v866, %v868
      %v870 = vadd.f32 %v869, -0.4999988
      %v871 = vmul.f32 %v866, %v870
      %v872 = vadd.f32 1.0, %v871
      %v873 = vmul.f32 %v864, %v864
      %v874 = vmul.f32 %v873, -0.00019511016
      %v875 = vadd.f32 %v874, 0.008332121
      %v876 = vmul.f32 %v873, %v875
      %v877 = vadd.f32 %v876, -0.16666654
      %v878 = vmul.f32 %v873, %v877
      %v879 = vadd.f32 %v878, 1.0
      %v880 = vmul.f32 %v879, %v864
      %vm881 = vweird.f32 %v187
      %v882 = vadd.s32 %v865, 3
      %v883 = vand.u32 %v882, 3
      %vm884 = vcmp.lt.s32.totalorder %v883, 2
      %vm885 = vcmp.eq.s32.totalorder %v883, 0
      %v886 = vxor.u32 %v880, 2147483648
      %v887 = vsel %vm885, %v872, %v886
      %vm888 = vcmp.eq.s32.totalorder %v883, 2
      %v889 = vxor.u32 %v872, 2147483648
      %v890 = vsel %vm888, %v889, %v880
      %v891 = vsel %vm884, %v887, %v890
      %v892 = vsel %vm881, nan, %v891
      %v893 = vand.u32 2147483647, %v190
      %vm894 = vcmp.le.f32.partialorder %v893, 0.7853982
      %vm895 = vcmp.lt.s32.totalorder %v190, 0
      %v896 = vand.u32 %v190, 2139095040
      %v897 = vshrl.u32 %v896, 23
      %v898 = vsub.s32 %v897, 127
      %v899 = vand.u32 2147483647, %v190
      %v900 = vand.u32 %v899, 8388607
      %v901 = vor.u32 %v900, 8388608
      %v902 = vsub.s32 0, %v901
      %v903 = vadd.s32 %v898, 1
      %vm904 = vcmp.gt.s32.totalorder %v903, 0
      %v905 = vsel %vm904, %v903, 0
      %v906 = vshrl.u32 %v905, 5
      %v907 = vand.u32 %v905, 31
      %v908 = vsub.s32 32, %v907
      %v909 = vshrl.u32 683565275, %v908
      %v910 = vshll.u32 683565275, %v907
      %v911 = vshrl.u32 2475754826, %v908
      %v912 = vor.u32 %v910, %v911
      %v913 = vshll.u32 2475754826, %v907
      %v914 = vshrl.u32 2131351028, %v908
      %v915 = vor.u32 %v913, %v914
      %v916 = vshll.u32 2131351028, %v907
      %v917 = vshrl.u32 2102212464, %v908
      %v918 = vor.u32 %v916, %v917
      %v919 = vshll.u32 2102212464, %v907
      %v920 = vshrl.u32 920167782, %v908
      %v921 = vor.u32 %v919, %v920
      %v922 = vshll.u32 920167782, %v907
      %v923 = vshrl.u32 1326507024, %v908
      %v924 = vor.u32 %v922, %v923
      %vm925 = vcmp.lt.s32.totalorder %v906, 1
      %vm926 = vcmp.lt.s32.totalorder %v906, 2
      %vm927 = vcmp.lt.s32.totalorder %v906, 3
      %vm928 = vcmp.lt.s32.totalorder %v906, 4
      %v929 = vsel %vm925, %v909, %v912
      %v930 = vsel %vm928, %v918, 2102212464
      %v931 = vsel %vm927, %v915, %v930
      %v932 = vsel %vm926, %v929, %v931
      %v933 = vsel %vm925, %v912, %v915
      %v934 = vsel %vm928, %v921, 920167782
      %v935 = vsel %vm927, %v918, %v934
      %v936 = vsel %vm926, %v933, %v935
      %v937 = vsel %vm925, %v915, %v918
      %v938 = vsel %vm928, %v924, 1326507024
      %v939 = vsel %vm927, %v921, %v938
      %v940 = vsel %vm926, %v937, %v939
      %v941 = vshll.u32 %v901, 8
      %v942 = vand.u32 %v941, 65535
      %v943 = vshrl.u32 %v941, 16
      %v944 = vand.u32 %v940, 65535
      %v945 = vshrl.u32 %v940, 16
      %v946 = vmul.u32 %v942, %v944
      %v947 = vmul.u32 %v942, %v945
      %v948 = vmul.u32 %v943, %v944
      %v949 = vmul.u32 %v943, %v945
      %v950 = vshll.u32 %v947, 16
      %v951 = vshrl.u32 %v947, 16
      %v952 = vshll.u32 %v948, 16
      %v953 = vshrl.u32 %v948, 16
      %vm954 = vc.u32 %v946, %v950
      %v955 = vsel %vm954, 1, 0
      %v956 = vadd.s32 %v946, %v950
      %v957 = vadd.s32 %v949, %v955
      %vm958 = vc.u32 %v956, %v952
      %v959 = vsel %vm958, 1, 0
      %v960 = vadd.s32 %v956, %v952
      %v961 = vadd.s32 %v957, %v959
      %v962 = vadd.s32 %v961, %v951
      %v963 = vadd.s32 %v962, %v953
      %v964 = vand.u32 %v941, 65535
      %v965 = vshrl.u32 %v941, 16
      %v966 = vand.u32 %v936, 65535
      %v967 = vshrl.u32 %v936, 16
      %v968 = vmul.u32 %v964, %v966
      %v969 = vmul.u32 %v964, %v967
      %v970 = vmul.u32 %v965, %v966
      %v971 = vmul.u32 %v965, %v967
      %v972 = vshll.u32 %v969, 16
      %v973 = vshrl.u32 %v969, 16
      %v974 = vshll.u32 %v970, 16
      %v975 = vshrl.u32 %v970, 16
      %vm976 = vc.u32 %v968, %v972
      %v977 = vsel %vm976, 1, 0
      %v978 = vadd.s32 %v968, %v972
      %v979 = vadd.s32 %v971, %v977
      %vm980 = vc.u32 %v978, %v974
      %v981 = vsel %vm980, 1, 0
      %v982 = vadd.s32 %v978, %v974
      %v983 = vadd.s32 %v979, %v981
      %v984 = vadd.s32 %v983, %v973
      %v985 = vadd.s32 %v984, %v975
      %v986 = vmul.u32 %v941, %v932
      %v987 = vadd.s32 %v963, %v982
      %vm988 = vc.u32 %v963, %v982
      %v989 = vadd.s32 %v985, 1
      %v990 = vsel %vm988, %v989, %v985
      %v991 = vadd.s32 %v986, %v990
      %v992 = vadd.s32 %v991, 536870912
      %v993 = vshrl.u32 %v992, 30
      %v994 = vshll.u32 %v993, 30
      %v995 = vsub.s32 %v991, %v994
      %vm996 = vcmp.lt.s32.totalorder %v995, 0
      %v997 = vsub.s32 0, %v995
      %v998 = vsel %vm996, %v997, %v995
      %v999 = vclz %v998
      %v1000 = vsub.s32 %v999, 2
      %vm1001 = vcmp.gt.s32.totalorder 0, %v1000
      %v1002 = vsel %vm1001, 0, %v1000
      %v1003 = vsub.s32 32, %v1002
      %v1004 = vshll.u32 %v995, %v1002
      %v1005 = vshrl.u32 %v987, %v1003
      %v1006 = vor.u32 %v1004, %v1005
      %v1007 = vsub.s32 4294967266, %v1002
      %v1008 = vadd.s32 %v1007, 127
      %v1009 = vshll.u32 %v1008, 23
      %v1010 = vor.u32 4788187, %v1009
      %v1011 = vand.u32 2147483647, %v1010
      %v1013 = vcvt.s32.f32 %v1006
      %v1014 = vmul.f32 %v1013, %v1011
      %v1015 = vxor.u32 %v1014, 2147483648
      %v1016 = vsel %vm895, %v1015, %v1014
      %v1017 = vsub.s32 4, %v993
      %v1018 = vsel %vm895, %v1017, %v993
      %v1019 = vsel %vm894, %v190, %v1016
      %v1020 = vsel %vm894, 0, %v1018
      %v1021 = vmul.f32 %v1019, %v1019
      %v1022 = vmul.f32 %v1021, -0.001358992
      %v1023 = vadd.f32 %v1022, 0.041655596
      %v1024 = vmul.f32 %v1021, %v1023
      %v1025 = vadd.f32 %v1024, -0.4999988
      %v1026 = vmul.f32 %v1021, %v1025
      %v1027 = vadd.f32 1.0, %v1026
      %v1028 = vmul.f32 %v1019, %v1019
      %v1029 = vmul.f32 %v1028, -0.00019511016
      %v1030 = vadd.f32 %v1029, 0.008332121
      %v1031 = vmul.f32 %v1028, %v1030
      %v1032 = vadd.f32 %v1031, -0.16666654
      %v1033 = vmul.f32 %v1028, %v1032
      %v1034 = vadd.f32 %v1033, 1.0
      %v1035 = vmul.f32 %v1034, %v1019
      %vm1036 = vweird.f32 %v190
      %v1037 = vadd.s32 %v1020, 3
      %v1038 = vand.u32 %v1037, 3
      %vm1039 = vcmp.lt.s32.totalorder %v1038, 2
      %vm1040 = vcmp.eq.s32.totalorder %v1038, 0
      %v1041 = vxor.u32 %v1035, 2147483648
      %v1042 = vsel %vm1040, %v1027, %v1041
      %vm1043 = vcmp.eq.s32.totalorder %v1038, 2
      %v1044 = vxor.u32 %v1027, 2147483648
      %v1045 = vsel %vm1043, %v1044, %v1035
      %v1046 = vsel %vm1039, %v1042, %v1045
      %v1047 = vsel %vm1036, nan, %v1046
      %v1048 = vand.u32 2147483647, %v193
      %vm1049 = vcmp.le.f32.partialorder %v1048, 0.7853982
      %vm1050 = vcmp.lt.s32.totalorder %v193, 0
      %v1051 = vand.u32 %v193, 2139095040
      %v1052 = vshrl.u32 %v1051, 23
      %v1053 = vsub.s32 %v1052, 127
      %v1054 = vand.u32 2147483647, %v193
      %v1055 = vand.u32 %v1054, 8388607
      %v1056 = vor.u32 %v1055, 8388608
      %v1057 = vsub.s32 0, %v1056
      %v1058 = vadd.s32 %v1053, 1
      %vm1059 = vcmp.gt.s32.totalorder %v1058, 0
      %v1060 = vsel %vm1059, %v1058, 0
      %v1061 = vshrl.u32 %v1060, 5
      %v1062 = vand.u32 %v1060, 31
      %v1063 = vsub.s32 32, %v1062
      %v1064 = vshrl.u32 683565275, %v1063
      %v1065 = vshll.u32 683565275, %v1062
      %v1066 = vshrl.u32 2475754826, %v1063
      %v1067 = vor.u32 %v1065, %v1066
      %v1068 = vshll.u32 2475754826, %v1062
      %v1069 = vshrl.u32 2131351028, %v1063
      %v1070 = vor.u32 %v1068, %v1069
      %v1071 = vshll.u32 2131351028, %v1062
      %v1072 = vshrl.u32 2102212464, %v1063
      %v1073 = vor.u32 %v1071, %v1072
      %v1074 = vshll.u32 2102212464, %v1062
      %v1075 = vshrl.u32 920167782, %v1063
      %v1076 = vor.u32 %v1074, %v1075
      %v1077 = vshll.u32 920167782, %v1062
      %v1078 = vshrl.u32 1326507024, %v1063
      %v1079 = vor.u32 %v1077, %v1078
      %vm1080 = vcmp.lt.s32.totalorder %v1061, 1
      %vm1081 = vcmp.lt.s32.totalorder %v1061, 2
      %vm1082 = vcmp.lt.s32.totalorder %v1061, 3
      %vm1083 = vcmp.lt.s32.totalorder %v1061, 4
      %v1084 = vsel %vm1080, %v1064, %v1067
      %v1085 = vsel %vm1083, %v1073, 2102212464
      %v1086 = vsel %vm1082, %v1070, %v1085
      %v1087 = vsel %vm1081, %v1084, %v1086
      %v1088 = vsel %vm1080, %v1067, %v1070
      %v1089 = vsel %vm1083, %v1076, 920167782
      %v1090 = vsel %vm1082, %v1073, %v1089
      %v1091 = vsel %vm1081, %v1088, %v1090
      %v1092 = vsel %vm1080, %v1070, %v1073
      %v1093 = vsel %vm1083, %v1079, 1326507024
      %v1094 = vsel %vm1082, %v1076, %v1093
      %v1095 = vsel %vm1081, %v1092, %v1094
      %v1096 = vshll.u32 %v1056, 8
      %v1097 = vand.u32 %v1096, 65535
      %v1098 = vshrl.u32 %v1096, 16
      %v1099 = vand.u32 %v1095, 65535
      %v1100 = vshrl.u32 %v1095, 16
      %v1101 = vmul.u32 %v1097, %v1099
      %v1102 = vmul.u32 %v1097, %v1100
      %v1103 = vmul.u32 %v1098, %v1099
      %v1104 = vmul.u32 %v1098, %v1100
      %v1105 = vshll.u32 %v1102, 16
      %v1106 = vshrl.u32 %v1102, 16
      %v1107 = vshll.u32 %v1103, 16
      %v1108 = vshrl.u32 %v1103, 16
      %vm1109 = vc.u32 %v1101, %v1105
      %v1110 = vsel %vm1109, 1, 0
      %v1111 = vadd.s32 %v1101, %v1105
      %v1112 = vadd.s32 %v1104, %v1110
      %vm1113 = vc.u32 %v1111, %v1107
      %v1114 = vsel %vm1113, 1, 0
      %v1115 = vadd.s32 %v1111, %v1107
      %v1116 = vadd.s32 %v1112, %v1114
      %v1117 = vadd.s32 %v1116, %v1106
      %v1118 = vadd.s32 %v1117, %v1108
      %v1119 = vand.u32 %v1096, 65535
      %v1120 = vshrl.u32 %v1096, 16
      %v1121 = vand.u32 %v1091, 65535
      %v1122 = vshrl.u32 %v1091, 16
      %v1123 = vmul.u32 %v1119, %v1121
      %v1124 = vmul.u32 %v1119, %v1122
      %v1125 = vmul.u32 %v1120, %v1121
      %v1126 = vmul.u32 %v1120, %v1122
      %v1127 = vshll.u32 %v1124, 16
      %v1128 = vshrl.u32 %v1124, 16
      %v1129 = vshll.u32 %v1125, 16
      %v1130 = vshrl.u32 %v1125, 16
      %vm1131 = vc.u32 %v1123, %v1127
      %v1132 = vsel %vm1131, 1, 0
      %v1133 = vadd.s32 %v1123, %v1127
      %v1134 = vadd.s32 %v1126, %v1132
      %vm1135 = vc.u32 %v1133, %v1129
      %v1136 = vsel %vm1135, 1, 0
      %v1137 = vadd.s32 %v1133, %v1129
      %v1138 = vadd.s32 %v1134, %v1136
      %v1139 = vadd.s32 %v1138, %v1128
      %v1140 = vadd.s32 %v1139, %v1130
      %v1141 = vmul.u32 %v1096, %v1087
      %v1142 = vadd.s32 %v1118, %v1137
      %vm1143 = vc.u32 %v1118, %v1137
      %v1144 = vadd.s32 %v1140, 1
      %v1145 = vsel %vm1143, %v1144, %v1140
      %v1146 = vadd.s32 %v1141, %v1145
      %v1147 = vadd.s32 %v1146, 536870912
      %v1148 = vshrl.u32 %v1147, 30
      %v1149 = vshll.u32 %v1148, 30
      %v1150 = vsub.s32 %v1146, %v1149
      %vm1151 = vcmp.lt.s32.totalorder %v1150, 0
      %v1152 = vsub.s32 0, %v1150
      %v1153 = vsel %vm1151, %v1152, %v1150
      %v1154 = vclz %v1153
      %v1155 = vsub.s32 %v1154, 2
      %vm1156 = vcmp.gt.s32.totalorder 0, %v1155
      %v1157 = vsel %vm1156, 0, %v1155
      %v1158 = vsub.s32 32, %v1157
      %v1159 = vshll.u32 %v1150, %v1157
      %v1160 = vshrl.u32 %v1142, %v1158
      %v1161 = vor.u32 %v1159, %v1160
      %v1162 = vsub.s32 4294967266, %v1157
      %v1163 = vadd.s32 %v1162, 127
      %v1164 = vshll.u32 %v1163, 23
      %v1165 = vor.u32 4788187, %v1164
      %v1166 = vand.u32 2147483647, %v1165
      %v1168 = vcvt.s32.f32 %v1161
      %v1169 = vmul.f32 %v1168, %v1166
      %v1170 = vxor.u32 %v1169, 2147483648
      %v1171 = vsel %vm1050, %v1170, %v1169
      %v1172 = vsub.s32 4, %v1148
      %v1173 = vsel %vm1050, %v1172, %v1148
      %v1174 = vsel %vm1049, %v193, %v1171
      %v1175 = vsel %vm1049, 0, %v1173
      %v1176 = vmul.f32 %v1174, %v1174
      %v1177 = vmul.f32 %v1176, -0.001358992
      %v1178 = vadd.f32 %v1177, 0.041655596
      %v1179 = vmul.f32 %v1176, %v1178
      %v1180 = vadd.f32 %v1179, -0.4999988
      %v1181 = vmul.f32 %v1176, %v1180
      %v1182 = vadd.f32 1.0, %v1181
      %v1183 = vmul.f32 %v1174, %v1174
      %v1184 = vmul.f32 %v1183, -0.00019511016
      %v1185 = vadd.f32 %v1184, 0.008332121
      %v1186 = vmul.f32 %v1183, %v1185
      %v1187 = vadd.f32 %v1186, -0.16666654
      %v1188 = vmul.f32 %v1183, %v1187
      %v1189 = vadd.f32 %v1188, 1.0
      %v1190 = vmul.f32 %v1189, %v1174
      %vm1191 = vweird.f32 %v193
      %v1192 = vadd.s32 %v1175, 3
      %v1193 = vand.u32 %v1192, 3
      %vm1194 = vcmp.lt.s32.totalorder %v1193, 2
      %vm1195 = vcmp.eq.s32.totalorder %v1193, 0
      %v1196 = vxor.u32 %v1190, 2147483648
      %v1197 = vsel %vm1195, %v1182, %v1196
      %vm1198 = vcmp.eq.s32.totalorder %v1193, 2
      %v1199 = vxor.u32 %v1182, 2147483648
      %v1200 = vsel %vm1198, %v1199, %v1190
      %v1201 = vsel %vm1194, %v1197, %v1200
      %v1202 = vsel %vm1191, nan, %v1201
      %v1203 = vand.u32 2147483647, %v196
      %vm1204 = vcmp.le.f32.partialorder %v1203, 0.7853982
      %vm1205 = vcmp.lt.s32.totalorder %v196, 0
      %v1206 = vand.u32 %v196, 2139095040
      %v1207 = vshrl.u32 %v1206, 23
      %v1208 = vsub.s32 %v1207, 127
      %v1209 = vand.u32 2147483647, %v196
      %v1210 = vand.u32 %v1209, 8388607
      %v1211 = vor.u32 %v1210, 8388608
      %v1212 = vsub.s32 0, %v1211
      %v1213 = vadd.s32 %v1208, 1
      %vm1214 = vcmp.gt.s32.totalorder %v1213, 0
      %v1215 = vsel %vm1214, %v1213, 0
      %v1216 = vshrl.u32 %v1215, 5
      %v1217 = vand.u32 %v1215, 31
      %v1218 = vsub.s32 32, %v1217
      %v1219 = vshrl.u32 683565275, %v1218
      %v1220 = vshll.u32 683565275, %v1217
      %v1221 = vshrl.u32 2475754826, %v1218
      %v1222 = vor.u32 %v1220, %v1221
      %v1223 = vshll.u32 2475754826, %v1217
      %v1224 = vshrl.u32 2131351028, %v1218
      %v1225 = vor.u32 %v1223, %v1224
      %v1226 = vshll.u32 2131351028, %v1217
      %v1227 = vshrl.u32 2102212464, %v1218
      %v1228 = vor.u32 %v1226, %v1227
      %v1229 = vshll.u32 2102212464, %v1217
      %v1230 = vshrl.u32 920167782, %v1218
      %v1231 = vor.u32 %v1229, %v1230
      %v1232 = vshll.u32 920167782, %v1217
      %v1233 = vshrl.u32 1326507024, %v1218
      %v1234 = vor.u32 %v1232, %v1233
      %vm1235 = vcmp.lt.s32.totalorder %v1216, 1
      %vm1236 = vcmp.lt.s32.totalorder %v1216, 2
      %vm1237 = vcmp.lt.s32.totalorder %v1216, 3
      %vm1238 = vcmp.lt.s32.totalorder %v1216, 4
      %v1239 = vsel %vm1235, %v1219, %v1222
      %v1240 = vsel %vm1238, %v1228, 2102212464
      %v1241 = vsel %vm1237, %v1225, %v1240
      %v1242 = vsel %vm1236, %v1239, %v1241
      %v1243 = vsel %vm1235, %v1222, %v1225
      %v1244 = vsel %vm1238, %v1231, 920167782
      %v1245 = vsel %vm1237, %v1228, %v1244
      %v1246 = vsel %vm1236, %v1243, %v1245
      %v1247 = vsel %vm1235, %v1225, %v1228
      %v1248 = vsel %vm1238, %v1234, 1326507024
      %v1249 = vsel %vm1237, %v1231, %v1248
      %v1250 = vsel %vm1236, %v1247, %v1249
      %v1251 = vshll.u32 %v1211, 8
      %v1252 = vand.u32 %v1251, 65535
      %v1253 = vshrl.u32 %v1251, 16
      %v1254 = vand.u32 %v1250, 65535
      %v1255 = vshrl.u32 %v1250, 16
      %v1256 = vmul.u32 %v1252, %v1254
      %v1257 = vmul.u32 %v1252, %v1255
      %v1258 = vmul.u32 %v1253, %v1254
      %v1259 = vmul.u32 %v1253, %v1255
      %v1260 = vshll.u32 %v1257, 16
      %v1261 = vshrl.u32 %v1257, 16
      %v1262 = vshll.u32 %v1258, 16
      %v1263 = vshrl.u32 %v1258, 16
      %vm1264 = vc.u32 %v1256, %v1260
      %v1265 = vsel %vm1264, 1, 0
      %v1266 = vadd.s32 %v1256, %v1260
      %v1267 = vadd.s32 %v1259, %v1265
      %vm1268 = vc.u32 %v1266, %v1262
      %v1269 = vsel %vm1268, 1, 0
      %v1270 = vadd.s32 %v1266, %v1262
      %v1271 = vadd.s32 %v1267, %v1269
      %v1272 = vadd.s32 %v1271, %v1261
      %v1273 = vadd.s32 %v1272, %v1263
      %v1274 = vand.u32 %v1251, 65535
      %v1275 = vshrl.u32 %v1251, 16
      %v1276 = vand.u32 %v1246, 65535
      %v1277 = vshrl.u32 %v1246, 16
      %v1278 = vmul.u32 %v1274, %v1276
      %v1279 = vmul.u32 %v1274, %v1277
      %v1280 = vmul.u32 %v1275, %v1276
      %v1281 = vmul.u32 %v1275, %v1277
      %v1282 = vshll.u32 %v1279, 16
      %v1283 = vshrl.u32 %v1279, 16
      %v1284 = vshll.u32 %v1280, 16
      %v1285 = vshrl.u32 %v1280, 16
      %vm1286 = vc.u32 %v1278, %v1282
      %v1287 = vsel %vm1286, 1, 0
      %v1288 = vadd.s32 %v1278, %v1282
      %v1289 = vadd.s32 %v1281, %v1287
      %vm1290 = vc.u32 %v1288, %v1284
      %v1291 = vsel %vm1290, 1, 0
      %v1292 = vadd.s32 %v1288, %v1284
      %v1293 = vadd.s32 %v1289, %v1291
      %v1294 = vadd.s32 %v1293, %v1283
      %v1295 = vadd.s32 %v1294, %v1285
      %v1296 = vmul.u32 %v1251, %v1242
      %v1297 = vadd.s32 %v1273, %v1292
      %vm1298 = vc.u32 %v1273, %v1292
      %v1299 = vadd.s32 %v1295, 1
      %v1300 = vsel %vm1298, %v1299, %v1295
      %v1301 = vadd.s32 %v1296, %v1300
      %v1302 = vadd.s32 %v1301, 536870912
      %v1303 = vshrl.u32 %v1302, 30
      %v1304 = vshll.u32 %v1303, 30
      %v1305 = vsub.s32 %v1301, %v1304
      %vm1306 = vcmp.lt.s32.totalorder %v1305, 0
      %v1307 = vsub.s32 0, %v1305
      %v1308 = vsel %vm1306, %v1307, %v1305
      %v1309 = vclz %v1308
      %v1310 = vsub.s32 %v1309, 2
      %vm1311 = vcmp.gt.s32.totalorder 0, %v1310
      %v1312 = vsel %vm1311, 0, %v1310
      %v1313 = vsub.s32 32, %v1312
      %v1314 = vshll.u32 %v1305, %v1312
      %v1315 = vshrl.u32 %v1297, %v1313
      %v1316 = vor.u32 %v1314, %v1315
      %v1317 = vsub.s32 4294967266, %v1312
      %v1318 = vadd.s32 %v1317, 127
      %v1319 = vshll.u32 %v1318, 23
      %v1320 = vor.u32 4788187, %v1319
      %v1321 = vand.u32 2147483647, %v1320
      %v1323 = vcvt.s32.f32 %v1316
      %v1324 = vmul.f32 %v1323, %v1321
      %v1325 = vxor.u32 %v1324, 2147483648
      %v1326 = vsel %vm1205, %v1325, %v1324
      %v1327 = vsub.s32 4, %v1303
      %v1328 = vsel %vm1205, %v1327, %v1303
      %v1329 = vsel %vm1204, %v196, %v1326
      %v1330 = vsel %vm1204, 0, %v1328
      %v1331 = vmul.f32 %v1329, %v1329
      %v1332 = vmul.f32 %v1331, -0.001358992
      %v1333 = vadd.f32 %v1332, 0.041655596
      %v1334 = vmul.f32 %v1331, %v1333
      %v1335 = vadd.f32 %v1334, -0.4999988
      %v1336 = vmul.f32 %v1331, %v1335
      %v1337 = vadd.f32 1.0, %v1336
      %v1338 = vmul.f32 %v1329, %v1329
      %v1339 = vmul.f32 %v1338, -0.00019511016
      %v1340 = vadd.f32 %v1339, 0.008332121
      %v1341 = vmul.f32 %v1338, %v1340
      %v1342 = vadd.f32 %v1341, -0.16666654
      %v1343 = vmul.f32 %v1338, %v1342
      %v1344 = vadd.f32 %v1343, 1.0
      %v1345 = vmul.f32 %v1344, %v1329
      %vm1346 = vweird.f32 %v196
      %v1347 = vadd.s32 %v1330, 3
      %v1348 = vand.u32 %v1347, 3
      %vm1349 = vcmp.lt.s32.totalorder %v1348, 2
      %vm1350 = vcmp.eq.s32.totalorder %v1348, 0
      %v1351 = vxor.u32 %v1345, 2147483648
      %v1352 = vsel %vm1350, %v1337, %v1351
      %vm1353 = vcmp.eq.s32.totalorder %v1348, 2
      %v1354 = vxor.u32 %v1337, 2147483648
      %v1355 = vsel %vm1353, %v1354, %v1345
      %v1356 = vsel %vm1349, %v1352, %v1355
      %v1357 = vsel %vm1346, nan, %v1356
      %v1358 = vand.u32 2147483647, %v199
      %vm1359 = vcmp.le.f32.partialorder %v1358, 0.7853982
      %vm1360 = vcmp.lt.s32.totalorder %v199, 0
      %v1361 = vand.u32 %v199, 2139095040
      %v1362 = vshrl.u32 %v1361, 23
      %v1363 = vsub.s32 %v1362, 127
      %v1364 = vand.u32 2147483647, %v199
      %v1365 = vand.u32 %v1364, 8388607
      %v1366 = vor.u32 %v1365, 8388608
      %v1367 = vsub.s32 0, %v1366
      %v1368 = vadd.s32 %v1363, 1
      %vm1369 = vcmp.gt.s32.totalorder %v1368, 0
      %v1370 = vsel %vm1369, %v1368, 0
      %v1371 = vshrl.u32 %v1370, 5
      %v1372 = vand.u32 %v1370, 31
      %v1373 = vsub.s32 32, %v1372
      %v1374 = vshrl.u32 683565275, %v1373
      %v1375 = vshll.u32 683565275, %v1372
      %v1376 = vshrl.u32 2475754826, %v1373
      %v1377 = vor.u32 %v1375, %v1376
      %v1378 = vshll.u32 2475754826, %v1372
      %v1379 = vshrl.u32 2131351028, %v1373
      %v1380 = vor.u32 %v1378, %v1379
      %v1381 = vshll.u32 2131351028, %v1372
      %v1382 = vshrl.u32 2102212464, %v1373
      %v1383 = vor.u32 %v1381, %v1382
      %v1384 = vshll.u32 2102212464, %v1372
      %v1385 = vshrl.u32 920167782, %v1373
      %v1386 = vor.u32 %v1384, %v1385
      %v1387 = vshll.u32 920167782, %v1372
      %v1388 = vshrl.u32 1326507024, %v1373
      %v1389 = vor.u32 %v1387, %v1388
      %vm1390 = vcmp.lt.s32.totalorder %v1371, 1
      %vm1391 = vcmp.lt.s32.totalorder %v1371, 2
      %vm1392 = vcmp.lt.s32.totalorder %v1371, 3
      %vm1393 = vcmp.lt.s32.totalorder %v1371, 4
      %v1394 = vsel %vm1390, %v1374, %v1377
      %v1395 = vsel %vm1393, %v1383, 2102212464
      %v1396 = vsel %vm1392, %v1380, %v1395
      %v1397 = vsel %vm1391, %v1394, %v1396
      %v1398 = vsel %vm1390, %v1377, %v1380
      %v1399 = vsel %vm1393, %v1386, 920167782
      %v1400 = vsel %vm1392, %v1383, %v1399
      %v1401 = vsel %vm1391, %v1398, %v1400
      %v1402 = vsel %vm1390, %v1380, %v1383
      %v1403 = vsel %vm1393, %v1389, 1326507024
      %v1404 = vsel %vm1392, %v1386, %v1403
      %v1405 = vsel %vm1391, %v1402, %v1404
      %v1406 = vshll.u32 %v1366, 8
      %v1407 = vand.u32 %v1406, 65535
      %v1408 = vshrl.u32 %v1406, 16
      %v1409 = vand.u32 %v1405, 65535
      %v1410 = vshrl.u32 %v1405, 16
      %v1411 = vmul.u32 %v1407, %v1409
      %v1412 = vmul.u32 %v1407, %v1410
      %v1413 = vmul.u32 %v1408, %v1409
      %v1414 = vmul.u32 %v1408, %v1410
      %v1415 = vshll.u32 %v1412, 16
      %v1416 = vshrl.u32 %v1412, 16
      %v1417 = vshll.u32 %v1413, 16
      %v1418 = vshrl.u32 %v1413, 16
      %vm1419 = vc.u32 %v1411, %v1415
      %v1420 = vsel %vm1419, 1, 0
      %v1421 = vadd.s32 %v1411, %v1415
      %v1422 = vadd.s32 %v1414, %v1420
      %vm1423 = vc.u32 %v1421, %v1417
      %v1424 = vsel %vm1423, 1, 0
      %v1425 = vadd.s32 %v1421, %v1417
      %v1426 = vadd.s32 %v1422, %v1424
      %v1427 = vadd.s32 %v1426, %v1416
      %v1428 = vadd.s32 %v1427, %v1418
      %v1429 = vand.u32 %v1406, 65535
      %v1430 = vshrl.u32 %v1406, 16
      %v1431 = vand.u32 %v1401, 65535
      %v1432 = vshrl.u32 %v1401, 16
      %v1433 = vmul.u32 %v1429, %v1431
      %v1434 = vmul.u32 %v1429, %v1432
      %v1435 = vmul.u32 %v1430, %v1431
      %v1436 = vmul.u32 %v1430, %v1432
      %v1437 = vshll.u32 %v1434, 16
      %v1438 = vshrl.u32 %v1434, 16
      %v1439 = vshll.u32 %v1435, 16
      %v1440 = vshrl.u32 %v1435, 16
      %vm1441 = vc.u32 %v1433, %v1437
      %v1442 = vsel %vm1441, 1, 0
      %v1443 = vadd.s32 %v1433, %v1437
      %v1444 = vadd.s32 %v1436, %v1442
      %vm1445 = vc.u32 %v1443, %v1439
      %v1446 = vsel %vm1445, 1, 0
      %v1447 = vadd.s32 %v1443, %v1439
      %v1448 = vadd.s32 %v1444, %v1446
      %v1449 = vadd.s32 %v1448, %v1438
      %v1450 = vadd.s32 %v1449, %v1440
      %v1451 = vmul.u32 %v1406, %v1397
      %v1452 = vadd.s32 %v1428, %v1447
      %vm1453 = vc.u32 %v1428, %v1447
      %v1454 = vadd.s32 %v1450, 1
      %v1455 = vsel %vm1453, %v1454, %v1450
      %v1456 = vadd.s32 %v1451, %v1455
      %v1457 = vadd.s32 %v1456, 536870912
      %v1458 = vshrl.u32 %v1457, 30
      %v1459 = vshll.u32 %v1458, 30
      %v1460 = vsub.s32 %v1456, %v1459
      %vm1461 = vcmp.lt.s32.totalorder %v1460, 0
      %v1462 = vsub.s32 0, %v1460
      %v1463 = vsel %vm1461, %v1462, %v1460
      %v1464 = vclz %v1463
      %v1465 = vsub.s32 %v1464, 2
      %vm1466 = vcmp.gt.s32.totalorder 0, %v1465
      %v1467 = vsel %vm1466, 0, %v1465
      %v1468 = vsub.s32 32, %v1467
      %v1469 = vshll.u32 %v1460, %v1467
      %v1470 = vshrl.u32 %v1452, %v1468
      %v1471 = vor.u32 %v1469, %v1470
      %v1472 = vsub.s32 4294967266, %v1467
      %v1473 = vadd.s32 %v1472, 127
      %v1474 = vshll.u32 %v1473, 23
      %v1475 = vor.u32 4788187, %v1474
      %v1476 = vand.u32 2147483647, %v1475
      %v1478 = vcvt.s32.f32 %v1471
      %v1479 = vmul.f32 %v1478, %v1476
      %v1480 = vxor.u32 %v1479, 2147483648
      %v1481 = vsel %vm1360, %v1480, %v1479
      %v1482 = vsub.s32 4, %v1458
      %v1483 = vsel %vm1360, %v1482, %v1458
      %v1484 = vsel %vm1359, %v199, %v1481
      %v1485 = vsel %vm1359, 0, %v1483
      %v1486 = vmul.f32 %v1484, %v1484
      %v1487 = vmul.f32 %v1486, -0.001358992
      %v1488 = vadd.f32 %v1487, 0.041655596
      %v1489 = vmul.f32 %v1486, %v1488
      %v1490 = vadd.f32 %v1489, -0.4999988
      %v1491 = vmul.f32 %v1486, %v1490
      %v1492 = vadd.f32 1.0, %v1491
      %v1493 = vmul.f32 %v1484, %v1484
      %v1494 = vmul.f32 %v1493, -0.00019511016
      %v1495 = vadd.f32 %v1494, 0.008332121
      %v1496 = vmul.f32 %v1493, %v1495
      %v1497 = vadd.f32 %v1496, -0.16666654
      %v1498 = vmul.f32 %v1493, %v1497
      %v1499 = vadd.f32 %v1498, 1.0
      %v1500 = vmul.f32 %v1499, %v1484
      %vm1501 = vweird.f32 %v199
      %v1502 = vadd.s32 %v1485, 3
      %v1503 = vand.u32 %v1502, 3
      %vm1504 = vcmp.lt.s32.totalorder %v1503, 2
      %vm1505 = vcmp.eq.s32.totalorder %v1503, 0
      %v1506 = vxor.u32 %v1500, 2147483648
      %v1507 = vsel %vm1505, %v1492, %v1506
      %vm1508 = vcmp.eq.s32.totalorder %v1503, 2
      %v1509 = vxor.u32 %v1492, 2147483648
      %v1510 = vsel %vm1508, %v1509, %v1500
      %v1511 = vsel %vm1504, %v1507, %v1510
      %v1512 = vsel %vm1501, nan, %v1511
      %v1513 = vand.u32 2147483647, %v202
      %vm1514 = vcmp.le.f32.partialorder %v1513, 0.7853982
      %vm1515 = vcmp.lt.s32.totalorder %v202, 0
      %v1516 = vand.u32 %v202, 2139095040
      %v1517 = vshrl.u32 %v1516, 23
      %v1518 = vsub.s32 %v1517, 127
      %v1519 = vand.u32 2147483647, %v202
      %v1520 = vand.u32 %v1519, 8388607
      %v1521 = vor.u32 %v1520, 8388608
      %v1522 = vsub.s32 0, %v1521
      %v1523 = vadd.s32 %v1518, 1
      %vm1524 = vcmp.gt.s32.totalorder %v1523, 0
      %v1525 = vsel %vm1524, %v1523, 0
      %v1526 = vshrl.u32 %v1525, 5
      %v1527 = vand.u32 %v1525, 31
      %v1528 = vsub.s32 32, %v1527
      %v1529 = vshrl.u32 683565275, %v1528
      %v1530 = vshll.u32 683565275, %v1527
      %v1531 = vshrl.u32 2475754826, %v1528
      %v1532 = vor.u32 %v1530, %v1531
      %v1533 = vshll.u32 2475754826, %v1527
      %v1534 = vshrl.u32 2131351028, %v1528
      %v1535 = vor.u32 %v1533, %v1534
      %v1536 = vshll.u32 2131351028, %v1527
      %v1537 = vshrl.u32 2102212464, %v1528
      %v1538 = vor.u32 %v1536, %v1537
      %v1539 = vshll.u32 2102212464, %v1527
      %v1540 = vshrl.u32 920167782, %v1528
      %v1541 = vor.u32 %v1539, %v1540
      %v1542 = vshll.u32 920167782, %v1527
      %v1543 = vshrl.u32 1326507024, %v1528
      %v1544 = vor.u32 %v1542, %v1543
      %vm1545 = vcmp.lt.s32.totalorder %v1526, 1
      %vm1546 = vcmp.lt.s32.totalorder %v1526, 2
      %vm1547 = vcmp.lt.s32.totalorder %v1526, 3
      %vm1548 = vcmp.lt.s32.totalorder %v1526, 4
      %v1549 = vsel %vm1545, %v1529, %v1532
      %v1550 = vsel %vm1548, %v1538, 2102212464
      %v1551 = vsel %vm1547, %v1535, %v1550
      %v1552 = vsel %vm1546, %v1549, %v1551
      %v1553 = vsel %vm1545, %v1532, %v1535
      %v1554 = vsel %vm1548, %v1541, 920167782
      %v1555 = vsel %vm1547, %v1538, %v1554
      %v1556 = vsel %vm1546, %v1553, %v1555
      %v1557 = vsel %vm1545, %v1535, %v1538
      %v1558 = vsel %vm1548, %v1544, 1326507024
      %v1559 = vsel %vm1547, %v1541, %v1558
      %v1560 = vsel %vm1546, %v1557, %v1559
      %v1561 = vshll.u32 %v1521, 8
      %v1562 = vand.u32 %v1561, 65535
      %v1563 = vshrl.u32 %v1561, 16
      %v1564 = vand.u32 %v1560, 65535
      %v1565 = vshrl.u32 %v1560, 16
      %v1566 = vmul.u32 %v1562, %v1564
      %v1567 = vmul.u32 %v1562, %v1565
      %v1568 = vmul.u32 %v1563, %v1564
      %v1569 = vmul.u32 %v1563, %v1565
      %v1570 = vshll.u32 %v1567, 16
      %v1571 = vshrl.u32 %v1567, 16
      %v1572 = vshll.u32 %v1568, 16
      %v1573 = vshrl.u32 %v1568, 16
      %vm1574 = vc.u32 %v1566, %v1570
      %v1575 = vsel %vm1574, 1, 0
      %v1576 = vadd.s32 %v1566, %v1570
      %v1577 = vadd.s32 %v1569, %v1575
      %vm1578 = vc.u32 %v1576, %v1572
      %v1579 = vsel %vm1578, 1, 0
      %v1580 = vadd.s32 %v1576, %v1572
      %v1581 = vadd.s32 %v1577, %v1579
      %v1582 = vadd.s32 %v1581, %v1571
      %v1583 = vadd.s32 %v1582, %v1573
      %v1584 = vand.u32 %v1561, 65535
      %v1585 = vshrl.u32 %v1561, 16
      %v1586 = vand.u32 %v1556, 65535
      %v1587 = vshrl.u32 %v1556, 16
      %v1588 = vmul.u32 %v1584, %v1586
      %v1589 = vmul.u32 %v1584, %v1587
      %v1590 = vmul.u32 %v1585, %v1586
      %v1591 = vmul.u32 %v1585, %v1587
      %v1592 = vshll.u32 %v1589, 16
      %v1593 = vshrl.u32 %v1589, 16
      %v1594 = vshll.u32 %v1590, 16
      %v1595 = vshrl.u32 %v1590, 16
      %vm1596 = vc.u32 %v1588, %v1592
      %v1597 = vsel %vm1596, 1, 0
      %v1598 = vadd.s32 %v1588, %v1592
      %v1599 = vadd.s32 %v1591, %v1597
      %vm1600 = vc.u32 %v1598, %v1594
      %v1601 = vsel %vm1600, 1, 0
      %v1602 = vadd.s32 %v1598, %v1594
      %v1603 = vadd.s32 %v1599, %v1601
      %v1604 = vadd.s32 %v1603, %v1593
      %v1605 = vadd.s32 %v1604, %v1595
      %v1606 = vmul.u32 %v1561, %v1552
      %v1607 = vadd.s32 %v1583, %v1602
      %vm1608 = vc.u32 %v1583, %v1602
      %v1609 = vadd.s32 %v1605, 1
      %v1610 = vsel %vm1608, %v1609, %v1605
      %v1611 = vadd.s32 %v1606, %v1610
      %v1612 = vadd.s32 %v1611, 536870912
      %v1613 = vshrl.u32 %v1612, 30
      %v1614 = vshll.u32 %v1613, 30
      %v1615 = vsub.s32 %v1611, %v1614
      %vm1616 = vcmp.lt.s32.totalorder %v1615, 0
      %v1617 = vsub.s32 0, %v1615
      %v1618 = vsel %vm1616, %v1617, %v1615
      %v1619 = vclz %v1618
      %v1620 = vsub.s32 %v1619, 2
      %vm1621 = vcmp.gt.s32.totalorder 0, %v1620
      %v1622 = vsel %vm1621, 0, %v1620
      %v1623 = vsub.s32 32, %v1622
      %v1624 = vshll.u32 %v1615, %v1622
      %v1625 = vshrl.u32 %v1607, %v1623
      %v1626 = vor.u32 %v1624, %v1625
      %v1627 = vsub.s32 4294967266, %v1622
      %v1628 = vadd.s32 %v1627, 127
      %v1629 = vshll.u32 %v1628, 23
      %v1630 = vor.u32 4788187, %v1629
      %v1631 = vand.u32 2147483647, %v1630
      %v1633 = vcvt.s32.f32 %v1626
      %v1634 = vmul.f32 %v1633, %v1631
      %v1635 = vxor.u32 %v1634, 2147483648
      %v1636 = vsel %vm1515, %v1635, %v1634
      %v1637 = vsub.s32 4, %v1613
      %v1638 = vsel %vm1515, %v1637, %v1613
      %v1639 = vsel %vm1514, %v202, %v1636
      %v1640 = vsel %vm1514, 0, %v1638
      %v1641 = vmul.f32 %v1639, %v1639
      %v1642 = vmul.f32 %v1641, -0.001358992
      %v1643 = vadd.f32 %v1642, 0.041655596
      %v1644 = vmul.f32 %v1641, %v1643
      %v1645 = vadd.f32 %v1644, -0.4999988
      %v1646 = vmul.f32 %v1641, %v1645
      %v1647 = vadd.f32 1.0, %v1646
      %v1648 = vmul.f32 %v1639, %v1639
      %v1649 = vmul.f32 %v1648, -0.00019511016
      %v1650 = vadd.f32 %v1649, 0.008332121
      %v1651 = vmul.f32 %v1648, %v1650
      %v1652 = vadd.f32 %v1651, -0.16666654
      %v1653 = vmul.f32 %v1648, %v1652
      %v1654 = vadd.f32 %v1653, 1.0
      %v1655 = vmul.f32 %v1654, %v1639
      %vm1656 = vweird.f32 %v202
      %v1657 = vadd.s32 %v1640, 3
      %v1658 = vand.u32 %v1657, 3
      %vm1659 = vcmp.lt.s32.totalorder %v1658, 2
      %vm1660 = vcmp.eq.s32.totalorder %v1658, 0
      %v1661 = vxor.u32 %v1655, 2147483648
      %v1662 = vsel %vm1660, %v1647, %v1661
      %vm1663 = vcmp.eq.s32.totalorder %v1658, 2
      %v1664 = vxor.u32 %v1647, 2147483648
      %v1665 = vsel %vm1663, %v1664, %v1655
      %v1666 = vsel %vm1659, %v1662, %v1665
      %v1667 = vsel %vm1656, nan, %v1666
      %v1668 = vand.u32 2147483647, %v205
      %vm1669 = vcmp.le.f32.partialorder %v1668, 0.7853982
      %vm1670 = vcmp.lt.s32.totalorder %v205, 0
      %v1671 = vand.u32 %v205, 2139095040
      %v1672 = vshrl.u32 %v1671, 23
      %v1673 = vsub.s32 %v1672, 127
      %v1674 = vand.u32 2147483647, %v205
      %v1675 = vand.u32 %v1674, 8388607
      %v1676 = vor.u32 %v1675, 8388608
      %v1677 = vsub.s32 0, %v1676
      %v1678 = vadd.s32 %v1673, 1
      %vm1679 = vcmp.gt.s32.totalorder %v1678, 0
      %v1680 = vsel %vm1679, %v1678, 0
      %v1681 = vshrl.u32 %v1680, 5
      %v1682 = vand.u32 %v1680, 31
      %v1683 = vsub.s32 32, %v1682
      %v1684 = vshrl.u32 683565275, %v1683
      %v1685 = vshll.u32 683565275, %v1682
      %v1686 = vshrl.u32 2475754826, %v1683
      %v1687 = vor.u32 %v1685, %v1686
      %v1688 = vshll.u32 2475754826, %v1682
      %v1689 = vshrl.u32 2131351028, %v1683
      %v1690 = vor.u32 %v1688, %v1689
      %v1691 = vshll.u32 2131351028, %v1682
      %v1692 = vshrl.u32 2102212464, %v1683
      %v1693 = vor.u32 %v1691, %v1692
      %v1694 = vshll.u32 2102212464, %v1682
      %v1695 = vshrl.u32 920167782, %v1683
      %v1696 = vor.u32 %v1694, %v1695
      %v1697 = vshll.u32 920167782, %v1682
      %v1698 = vshrl.u32 1326507024, %v1683
      %v1699 = vor.u32 %v1697, %v1698
      %vm1700 = vcmp.lt.s32.totalorder %v1681, 1
      %vm1701 = vcmp.lt.s32.totalorder %v1681, 2
      %vm1702 = vcmp.lt.s32.totalorder %v1681, 3
      %vm1703 = vcmp.lt.s32.totalorder %v1681, 4
      %v1704 = vsel %vm1700, %v1684, %v1687
      %v1705 = vsel %vm1703, %v1693, 2102212464
      %v1706 = vsel %vm1702, %v1690, %v1705
      %v1707 = vsel %vm1701, %v1704, %v1706
      %v1708 = vsel %vm1700, %v1687, %v1690
      %v1709 = vsel %vm1703, %v1696, 920167782
      %v1710 = vsel %vm1702, %v1693, %v1709
      %v1711 = vsel %vm1701, %v1708, %v1710
      %v1712 = vsel %vm1700, %v1690, %v1693
      %v1713 = vsel %vm1703, %v1699, 1326507024
      %v1714 = vsel %vm1702, %v1696, %v1713
      %v1715 = vsel %vm1701, %v1712, %v1714
      %v1716 = vshll.u32 %v1676, 8
      %v1717 = vand.u32 %v1716, 65535
      %v1718 = vshrl.u32 %v1716, 16
      %v1719 = vand.u32 %v1715, 65535
      %v1720 = vshrl.u32 %v1715, 16
      %v1721 = vmul.u32 %v1717, %v1719
      %v1722 = vmul.u32 %v1717, %v1720
      %v1723 = vmul.u32 %v1718, %v1719
      %v1724 = vmul.u32 %v1718, %v1720
      %v1725 = vshll.u32 %v1722, 16
      %v1726 = vshrl.u32 %v1722, 16
      %v1727 = vshll.u32 %v1723, 16
      %v1728 = vshrl.u32 %v1723, 16
      %vm1729 = vc.u32 %v1721, %v1725
      %v1730 = vsel %vm1729, 1, 0
      %v1731 = vadd.s32 %v1721, %v1725
      %v1732 = vadd.s32 %v1724, %v1730
      %vm1733 = vc.u32 %v1731, %v1727
      %v1734 = vsel %vm1733, 1, 0
      %v1735 = vadd.s32 %v1731, %v1727
      %v1736 = vadd.s32 %v1732, %v1734
      %v1737 = vadd.s32 %v1736, %v1726
      %v1738 = vadd.s32 %v1737, %v1728
      %v1739 = vand.u32 %v1716, 65535
      %v1740 = vshrl.u32 %v1716, 16
      %v1741 = vand.u32 %v1711, 65535
      %v1742 = vshrl.u32 %v1711, 16
      %v1743 = vmul.u32 %v1739, %v1741
      %v1744 = vmul.u32 %v1739, %v1742
      %v1745 = vmul.u32 %v1740, %v1741
      %v1746 = vmul.u32 %v1740, %v1742
      %v1747 = vshll.u32 %v1744, 16
      %v1748 = vshrl.u32 %v1744, 16
      %v1749 = vshll.u32 %v1745, 16
      %v1750 = vshrl.u32 %v1745, 16
      %vm1751 = vc.u32 %v1743, %v1747
      %v1752 = vsel %vm1751, 1, 0
      %v1753 = vadd.s32 %v1743, %v1747
      %v1754 = vadd.s32 %v1746, %v1752
      %vm1755 = vc.u32 %v1753, %v1749
      %v1756 = vsel %vm1755, 1, 0
      %v1757 = vadd.s32 %v1753, %v1749
      %v1758 = vadd.s32 %v1754, %v1756
      %v1759 = vadd.s32 %v1758, %v1748
      %v1760 = vadd.s32 %v1759, %v1750
      %v1761 = vmul.u32 %v1716, %v1707
      %v1762 = vadd.s32 %v1738, %v1757
      %vm1763 = vc.u32 %v1738, %v1757
      %v1764 = vadd.s32 %v1760, 1
      %v1765 = vsel %vm1763, %v1764, %v1760
      %v1766 = vadd.s32 %v1761, %v1765
      %v1767 = vadd.s32 %v1766, 536870912
      %v1768 = vshrl.u32 %v1767, 30
      %v1769 = vshll.u32 %v1768, 30
      %v1770 = vsub.s32 %v1766, %v1769
      %vm1771 = vcmp.lt.s32.totalorder %v1770, 0
      %v1772 = vsub.s32 0, %v1770
      %v1773 = vsel %vm1771, %v1772, %v1770
      %v1774 = vclz %v1773
      %v1775 = vsub.s32 %v1774, 2
      %vm1776 = vcmp.gt.s32.totalorder 0, %v1775
      %v1777 = vsel %vm1776, 0, %v1775
      %v1778 = vsub.s32 32, %v1777
      %v1779 = vshll.u32 %v1770, %v1777
      %v1780 = vshrl.u32 %v1762, %v1778
      %v1781 = vor.u32 %v1779, %v1780
      %v1782 = vsub.s32 4294967266, %v1777
      %v1783 = vadd.s32 %v1782, 127
      %v1784 = vshll.u32 %v1783, 23
      %v1785 = vor.u32 4788187, %v1784
      %v1786 = vand.u32 2147483647, %v1785
      %v1788 = vcvt.s32.f32 %v1781
      %v1789 = vmul.f32 %v1788, %v1786
      %v1790 = vxor.u32 %v1789, 2147483648
      %v1791 = vsel %vm1670, %v1790, %v1789
      %v1792 = vsub.s32 4, %v1768
      %v1793 = vsel %vm1670, %v1792, %v1768
      %v1794 = vsel %vm1669, %v205, %v1791
      %v1795 = vsel %vm1669, 0, %v1793
      %v1796 = vmul.f32 %v1794, %v1794
      %v1797 = vmul.f32 %v1796, -0.001358992
      %v1798 = vadd.f32 %v1797, 0.041655596
      %v1799 = vmul.f32 %v1796, %v1798
      %v1800 = vadd.f32 %v1799, -0.4999988
      %v1801 = vmul.f32 %v1796, %v1800
      %v1802 = vadd.f32 1.0, %v1801
      %v1803 = vmul.f32 %v1794, %v1794
      %v1804 = vmul.f32 %v1803, -0.00019511016
      %v1805 = vadd.f32 %v1804, 0.008332121
      %v1806 = vmul.f32 %v1803, %v1805
      %v1807 = vadd.f32 %v1806, -0.16666654
      %v1808 = vmul.f32 %v1803, %v1807
      %v1809 = vadd.f32 %v1808, 1.0
      %v1810 = vmul.f32 %v1809, %v1794
      %vm1811 = vweird.f32 %v205
      %v1812 = vadd.s32 %v1795, 3
      %v1813 = vand.u32 %v1812, 3
      %vm1814 = vcmp.lt.s32.totalorder %v1813, 2
      %vm1815 = vcmp.eq.s32.totalorder %v1813, 0
      %v1816 = vxor.u32 %v1810, 2147483648
      %v1817 = vsel %vm1815, %v1802, %v1816
      %vm1818 = vcmp.eq.s32.totalorder %v1813, 2
      %v1819 = vxor.u32 %v1802, 2147483648
      %v1820 = vsel %vm1818, %v1819, %v1810
      %v1821 = vsel %vm1814, %v1817, %v1820
      %v1822 = vsel %vm1811, nan, %v1821
      %v1823 = vand.u32 2147483647, %v208
      %vm1824 = vcmp.le.f32.partialorder %v1823, 0.7853982
      %vm1825 = vcmp.lt.s32.totalorder %v208, 0
      %v1826 = vand.u32 %v208, 2139095040
      %v1827 = vshrl.u32 %v1826, 23
      %v1828 = vsub.s32 %v1827, 127
      %v1829 = vand.u32 2147483647, %v208
      %v1830 = vand.u32 %v1829, 8388607
      %v1831 = vor.u32 %v1830, 8388608
      %v1832 = vsub.s32 0, %v1831
      %v1833 = vadd.s32 %v1828, 1
      %vm1834 = vcmp.gt.s32.totalorder %v1833, 0
      %v1835 = vsel %vm1834, %v1833, 0
      %v1836 = vshrl.u32 %v1835, 5
      %v1837 = vand.u32 %v1835, 31
      %v1838 = vsub.s32 32, %v1837
      %v1839 = vshrl.u32 683565275, %v1838
      %v1840 = vshll.u32 683565275, %v1837
      %v1841 = vshrl.u32 2475754826, %v1838
      %v1842 = vor.u32 %v1840, %v1841
      %v1843 = vshll.u32 2475754826, %v1837
      %v1844 = vshrl.u32 2131351028, %v1838
      %v1845 = vor.u32 %v1843, %v1844
      %v1846 = vshll.u32 2131351028, %v1837
      %v1847 = vshrl.u32 2102212464, %v1838
      %v1848 = vor.u32 %v1846, %v1847
      %v1849 = vshll.u32 2102212464, %v1837
      %v1850 = vshrl.u32 920167782, %v1838
      %v1851 = vor.u32 %v1849, %v1850
      %v1852 = vshll.u32 920167782, %v1837
      %v1853 = vshrl.u32 1326507024, %v1838
      %v1854 = vor.u32 %v1852, %v1853
      %vm1855 = vcmp.lt.s32.totalorder %v1836, 1
      %vm1856 = vcmp.lt.s32.totalorder %v1836, 2
      %vm1857 = vcmp.lt.s32.totalorder %v1836, 3
      %vm1858 = vcmp.lt.s32.totalorder %v1836, 4
      %v1859 = vsel %vm1855, %v1839, %v1842
      %v1860 = vsel %vm1858, %v1848, 2102212464
      %v1861 = vsel %vm1857, %v1845, %v1860
      %v1862 = vsel %vm1856, %v1859, %v1861
      %v1863 = vsel %vm1855, %v1842, %v1845
      %v1864 = vsel %vm1858, %v1851, 920167782
      %v1865 = vsel %vm1857, %v1848, %v1864
      %v1866 = vsel %vm1856, %v1863, %v1865
      %v1867 = vsel %vm1855, %v1845, %v1848
      %v1868 = vsel %vm1858, %v1854, 1326507024
      %v1869 = vsel %vm1857, %v1851, %v1868
      %v1870 = vsel %vm1856, %v1867, %v1869
      %v1871 = vshll.u32 %v1831, 8
      %v1872 = vand.u32 %v1871, 65535
      %v1873 = vshrl.u32 %v1871, 16
      %v1874 = vand.u32 %v1870, 65535
      %v1875 = vshrl.u32 %v1870, 16
      %v1876 = vmul.u32 %v1872, %v1874
      %v1877 = vmul.u32 %v1872, %v1875
      %v1878 = vmul.u32 %v1873, %v1874
      %v1879 = vmul.u32 %v1873, %v1875
      %v1880 = vshll.u32 %v1877, 16
      %v1881 = vshrl.u32 %v1877, 16
      %v1882 = vshll.u32 %v1878, 16
      %v1883 = vshrl.u32 %v1878, 16
      %vm1884 = vc.u32 %v1876, %v1880
      %v1885 = vsel %vm1884, 1, 0
      %v1886 = vadd.s32 %v1876, %v1880
      %v1887 = vadd.s32 %v1879, %v1885
      %vm1888 = vc.u32 %v1886, %v1882
      %v1889 = vsel %vm1888, 1, 0
      %v1890 = vadd.s32 %v1886, %v1882
      %v1891 = vadd.s32 %v1887, %v1889
      %v1892 = vadd.s32 %v1891, %v1881
      %v1893 = vadd.s32 %v1892, %v1883
      %v1894 = vand.u32 %v1871, 65535
      %v1895 = vshrl.u32 %v1871, 16
      %v1896 = vand.u32 %v1866, 65535
      %v1897 = vshrl.u32 %v1866, 16
      %v1898 = vmul.u32 %v1894, %v1896
      %v1899 = vmul.u32 %v1894, %v1897
      %v1900 = vmul.u32 %v1895, %v1896
      %v1901 = vmul.u32 %v1895, %v1897
      %v1902 = vshll.u32 %v1899, 16
      %v1903 = vshrl.u32 %v1899, 16
      %v1904 = vshll.u32 %v1900, 16
      %v1905 = vshrl.u32 %v1900, 16
      %vm1906 = vc.u32 %v1898, %v1902
      %v1907 = vsel %vm1906, 1, 0
      %v1908 = vadd.s32 %v1898, %v1902
      %v1909 = vadd.s32 %v1901, %v1907
      %vm1910 = vc.u32 %v1908, %v1904
      %v1911 = vsel %vm1910, 1, 0
      %v1912 = vadd.s32 %v1908, %v1904
      %v1913 = vadd.s32 %v1909, %v1911
      %v1914 = vadd.s32 %v1913, %v1903
      %v1915 = vadd.s32 %v1914, %v1905
      %v1916 = vmul.u32 %v1871, %v1862
      %v1917 = vadd.s32 %v1893, %v1912
      %vm1918 = vc.u32 %v1893, %v1912
      %v1919 = vadd.s32 %v1915, 1
      %v1920 = vsel %vm1918, %v1919, %v1915
      %v1921 = vadd.s32 %v1916, %v1920
      %v1922 = vadd.s32 %v1921, 536870912
      %v1923 = vshrl.u32 %v1922, 30
      %v1924 = vshll.u32 %v1923, 30
      %v1925 = vsub.s32 %v1921, %v1924
      %vm1926 = vcmp.lt.s32.totalorder %v1925, 0
      %v1927 = vsub.s32 0, %v1925
      %v1928 = vsel %vm1926, %v1927, %v1925
      %v1929 = vclz %v1928
      %v1930 = vsub.s32 %v1929, 2
      %vm1931 = vcmp.gt.s32.totalorder 0, %v1930
      %v1932 = vsel %vm1931, 0, %v1930
      %v1933 = vsub.s32 32, %v1932
      %v1934 = vshll.u32 %v1925, %v1932
      %v1935 = vshrl.u32 %v1917, %v1933
      %v1936 = vor.u32 %v1934, %v1935
      %v1937 = vsub.s32 4294967266, %v1932
      %v1938 = vadd.s32 %v1937, 127
      %v1939 = vshll.u32 %v1938, 23
      %v1940 = vor.u32 4788187, %v1939
      %v1941 = vand.u32 2147483647, %v1940
      %v1943 = vcvt.s32.f32 %v1936
      %v1944 = vmul.f32 %v1943, %v1941
      %v1945 = vxor.u32 %v1944, 2147483648
      %v1946 = vsel %vm1825, %v1945, %v1944
      %v1947 = vsub.s32 4, %v1923
      %v1948 = vsel %vm1825, %v1947, %v1923
      %v1949 = vsel %vm1824, %v208, %v1946
      %v1950 = vsel %vm1824, 0, %v1948
      %v1951 = vmul.f32 %v1949, %v1949
      %v1952 = vmul.f32 %v1951, -0.001358992
      %v1953 = vadd.f32 %v1952, 0.041655596
      %v1954 = vmul.f32 %v1951, %v1953
      %v1955 = vadd.f32 %v1954, -0.4999988
      %v1956 = vmul.f32 %v1951, %v1955
      %v1957 = vadd.f32 1.0, %v1956
      %v1958 = vmul.f32 %v1949, %v1949
      %v1959 = vmul.f32 %v1958, -0.00019511016
      %v1960 = vadd.f32 %v1959, 0.008332121
      %v1961 = vmul.f32 %v1958, %v1960
      %v1962 = vadd.f32 %v1961, -0.16666654
      %v1963 = vmul.f32 %v1958, %v1962
      %v1964 = vadd.f32 %v1963, 1.0
      %v1965 = vmul.f32 %v1964, %v1949
      %vm1966 = vweird.f32 %v208
      %v1967 = vadd.s32 %v1950, 3
      %v1968 = vand.u32 %v1967, 3
      %vm1969 = vcmp.lt.s32.totalorder %v1968, 2
      %vm1970 = vcmp.eq.s32.totalorder %v1968, 0
      %v1971 = vxor.u32 %v1965, 2147483648
      %v1972 = vsel %vm1970, %v1957, %v1971
      %vm1973 = vcmp.eq.s32.totalorder %v1968, 2
      %v1974 = vxor.u32 %v1957, 2147483648
      %v1975 = vsel %vm1973, %v1974, %v1965
      %v1976 = vsel %vm1969, %v1972, %v1975
      %v1977 = vsel %vm1966, nan, %v1976
      %v1978 = vand.u32 2147483647, %v211
      %vm1979 = vcmp.le.f32.partialorder %v1978, 0.7853982
      %vm1980 = vcmp.lt.s32.totalorder %v211, 0
      %v1981 = vand.u32 %v211, 2139095040
      %v1982 = vshrl.u32 %v1981, 23
      %v1983 = vsub.s32 %v1982, 127
      %v1984 = vand.u32 2147483647, %v211
      %v1985 = vand.u32 %v1984, 8388607
      %v1986 = vor.u32 %v1985, 8388608
      %v1987 = vsub.s32 0, %v1986
      %v1988 = vadd.s32 %v1983, 1
      %vm1989 = vcmp.gt.s32.totalorder %v1988, 0
      %v1990 = vsel %vm1989, %v1988, 0
      %v1991 = vshrl.u32 %v1990, 5
      %v1992 = vand.u32 %v1990, 31
      %v1993 = vsub.s32 32, %v1992
      %v1994 = vshrl.u32 683565275, %v1993
      %v1995 = vshll.u32 683565275, %v1992
      %v1996 = vshrl.u32 2475754826, %v1993
      %v1997 = vor.u32 %v1995, %v1996
      %v1998 = vshll.u32 2475754826, %v1992
      %v1999 = vshrl.u32 2131351028, %v1993
      %v2000 = vor.u32 %v1998, %v1999
      %v2001 = vshll.u32 2131351028, %v1992
      %v2002 = vshrl.u32 2102212464, %v1993
      %v2003 = vor.u32 %v2001, %v2002
      %v2004 = vshll.u32 2102212464, %v1992
      %v2005 = vshrl.u32 920167782, %v1993
      %v2006 = vor.u32 %v2004, %v2005
      %v2007 = vshll.u32 920167782, %v1992
      %v2008 = vshrl.u32 1326507024, %v1993
      %v2009 = vor.u32 %v2007, %v2008
      %vm2010 = vcmp.lt.s32.totalorder %v1991, 1
      %vm2011 = vcmp.lt.s32.totalorder %v1991, 2
      %vm2012 = vcmp.lt.s32.totalorder %v1991, 3
      %vm2013 = vcmp.lt.s32.totalorder %v1991, 4
      %v2014 = vsel %vm2010, %v1994, %v1997
      %v2015 = vsel %vm2013, %v2003, 2102212464
      %v2016 = vsel %vm2012, %v2000, %v2015
      %v2017 = vsel %vm2011, %v2014, %v2016
      %v2018 = vsel %vm2010, %v1997, %v2000
      %v2019 = vsel %vm2013, %v2006, 920167782
      %v2020 = vsel %vm2012, %v2003, %v2019
      %v2021 = vsel %vm2011, %v2018, %v2020
      %v2022 = vsel %vm2010, %v2000, %v2003
      %v2023 = vsel %vm2013, %v2009, 1326507024
      %v2024 = vsel %vm2012, %v2006, %v2023
      %v2025 = vsel %vm2011, %v2022, %v2024
      %v2026 = vshll.u32 %v1986, 8
      %v2027 = vand.u32 %v2026, 65535
      %v2028 = vshrl.u32 %v2026, 16
      %v2029 = vand.u32 %v2025, 65535
      %v2030 = vshrl.u32 %v2025, 16
      %v2031 = vmul.u32 %v2027, %v2029
      %v2032 = vmul.u32 %v2027, %v2030
      %v2033 = vmul.u32 %v2028, %v2029
      %v2034 = vmul.u32 %v2028, %v2030
      %v2035 = vshll.u32 %v2032, 16
      %v2036 = vshrl.u32 %v2032, 16
      %v2037 = vshll.u32 %v2033, 16
      %v2038 = vshrl.u32 %v2033, 16
      %vm2039 = vc.u32 %v2031, %v2035
      %v2040 = vsel %vm2039, 1, 0
      %v2041 = vadd.s32 %v2031, %v2035
      %v2042 = vadd.s32 %v2034, %v2040
      %vm2043 = vc.u32 %v2041, %v2037
      %v2044 = vsel %vm2043, 1, 0
      %v2045 = vadd.s32 %v2041, %v2037
      %v2046 = vadd.s32 %v2042, %v2044
      %v2047 = vadd.s32 %v2046, %v2036
      %v2048 = vadd.s32 %v2047, %v2038
      %v2049 = vand.u32 %v2026, 65535
      %v2050 = vshrl.u32 %v2026, 16
      %v2051 = vand.u32 %v2021, 65535
      %v2052 = vshrl.u32 %v2021, 16
      %v2053 = vmul.u32 %v2049, %v2051
      %v2054 = vmul.u32 %v2049, %v2052
      %v2055 = vmul.u32 %v2050, %v2051
      %v2056 = vmul.u32 %v2050, %v2052
      %v2057 = vshll.u32 %v2054, 16
      %v2058 = vshrl.u32 %v2054, 16
      %v2059 = vshll.u32 %v2055, 16
      %v2060 = vshrl.u32 %v2055, 16
      %vm2061 = vc.u32 %v2053, %v2057
      %v2062 = vsel %vm2061, 1, 0
      %v2063 = vadd.s32 %v2053, %v2057
      %v2064 = vadd.s32 %v2056, %v2062
      %vm2065 = vc.u32 %v2063, %v2059
      %v2066 = vsel %vm2065, 1, 0
      %v2067 = vadd.s32 %v2063, %v2059
      %v2068 = vadd.s32 %v2064, %v2066
      %v2069 = vadd.s32 %v2068, %v2058
      %v2070 = vadd.s32 %v2069, %v2060
      %v2071 = vmul.u32 %v2026, %v2017
      %v2072 = vadd.s32 %v2048, %v2067
      %vm2073 = vc.u32 %v2048, %v2067
      %v2074 = vadd.s32 %v2070, 1
      %v2075 = vsel %vm2073, %v2074, %v2070
      %v2076 = vadd.s32 %v2071, %v2075
      %v2077 = vadd.s32 %v2076, 536870912
      %v2078 = vshrl.u32 %v2077, 30
      %v2079 = vshll.u32 %v2078, 30
      %v2080 = vsub.s32 %v2076, %v2079
      %vm2081 = vcmp.lt.s32.totalorder %v2080, 0
      %v2082 = vsub.s32 0, %v2080
      %v2083 = vsel %vm2081, %v2082, %v2080
      %v2084 = vclz %v2083
      %v2085 = vsub.s32 %v2084, 2
      %vm2086 = vcmp.gt.s32.totalorder 0, %v2085
      %v2087 = vsel %vm2086, 0, %v2085
      %v2088 = vsub.s32 32, %v2087
      %v2089 = vshll.u32 %v2080, %v2087
      %v2090 = vshrl.u32 %v2072, %v2088
      %v2091 = vor.u32 %v2089, %v2090
      %v2092 = vsub.s32 4294967266, %v2087
      %v2093 = vadd.s32 %v2092, 127
      %v2094 = vshll.u32 %v2093, 23
      %v2095 = vor.u32 4788187, %v2094
      %v2096 = vand.u32 2147483647, %v2095
      %v2098 = vcvt.s32.f32 %v2091
      %v2099 = vmul.f32 %v2098, %v2096
      %v2100 = vxor.u32 %v2099, 2147483648
      %v2101 = vsel %vm1980, %v2100, %v2099
      %v2102 = vsub.s32 4, %v2078
      %v2103 = vsel %vm1980, %v2102, %v2078
      %v2104 = vsel %vm1979, %v211, %v2101
      %v2105 = vsel %vm1979, 0, %v2103
      %v2106 = vmul.f32 %v2104, %v2104
      %v2107 = vmul.f32 %v2106, -0.001358992
      %v2108 = vadd.f32 %v2107, 0.041655596
      %v2109 = vmul.f32 %v2106, %v2108
      %v2110 = vadd.f32 %v2109, -0.4999988
      %v2111 = vmul.f32 %v2106, %v2110
      %v2112 = vadd.f32 1.0, %v2111
      %v2113 = vmul.f32 %v2104, %v2104
      %v2114 = vmul.f32 %v2113, -0.00019511016
      %v2115 = vadd.f32 %v2114, 0.008332121
      %v2116 = vmul.f32 %v2113, %v2115
      %v2117 = vadd.f32 %v2116, -0.16666654
      %v2118 = vmul.f32 %v2113, %v2117
      %v2119 = vadd.f32 %v2118, 1.0
      %v2120 = vmul.f32 %v2119, %v2104
      %vm2121 = vweird.f32 %v211
      %v2122 = vadd.s32 %v2105, 3
      %v2123 = vand.u32 %v2122, 3
      %vm2124 = vcmp.lt.s32.totalorder %v2123, 2
      %vm2125 = vcmp.eq.s32.totalorder %v2123, 0
      %v2126 = vxor.u32 %v2120, 2147483648
      %v2127 = vsel %vm2125, %v2112, %v2126
      %vm2128 = vcmp.eq.s32.totalorder %v2123, 2
      %v2129 = vxor.u32 %v2112, 2147483648
      %v2130 = vsel %vm2128, %v2129, %v2120
      %v2131 = vsel %vm2124, %v2127, %v2130
      %v2132 = vsel %vm2121, nan, %v2131
      %v2133 = vand.u32 2147483647, %v214
      %vm2134 = vcmp.le.f32.partialorder %v2133, 0.7853982
      %vm2135 = vcmp.lt.s32.totalorder %v214, 0
      %v2136 = vand.u32 %v214, 2139095040
      %v2137 = vshrl.u32 %v2136, 23
      %v2138 = vsub.s32 %v2137, 127
      %v2139 = vand.u32 2147483647, %v214
      %v2140 = vand.u32 %v2139, 8388607
      %v2141 = vor.u32 %v2140, 8388608
      %v2142 = vsub.s32 0, %v2141
      %v2143 = vadd.s32 %v2138, 1
      %vm2144 = vcmp.gt.s32.totalorder %v2143, 0
      %v2145 = vsel %vm2144, %v2143, 0
      %v2146 = vshrl.u32 %v2145, 5
      %v2147 = vand.u32 %v2145, 31
      %v2148 = vsub.s32 32, %v2147
      %v2149 = vshrl.u32 683565275, %v2148
      %v2150 = vshll.u32 683565275, %v2147
      %v2151 = vshrl.u32 2475754826, %v2148
      %v2152 = vor.u32 %v2150, %v2151
      %v2153 = vshll.u32 2475754826, %v2147
      %v2154 = vshrl.u32 2131351028, %v2148
      %v2155 = vor.u32 %v2153, %v2154
      %v2156 = vshll.u32 2131351028, %v2147
      %v2157 = vshrl.u32 2102212464, %v2148
      %v2158 = vor.u32 %v2156, %v2157
      %v2159 = vshll.u32 2102212464, %v2147
      %v2160 = vshrl.u32 920167782, %v2148
      %v2161 = vor.u32 %v2159, %v2160
      %v2162 = vshll.u32 920167782, %v2147
      %v2163 = vshrl.u32 1326507024, %v2148
      %v2164 = vor.u32 %v2162, %v2163
      %vm2165 = vcmp.lt.s32.totalorder %v2146, 1
      %vm2166 = vcmp.lt.s32.totalorder %v2146, 2
      %vm2167 = vcmp.lt.s32.totalorder %v2146, 3
      %vm2168 = vcmp.lt.s32.totalorder %v2146, 4
      %v2169 = vsel %vm2165, %v2149, %v2152
      %v2170 = vsel %vm2168, %v2158, 2102212464
      %v2171 = vsel %vm2167, %v2155, %v2170
      %v2172 = vsel %vm2166, %v2169, %v2171
      %v2173 = vsel %vm2165, %v2152, %v2155
      %v2174 = vsel %vm2168, %v2161, 920167782
      %v2175 = vsel %vm2167, %v2158, %v2174
      %v2176 = vsel %vm2166, %v2173, %v2175
      %v2177 = vsel %vm2165, %v2155, %v2158
      %v2178 = vsel %vm2168, %v2164, 1326507024
      %v2179 = vsel %vm2167, %v2161, %v2178
      %v2180 = vsel %vm2166, %v2177, %v2179
      %v2181 = vshll.u32 %v2141, 8
      %v2182 = vand.u32 %v2181, 65535
      %v2183 = vshrl.u32 %v2181, 16
      %v2184 = vand.u32 %v2180, 65535
      %v2185 = vshrl.u32 %v2180, 16
      %v2186 = vmul.u32 %v2182, %v2184
      %v2187 = vmul.u32 %v2182, %v2185
      %v2188 = vmul.u32 %v2183, %v2184
      %v2189 = vmul.u32 %v2183, %v2185
      %v2190 = vshll.u32 %v2187, 16
      %v2191 = vshrl.u32 %v2187, 16
      %v2192 = vshll.u32 %v2188, 16
      %v2193 = vshrl.u32 %v2188, 16
      %vm2194 = vc.u32 %v2186, %v2190
      %v2195 = vsel %vm2194, 1, 0
      %v2196 = vadd.s32 %v2186, %v2190
      %v2197 = vadd.s32 %v2189, %v2195
      %vm2198 = vc.u32 %v2196, %v2192
      %v2199 = vsel %vm2198, 1, 0
      %v2200 = vadd.s32 %v2196, %v2192
      %v2201 = vadd.s32 %v2197, %v2199
      %v2202 = vadd.s32 %v2201, %v2191
      %v2203 = vadd.s32 %v2202, %v2193
      %v2204 = vand.u32 %v2181, 65535
      %v2205 = vshrl.u32 %v2181, 16
      %v2206 = vand.u32 %v2176, 65535
      %v2207 = vshrl.u32 %v2176, 16
      %v2208 = vmul.u32 %v2204, %v2206
      %v2209 = vmul.u32 %v2204, %v2207
      %v2210 = vmul.u32 %v2205, %v2206
      %v2211 = vmul.u32 %v2205, %v2207
      %v2212 = vshll.u32 %v2209, 16
      %v2213 = vshrl.u32 %v2209, 16
      %v2214 = vshll.u32 %v2210, 16
      %v2215 = vshrl.u32 %v2210, 16
      %vm2216 = vc.u32 %v2208, %v2212
      %v2217 = vsel %vm2216, 1, 0
      %v2218 = vadd.s32 %v2208, %v2212
      %v2219 = vadd.s32 %v2211, %v2217
      %vm2220 = vc.u32 %v2218, %v2214
      %v2221 = vsel %vm2220, 1, 0
      %v2222 = vadd.s32 %v2218, %v2214
      %v2223 = vadd.s32 %v2219, %v2221
      %v2224 = vadd.s32 %v2223, %v2213
      %v2225 = vadd.s32 %v2224, %v2215
      %v2226 = vmul.u32 %v2181, %v2172
      %v2227 = vadd.s32 %v2203, %v2222
      %vm2228 = vc.u32 %v2203, %v2222
      %v2229 = vadd.s32 %v2225, 1
      %v2230 = vsel %vm2228, %v2229, %v2225
      %v2231 = vadd.s32 %v2226, %v2230
      %v2232 = vadd.s32 %v2231, 536870912
      %v2233 = vshrl.u32 %v2232, 30
      %v2234 = vshll.u32 %v2233, 30
      %v2235 = vsub.s32 %v2231, %v2234
      %vm2236 = vcmp.lt.s32.totalorder %v2235, 0
      %v2237 = vsub.s32 0, %v2235
      %v2238 = vsel %vm2236, %v2237, %v2235
      %v2239 = vclz %v2238
      %v2240 = vsub.s32 %v2239, 2
      %vm2241 = vcmp.gt.s32.totalorder 0, %v2240
      %v2242 = vsel %vm2241, 0, %v2240
      %v2243 = vsub.s32 32, %v2242
      %v2244 = vshll.u32 %v2235, %v2242
      %v2245 = vshrl.u32 %v2227, %v2243
      %v2246 = vor.u32 %v2244, %v2245
      %v2247 = vsub.s32 4294967266, %v2242
      %v2248 = vadd.s32 %v2247, 127
      %v2249 = vshll.u32 %v2248, 23
      %v2250 = vor.u32 4788187, %v2249
      %v2251 = vand.u32 2147483647, %v2250
      %v2253 = vcvt.s32.f32 %v2246
      %v2254 = vmul.f32 %v2253, %v2251
      %v2255 = vxor.u32 %v2254, 2147483648
      %v2256 = vsel %vm2135, %v2255, %v2254
      %v2257 = vsub.s32 4, %v2233
      %v2258 = vsel %vm2135, %v2257, %v2233
      %v2259 = vsel %vm2134, %v214, %v2256
      %v2260 = vsel %vm2134, 0, %v2258
      %v2261 = vmul.f32 %v2259, %v2259
      %v2262 = vmul.f32 %v2261, -0.001358992
      %v2263 = vadd.f32 %v2262, 0.041655596
      %v2264 = vmul.f32 %v2261, %v2263
      %v2265 = vadd.f32 %v2264, -0.4999988
      %v2266 = vmul.f32 %v2261, %v2265
      %v2267 = vadd.f32 1.0, %v2266
      %v2268 = vmul.f32 %v2259, %v2259
      %v2269 = vmul.f32 %v2268, -0.00019511016
      %v2270 = vadd.f32 %v2269, 0.008332121
      %v2271 = vmul.f32 %v2268, %v2270
      %v2272 = vadd.f32 %v2271, -0.16666654
      %v2273 = vmul.f32 %v2268, %v2272
      %v2274 = vadd.f32 %v2273, 1.0
      %v2275 = vmul.f32 %v2274, %v2259
      %vm2276 = vweird.f32 %v214
      %v2277 = vadd.s32 %v2260, 3
      %v2278 = vand.u32 %v2277, 3
      %vm2279 = vcmp.lt.s32.totalorder %v2278, 2
      %vm2280 = vcmp.eq.s32.totalorder %v2278, 0
      %v2281 = vxor.u32 %v2275, 2147483648
      %v2282 = vsel %vm2280, %v2267, %v2281
      %vm2283 = vcmp.eq.s32.totalorder %v2278, 2
      %v2284 = vxor.u32 %v2267, 2147483648
      %v2285 = vsel %vm2283, %v2284, %v2275
      %v2286 = vsel %vm2279, %v2282, %v2285
      %v2287 = vsel %vm2276, nan, %v2286
      %v2288 = vand.u32 2147483647, %v217
      %vm2289 = vcmp.le.f32.partialorder %v2288, 0.7853982
      %vm2290 = vcmp.lt.s32.totalorder %v217, 0
      %v2291 = vand.u32 %v217, 2139095040
      %v2292 = vshrl.u32 %v2291, 23
      %v2293 = vsub.s32 %v2292, 127
      %v2294 = vand.u32 2147483647, %v217
      %v2295 = vand.u32 %v2294, 8388607
      %v2296 = vor.u32 %v2295, 8388608
      %v2297 = vsub.s32 0, %v2296
      %v2298 = vadd.s32 %v2293, 1
      %vm2299 = vcmp.gt.s32.totalorder %v2298, 0
      %v2300 = vsel %vm2299, %v2298, 0
      %v2301 = vshrl.u32 %v2300, 5
      %v2302 = vand.u32 %v2300, 31
      %v2303 = vsub.s32 32, %v2302
      %v2304 = vshrl.u32 683565275, %v2303
      %v2305 = vshll.u32 683565275, %v2302
      %v2306 = vshrl.u32 2475754826, %v2303
      %v2307 = vor.u32 %v2305, %v2306
      %v2308 = vshll.u32 2475754826, %v2302
      %v2309 = vshrl.u32 2131351028, %v2303
      %v2310 = vor.u32 %v2308, %v2309
      %v2311 = vshll.u32 2131351028, %v2302
      %v2312 = vshrl.u32 2102212464, %v2303
      %v2313 = vor.u32 %v2311, %v2312
      %v2314 = vshll.u32 2102212464, %v2302
      %v2315 = vshrl.u32 920167782, %v2303
      %v2316 = vor.u32 %v2314, %v2315
      %v2317 = vshll.u32 920167782, %v2302
      %v2318 = vshrl.u32 1326507024, %v2303
      %v2319 = vor.u32 %v2317, %v2318
      %vm2320 = vcmp.lt.s32.totalorder %v2301, 1
      %vm2321 = vcmp.lt.s32.totalorder %v2301, 2
      %vm2322 = vcmp.lt.s32.totalorder %v2301, 3
      %vm2323 = vcmp.lt.s32.totalorder %v2301, 4
      %v2324 = vsel %vm2320, %v2304, %v2307
      %v2325 = vsel %vm2323, %v2313, 2102212464
      %v2326 = vsel %vm2322, %v2310, %v2325
      %v2327 = vsel %vm2321, %v2324, %v2326
      %v2328 = vsel %vm2320, %v2307, %v2310
      %v2329 = vsel %vm2323, %v2316, 920167782
      %v2330 = vsel %vm2322, %v2313, %v2329
      %v2331 = vsel %vm2321, %v2328, %v2330
      %v2332 = vsel %vm2320, %v2310, %v2313
      %v2333 = vsel %vm2323, %v2319, 1326507024
      %v2334 = vsel %vm2322, %v2316, %v2333
      %v2335 = vsel %vm2321, %v2332, %v2334
      %v2336 = vshll.u32 %v2296, 8
      %v2337 = vand.u32 %v2336, 65535
      %v2338 = vshrl.u32 %v2336, 16
      %v2339 = vand.u32 %v2335, 65535
      %v2340 = vshrl.u32 %v2335, 16
      %v2341 = vmul.u32 %v2337, %v2339
      %v2342 = vmul.u32 %v2337, %v2340
      %v2343 = vmul.u32 %v2338, %v2339
      %v2344 = vmul.u32 %v2338, %v2340
      %v2345 = vshll.u32 %v2342, 16
      %v2346 = vshrl.u32 %v2342, 16
      %v2347 = vshll.u32 %v2343, 16
      %v2348 = vshrl.u32 %v2343, 16
      %vm2349 = vc.u32 %v2341, %v2345
      %v2350 = vsel %vm2349, 1, 0
      %v2351 = vadd.s32 %v2341, %v2345
      %v2352 = vadd.s32 %v2344, %v2350
      %vm2353 = vc.u32 %v2351, %v2347
      %v2354 = vsel %vm2353, 1, 0
      %v2355 = vadd.s32 %v2351, %v2347
      %v2356 = vadd.s32 %v2352, %v2354
      %v2357 = vadd.s32 %v2356, %v2346
      %v2358 = vadd.s32 %v2357, %v2348
      %v2359 = vand.u32 %v2336, 65535
      %v2360 = vshrl.u32 %v2336, 16
      %v2361 = vand.u32 %v2331, 65535
      %v2362 = vshrl.u32 %v2331, 16
      %v2363 = vmul.u32 %v2359, %v2361
      %v2364 = vmul.u32 %v2359, %v2362
      %v2365 = vmul.u32 %v2360, %v2361
      %v2366 = vmul.u32 %v2360, %v2362
      %v2367 = vshll.u32 %v2364, 16
      %v2368 = vshrl.u32 %v2364, 16
      %v2369 = vshll.u32 %v2365, 16
      %v2370 = vshrl.u32 %v2365, 16
      %vm2371 = vc.u32 %v2363, %v2367
      %v2372 = vsel %vm2371, 1, 0
      %v2373 = vadd.s32 %v2363, %v2367
      %v2374 = vadd.s32 %v2366, %v2372
      %vm2375 = vc.u32 %v2373, %v2369
      %v2376 = vsel %vm2375, 1, 0
      %v2377 = vadd.s32 %v2373, %v2369
      %v2378 = vadd.s32 %v2374, %v2376
      %v2379 = vadd.s32 %v2378, %v2368
      %v2380 = vadd.s32 %v2379, %v2370
      %v2381 = vmul.u32 %v2336, %v2327
      %v2382 = vadd.s32 %v2358, %v2377
      %vm2383 = vc.u32 %v2358, %v2377
      %v2384 = vadd.s32 %v2380, 1
      %v2385 = vsel %vm2383, %v2384, %v2380
      %v2386 = vadd.s32 %v2381, %v2385
      %v2387 = vadd.s32 %v2386, 536870912
      %v2388 = vshrl.u32 %v2387, 30
      %v2389 = vshll.u32 %v2388, 30
      %v2390 = vsub.s32 %v2386, %v2389
      %vm2391 = vcmp.lt.s32.totalorder %v2390, 0
      %v2392 = vsub.s32 0, %v2390
      %v2393 = vsel %vm2391, %v2392, %v2390
      %v2394 = vclz %v2393
      %v2395 = vsub.s32 %v2394, 2
      %vm2396 = vcmp.gt.s32.totalorder 0, %v2395
      %v2397 = vsel %vm2396, 0, %v2395
      %v2398 = vsub.s32 32, %v2397
      %v2399 = vshll.u32 %v2390, %v2397
      %v2400 = vshrl.u32 %v2382, %v2398
      %v2401 = vor.u32 %v2399, %v2400
      %v2402 = vsub.s32 4294967266, %v2397
      %v2403 = vadd.s32 %v2402, 127
      %v2404 = vshll.u32 %v2403, 23
      %v2405 = vor.u32 4788187, %v2404
      %v2406 = vand.u32 2147483647, %v2405
      %v2408 = vcvt.s32.f32 %v2401
      %v2409 = vmul.f32 %v2408, %v2406
      %v2410 = vxor.u32 %v2409, 2147483648
      %v2411 = vsel %vm2290, %v2410, %v2409
      %v2412 = vsub.s32 4, %v2388
      %v2413 = vsel %vm2290, %v2412, %v2388
      %v2414 = vsel %vm2289, %v217, %v2411
      %v2415 = vsel %vm2289, 0, %v2413
      %v2416 = vmul.f32 %v2414, %v2414
      %v2417 = vmul.f32 %v2416, -0.001358992
      %v2418 = vadd.f32 %v2417, 0.041655596
      %v2419 = vmul.f32 %v2416, %v2418
      %v2420 = vadd.f32 %v2419, -0.4999988
      %v2421 = vmul.f32 %v2416, %v2420
      %v2422 = vadd.f32 1.0, %v2421
      %v2423 = vmul.f32 %v2414, %v2414
      %v2424 = vmul.f32 %v2423, -0.00019511016
      %v2425 = vadd.f32 %v2424, 0.008332121
      %v2426 = vmul.f32 %v2423, %v2425
      %v2427 = vadd.f32 %v2426, -0.16666654
      %v2428 = vmul.f32 %v2423, %v2427
      %v2429 = vadd.f32 %v2428, 1.0
      %v2430 = vmul.f32 %v2429, %v2414
      %vm2431 = vweird.f32 %v217
      %v2432 = vadd.s32 %v2415, 3
      %v2433 = vand.u32 %v2432, 3
      %vm2434 = vcmp.lt.s32.totalorder %v2433, 2
      %vm2435 = vcmp.eq.s32.totalorder %v2433, 0
      %v2436 = vxor.u32 %v2430, 2147483648
      %v2437 = vsel %vm2435, %v2422, %v2436
      %vm2438 = vcmp.eq.s32.totalorder %v2433, 2
      %v2439 = vxor.u32 %v2422, 2147483648
      %v2440 = vsel %vm2438, %v2439, %v2430
      %v2441 = vsel %vm2434, %v2437, %v2440
      %v2442 = vsel %vm2431, nan, %v2441
      %v2443 = vand.u32 2147483647, %v220
      %vm2444 = vcmp.le.f32.partialorder %v2443, 0.7853982
      %vm2445 = vcmp.lt.s32.totalorder %v220, 0
      %v2446 = vand.u32 %v220, 2139095040
      %v2447 = vshrl.u32 %v2446, 23
      %v2448 = vsub.s32 %v2447, 127
      %v2449 = vand.u32 2147483647, %v220
      %v2450 = vand.u32 %v2449, 8388607
      %v2451 = vor.u32 %v2450, 8388608
      %v2452 = vsub.s32 0, %v2451
      %v2453 = vadd.s32 %v2448, 1
      %vm2454 = vcmp.gt.s32.totalorder %v2453, 0
      %v2455 = vsel %vm2454, %v2453, 0
      %v2456 = vshrl.u32 %v2455, 5
      %v2457 = vand.u32 %v2455, 31
      %v2458 = vsub.s32 32, %v2457
      %v2459 = vshrl.u32 683565275, %v2458
      %v2460 = vshll.u32 683565275, %v2457
      %v2461 = vshrl.u32 2475754826, %v2458
      %v2462 = vor.u32 %v2460, %v2461
      %v2463 = vshll.u32 2475754826, %v2457
      %v2464 = vshrl.u32 2131351028, %v2458
      %v2465 = vor.u32 %v2463, %v2464
      %v2466 = vshll.u32 2131351028, %v2457
      %v2467 = vshrl.u32 2102212464, %v2458
      %v2468 = vor.u32 %v2466, %v2467
      %v2469 = vshll.u32 2102212464, %v2457
      %v2470 = vshrl.u32 920167782, %v2458
      %v2471 = vor.u32 %v2469, %v2470
      %v2472 = vshll.u32 920167782, %v2457
      %v2473 = vshrl.u32 1326507024, %v2458
      %v2474 = vor.u32 %v2472, %v2473
      %vm2475 = vcmp.lt.s32.totalorder %v2456, 1
      %vm2476 = vcmp.lt.s32.totalorder %v2456, 2
      %vm2477 = vcmp.lt.s32.totalorder %v2456, 3
      %vm2478 = vcmp.lt.s32.totalorder %v2456, 4
      %v2479 = vsel %vm2475, %v2459, %v2462
      %v2480 = vsel %vm2478, %v2468, 2102212464
      %v2481 = vsel %vm2477, %v2465, %v2480
      %v2482 = vsel %vm2476, %v2479, %v2481
      %v2483 = vsel %vm2475, %v2462, %v2465
      %v2484 = vsel %vm2478, %v2471, 920167782
      %v2485 = vsel %vm2477, %v2468, %v2484
      %v2486 = vsel %vm2476, %v2483, %v2485
      %v2487 = vsel %vm2475, %v2465, %v2468
      %v2488 = vsel %vm2478, %v2474, 1326507024
      %v2489 = vsel %vm2477, %v2471, %v2488
      %v2490 = vsel %vm2476, %v2487, %v2489
      %v2491 = vshll.u32 %v2451, 8
      %v2492 = vand.u32 %v2491, 65535
      %v2493 = vshrl.u32 %v2491, 16
      %v2494 = vand.u32 %v2490, 65535
      %v2495 = vshrl.u32 %v2490, 16
      %v2496 = vmul.u32 %v2492, %v2494
      %v2497 = vmul.u32 %v2492, %v2495
      %v2498 = vmul.u32 %v2493, %v2494
      %v2499 = vmul.u32 %v2493, %v2495
      %v2500 = vshll.u32 %v2497, 16
      %v2501 = vshrl.u32 %v2497, 16
      %v2502 = vshll.u32 %v2498, 16
      %v2503 = vshrl.u32 %v2498, 16
      %vm2504 = vc.u32 %v2496, %v2500
      %v2505 = vsel %vm2504, 1, 0
      %v2506 = vadd.s32 %v2496, %v2500
      %v2507 = vadd.s32 %v2499, %v2505
      %vm2508 = vc.u32 %v2506, %v2502
      %v2509 = vsel %vm2508, 1, 0
      %v2510 = vadd.s32 %v2506, %v2502
      %v2511 = vadd.s32 %v2507, %v2509
      %v2512 = vadd.s32 %v2511, %v2501
      %v2513 = vadd.s32 %v2512, %v2503
      %v2514 = vand.u32 %v2491, 65535
      %v2515 = vshrl.u32 %v2491, 16
      %v2516 = vand.u32 %v2486, 65535
      %v2517 = vshrl.u32 %v2486, 16
      %v2518 = vmul.u32 %v2514, %v2516
      %v2519 = vmul.u32 %v2514, %v2517
      %v2520 = vmul.u32 %v2515, %v2516
      %v2521 = vmul.u32 %v2515, %v2517
      %v2522 = vshll.u32 %v2519, 16
      %v2523 = vshrl.u32 %v2519, 16
      %v2524 = vshll.u32 %v2520, 16
      %v2525 = vshrl.u32 %v2520, 16
      %vm2526 = vc.u32 %v2518, %v2522
      %v2527 = vsel %vm2526, 1, 0
      %v2528 = vadd.s32 %v2518, %v2522
      %v2529 = vadd.s32 %v2521, %v2527
      %vm2530 = vc.u32 %v2528, %v2524
      %v2531 = vsel %vm2530, 1, 0
      %v2532 = vadd.s32 %v2528, %v2524
      %v2533 = vadd.s32 %v2529, %v2531
      %v2534 = vadd.s32 %v2533, %v2523
      %v2535 = vadd.s32 %v2534, %v2525
      %v2536 = vmul.u32 %v2491, %v2482
      %v2537 = vadd.s32 %v2513, %v2532
      %vm2538 = vc.u32 %v2513, %v2532
      %v2539 = vadd.s32 %v2535, 1
      %v2540 = vsel %vm2538, %v2539, %v2535
      %v2541 = vadd.s32 %v2536, %v2540
      %v2542 = vadd.s32 %v2541, 536870912
      %v2543 = vshrl.u32 %v2542, 30
      %v2544 = vshll.u32 %v2543, 30
      %v2545 = vsub.s32 %v2541, %v2544
      %vm2546 = vcmp.lt.s32.totalorder %v2545, 0
      %v2547 = vsub.s32 0, %v2545
      %v2548 = vsel %vm2546, %v2547, %v2545
      %v2549 = vclz %v2548
      %v2550 = vsub.s32 %v2549, 2
      %vm2551 = vcmp.gt.s32.totalorder 0, %v2550
      %v2552 = vsel %vm2551, 0, %v2550
      %v2553 = vsub.s32 32, %v2552
      %v2554 = vshll.u32 %v2545, %v2552
      %v2555 = vshrl.u32 %v2537, %v2553
      %v2556 = vor.u32 %v2554, %v2555
      %v2557 = vsub.s32 4294967266, %v2552
      %v2558 = vadd.s32 %v2557, 127
      %v2559 = vshll.u32 %v2558, 23
      %v2560 = vor.u32 4788187, %v2559
      %v2561 = vand.u32 2147483647, %v2560
      %v2563 = vcvt.s32.f32 %v2556
      %v2564 = vmul.f32 %v2563, %v2561
      %v2565 = vxor.u32 %v2564, 2147483648
      %v2566 = vsel %vm2445, %v2565, %v2564
      %v2567 = vsub.s32 4, %v2543
      %v2568 = vsel %vm2445, %v2567, %v2543
      %v2569 = vsel %vm2444, %v220, %v2566
      %v2570 = vsel %vm2444, 0, %v2568
      %v2571 = vmul.f32 %v2569, %v2569
      %v2572 = vmul.f32 %v2571, -0.001358992
      %v2573 = vadd.f32 %v2572, 0.041655596
      %v2574 = vmul.f32 %v2571, %v2573
      %v2575 = vadd.f32 %v2574, -0.4999988
      %v2576 = vmul.f32 %v2571, %v2575
      %v2577 = vadd.f32 1.0, %v2576
      %v2578 = vmul.f32 %v2569, %v2569
      %v2579 = vmul.f32 %v2578, -0.00019511016
      %v2580 = vadd.f32 %v2579, 0.008332121
      %v2581 = vmul.f32 %v2578, %v2580
      %v2582 = vadd.f32 %v2581, -0.16666654
      %v2583 = vmul.f32 %v2578, %v2582
      %v2584 = vadd.f32 %v2583, 1.0
      %v2585 = vmul.f32 %v2584, %v2569
      %vm2586 = vweird.f32 %v220
      %v2587 = vadd.s32 %v2570, 3
      %v2588 = vand.u32 %v2587, 3
      %vm2589 = vcmp.lt.s32.totalorder %v2588, 2
      %vm2590 = vcmp.eq.s32.totalorder %v2588, 0
      %v2591 = vxor.u32 %v2585, 2147483648
      %v2592 = vsel %vm2590, %v2577, %v2591
      %vm2593 = vcmp.eq.s32.totalorder %v2588, 2
      %v2594 = vxor.u32 %v2577, 2147483648
      %v2595 = vsel %vm2593, %v2594, %v2585
      %v2596 = vsel %vm2589, %v2592, %v2595
      %v2597 = vsel %vm2586, nan, %v2596
      %v2598 = vand.u32 2147483647, %v223
      %vm2599 = vcmp.le.f32.partialorder %v2598, 0.7853982
      %vm2600 = vcmp.lt.s32.totalorder %v223, 0
      %v2601 = vand.u32 %v223, 2139095040
      %v2602 = vshrl.u32 %v2601, 23
      %v2603 = vsub.s32 %v2602, 127
      %v2604 = vand.u32 2147483647, %v223
      %v2605 = vand.u32 %v2604, 8388607
      %v2606 = vor.u32 %v2605, 8388608
      %v2607 = vsub.s32 0, %v2606
      %v2608 = vadd.s32 %v2603, 1
      %vm2609 = vcmp.gt.s32.totalorder %v2608, 0
      %v2610 = vsel %vm2609, %v2608, 0
      %v2611 = vshrl.u32 %v2610, 5
      %v2612 = vand.u32 %v2610, 31
      %v2613 = vsub.s32 32, %v2612
      %v2614 = vshrl.u32 683565275, %v2613
      %v2615 = vshll.u32 683565275, %v2612
      %v2616 = vshrl.u32 2475754826, %v2613
      %v2617 = vor.u32 %v2615, %v2616
      %v2618 = vshll.u32 2475754826, %v2612
      %v2619 = vshrl.u32 2131351028, %v2613
      %v2620 = vor.u32 %v2618, %v2619
      %v2621 = vshll.u32 2131351028, %v2612
      %v2622 = vshrl.u32 2102212464, %v2613
      %v2623 = vor.u32 %v2621, %v2622
      %v2624 = vshll.u32 2102212464, %v2612
      %v2625 = vshrl.u32 920167782, %v2613
      %v2626 = vor.u32 %v2624, %v2625
      %v2627 = vshll.u32 920167782, %v2612
      %v2628 = vshrl.u32 1326507024, %v2613
      %v2629 = vor.u32 %v2627, %v2628
      %vm2630 = vcmp.lt.s32.totalorder %v2611, 1
      %vm2631 = vcmp.lt.s32.totalorder %v2611, 2
      %vm2632 = vcmp.lt.s32.totalorder %v2611, 3
      %vm2633 = vcmp.lt.s32.totalorder %v2611, 4
      %v2634 = vsel %vm2630, %v2614, %v2617
      %v2635 = vsel %vm2633, %v2623, 2102212464
      %v2636 = vsel %vm2632, %v2620, %v2635
      %v2637 = vsel %vm2631, %v2634, %v2636
      %v2638 = vsel %vm2630, %v2617, %v2620
      %v2639 = vsel %vm2633, %v2626, 920167782
      %v2640 = vsel %vm2632, %v2623, %v2639
      %v2641 = vsel %vm2631, %v2638, %v2640
      %v2642 = vsel %vm2630, %v2620, %v2623
      %v2643 = vsel %vm2633, %v2629, 1326507024
      %v2644 = vsel %vm2632, %v2626, %v2643
      %v2645 = vsel %vm2631, %v2642, %v2644
      %v2646 = vshll.u32 %v2606, 8
      %v2647 = vand.u32 %v2646, 65535
      %v2648 = vshrl.u32 %v2646, 16
      %v2649 = vand.u32 %v2645, 65535
      %v2650 = vshrl.u32 %v2645, 16
      %v2651 = vmul.u32 %v2647, %v2649
      %v2652 = vmul.u32 %v2647, %v2650
      %v2653 = vmul.u32 %v2648, %v2649
      %v2654 = vmul.u32 %v2648, %v2650
      %v2655 = vshll.u32 %v2652, 16
      %v2656 = vshrl.u32 %v2652, 16
      %v2657 = vshll.u32 %v2653, 16
      %v2658 = vshrl.u32 %v2653, 16
      %vm2659 = vc.u32 %v2651, %v2655
      %v2660 = vsel %vm2659, 1, 0
      %v2661 = vadd.s32 %v2651, %v2655
      %v2662 = vadd.s32 %v2654, %v2660
      %vm2663 = vc.u32 %v2661, %v2657
      %v2664 = vsel %vm2663, 1, 0
      %v2665 = vadd.s32 %v2661, %v2657
      %v2666 = vadd.s32 %v2662, %v2664
      %v2667 = vadd.s32 %v2666, %v2656
      %v2668 = vadd.s32 %v2667, %v2658
      %v2669 = vand.u32 %v2646, 65535
      %v2670 = vshrl.u32 %v2646, 16
      %v2671 = vand.u32 %v2641, 65535
      %v2672 = vshrl.u32 %v2641, 16
      %v2673 = vmul.u32 %v2669, %v2671
      %v2674 = vmul.u32 %v2669, %v2672
      %v2675 = vmul.u32 %v2670, %v2671
      %v2676 = vmul.u32 %v2670, %v2672
      %v2677 = vshll.u32 %v2674, 16
      %v2678 = vshrl.u32 %v2674, 16
      %v2679 = vshll.u32 %v2675, 16
      %v2680 = vshrl.u32 %v2675, 16
      %vm2681 = vc.u32 %v2673, %v2677
      %v2682 = vsel %vm2681, 1, 0
      %v2683 = vadd.s32 %v2673, %v2677
      %v2684 = vadd.s32 %v2676, %v2682
      %vm2685 = vc.u32 %v2683, %v2679
      %v2686 = vsel %vm2685, 1, 0
      %v2687 = vadd.s32 %v2683, %v2679
      %v2688 = vadd.s32 %v2684, %v2686
      %v2689 = vadd.s32 %v2688, %v2678
      %v2690 = vadd.s32 %v2689, %v2680
      %v2691 = vmul.u32 %v2646, %v2637
      %v2692 = vadd.s32 %v2668, %v2687
      %vm2693 = vc.u32 %v2668, %v2687
      %v2694 = vadd.s32 %v2690, 1
      %v2695 = vsel %vm2693, %v2694, %v2690
      %v2696 = vadd.s32 %v2691, %v2695
      %v2697 = vadd.s32 %v2696, 536870912
      %v2698 = vshrl.u32 %v2697, 30
      %v2699 = vshll.u32 %v2698, 30
      %v2700 = vsub.s32 %v2696, %v2699
      %vm2701 = vcmp.lt.s32.totalorder %v2700, 0
      %v2702 = vsub.s32 0, %v2700
      %v2703 = vsel %vm2701, %v2702, %v2700
      %v2704 = vclz %v2703
      %v2705 = vsub.s32 %v2704, 2
      %vm2706 = vcmp.gt.s32.totalorder 0, %v2705
      %v2707 = vsel %vm2706, 0, %v2705
      %v2708 = vsub.s32 32, %v2707
      %v2709 = vshll.u32 %v2700, %v2707
      %v2710 = vshrl.u32 %v2692, %v2708
      %v2711 = vor.u32 %v2709, %v2710
      %v2712 = vsub.s32 4294967266, %v2707
      %v2713 = vadd.s32 %v2712, 127
      %v2714 = vshll.u32 %v2713, 23
      %v2715 = vor.u32 4788187, %v2714
      %v2716 = vand.u32 2147483647, %v2715
      %v2718 = vcvt.s32.f32 %v2711
      %v2719 = vmul.f32 %v2718, %v2716
      %v2720 = vxor.u32 %v2719, 2147483648
      %v2721 = vsel %vm2600, %v2720, %v2719
      %v2722 = vsub.s32 4, %v2698
      %v2723 = vsel %vm2600, %v2722, %v2698
      %v2724 = vsel %vm2599, %v223, %v2721
      %v2725 = vsel %vm2599, 0, %v2723
      %v2726 = vmul.f32 %v2724, %v2724
      %v2727 = vmul.f32 %v2726, -0.001358992
      %v2728 = vadd.f32 %v2727, 0.041655596
      %v2729 = vmul.f32 %v2726, %v2728
      %v2730 = vadd.f32 %v2729, -0.4999988
      %v2731 = vmul.f32 %v2726, %v2730
      %v2732 = vadd.f32 1.0, %v2731
      %v2733 = vmul.f32 %v2724, %v2724
      %v2734 = vmul.f32 %v2733, -0.00019511016
      %v2735 = vadd.f32 %v2734, 0.008332121
      %v2736 = vmul.f32 %v2733, %v2735
      %v2737 = vadd.f32 %v2736, -0.16666654
      %v2738 = vmul.f32 %v2733, %v2737
      %v2739 = vadd.f32 %v2738, 1.0
      %v2740 = vmul.f32 %v2739, %v2724
      %vm2741 = vweird.f32 %v223
      %v2742 = vadd.s32 %v2725, 3
      %v2743 = vand.u32 %v2742, 3
      %vm2744 = vcmp.lt.s32.totalorder %v2743, 2
      %vm2745 = vcmp.eq.s32.totalorder %v2743, 0
      %v2746 = vxor.u32 %v2740, 2147483648
      %v2747 = vsel %vm2745, %v2732, %v2746
      %vm2748 = vcmp.eq.s32.totalorder %v2743, 2
      %v2749 = vxor.u32 %v2732, 2147483648
      %v2750 = vsel %vm2748, %v2749, %v2740
      %v2751 = vsel %vm2744, %v2747, %v2750
      %v2752 = vsel %vm2741, nan, %v2751
      %v2753 = vand.u32 2147483647, %v226
      %vm2754 = vcmp.le.f32.partialorder %v2753, 0.7853982
      %vm2755 = vcmp.lt.s32.totalorder %v226, 0
      %v2756 = vand.u32 %v226, 2139095040
      %v2757 = vshrl.u32 %v2756, 23
      %v2758 = vsub.s32 %v2757, 127
      %v2759 = vand.u32 2147483647, %v226
      %v2760 = vand.u32 %v2759, 8388607
      %v2761 = vor.u32 %v2760, 8388608
      %v2762 = vsub.s32 0, %v2761
      %v2763 = vadd.s32 %v2758, 1
      %vm2764 = vcmp.gt.s32.totalorder %v2763, 0
      %v2765 = vsel %vm2764, %v2763, 0
      %v2766 = vshrl.u32 %v2765, 5
      %v2767 = vand.u32 %v2765, 31
      %v2768 = vsub.s32 32, %v2767
      %v2769 = vshrl.u32 683565275, %v2768
      %v2770 = vshll.u32 683565275, %v2767
      %v2771 = vshrl.u32 2475754826, %v2768
      %v2772 = vor.u32 %v2770, %v2771
      %v2773 = vshll.u32 2475754826, %v2767
      %v2774 = vshrl.u32 2131351028, %v2768
      %v2775 = vor.u32 %v2773, %v2774
      %v2776 = vshll.u32 2131351028, %v2767
      %v2777 = vshrl.u32 2102212464, %v2768
      %v2778 = vor.u32 %v2776, %v2777
      %v2779 = vshll.u32 2102212464, %v2767
      %v2780 = vshrl.u32 920167782, %v2768
      %v2781 = vor.u32 %v2779, %v2780
      %v2782 = vshll.u32 920167782, %v2767
      %v2783 = vshrl.u32 1326507024, %v2768
      %v2784 = vor.u32 %v2782, %v2783
      %vm2785 = vcmp.lt.s32.totalorder %v2766, 1
      %vm2786 = vcmp.lt.s32.totalorder %v2766, 2
      %vm2787 = vcmp.lt.s32.totalorder %v2766, 3
      %vm2788 = vcmp.lt.s32.totalorder %v2766, 4
      %v2789 = vsel %vm2785, %v2769, %v2772
      %v2790 = vsel %vm2788, %v2778, 2102212464
      %v2791 = vsel %vm2787, %v2775, %v2790
      %v2792 = vsel %vm2786, %v2789, %v2791
      %v2793 = vsel %vm2785, %v2772, %v2775
      %v2794 = vsel %vm2788, %v2781, 920167782
      %v2795 = vsel %vm2787, %v2778, %v2794
      %v2796 = vsel %vm2786, %v2793, %v2795
      %v2797 = vsel %vm2785, %v2775, %v2778
      %v2798 = vsel %vm2788, %v2784, 1326507024
      %v2799 = vsel %vm2787, %v2781, %v2798
      %v2800 = vsel %vm2786, %v2797, %v2799
      %v2801 = vshll.u32 %v2761, 8
      %v2802 = vand.u32 %v2801, 65535
      %v2803 = vshrl.u32 %v2801, 16
      %v2804 = vand.u32 %v2800, 65535
      %v2805 = vshrl.u32 %v2800, 16
      %v2806 = vmul.u32 %v2802, %v2804
      %v2807 = vmul.u32 %v2802, %v2805
      %v2808 = vmul.u32 %v2803, %v2804
      %v2809 = vmul.u32 %v2803, %v2805
      %v2810 = vshll.u32 %v2807, 16
      %v2811 = vshrl.u32 %v2807, 16
      %v2812 = vshll.u32 %v2808, 16
      %v2813 = vshrl.u32 %v2808, 16
      %vm2814 = vc.u32 %v2806, %v2810
      %v2815 = vsel %vm2814, 1, 0
      %v2816 = vadd.s32 %v2806, %v2810
      %v2817 = vadd.s32 %v2809, %v2815
      %vm2818 = vc.u32 %v2816, %v2812
      %v2819 = vsel %vm2818, 1, 0
      %v2820 = vadd.s32 %v2816, %v2812
      %v2821 = vadd.s32 %v2817, %v2819
      %v2822 = vadd.s32 %v2821, %v2811
      %v2823 = vadd.s32 %v2822, %v2813
      %v2824 = vand.u32 %v2801, 65535
      %v2825 = vshrl.u32 %v2801, 16
      %v2826 = vand.u32 %v2796, 65535
      %v2827 = vshrl.u32 %v2796, 16
      %v2828 = vmul.u32 %v2824, %v2826
      %v2829 = vmul.u32 %v2824, %v2827
      %v2830 = vmul.u32 %v2825, %v2826
      %v2831 = vmul.u32 %v2825, %v2827
      %v2832 = vshll.u32 %v2829, 16
      %v2833 = vshrl.u32 %v2829, 16
      %v2834 = vshll.u32 %v2830, 16
      %v2835 = vshrl.u32 %v2830, 16
      %vm2836 = vc.u32 %v2828, %v2832
      %v2837 = vsel %vm2836, 1, 0
      %v2838 = vadd.s32 %v2828, %v2832
      %v2839 = vadd.s32 %v2831, %v2837
      %vm2840 = vc.u32 %v2838, %v2834
      %v2841 = vsel %vm2840, 1, 0
      %v2842 = vadd.s32 %v2838, %v2834
      %v2843 = vadd.s32 %v2839, %v2841
      %v2844 = vadd.s32 %v2843, %v2833
      %v2845 = vadd.s32 %v2844, %v2835
      %v2846 = vmul.u32 %v2801, %v2792
      %v2847 = vadd.s32 %v2823, %v2842
      %vm2848 = vc.u32 %v2823, %v2842
      %v2849 = vadd.s32 %v2845, 1
      %v2850 = vsel %vm2848, %v2849, %v2845
      %v2851 = vadd.s32 %v2846, %v2850
      %v2852 = vadd.s32 %v2851, 536870912
      %v2853 = vshrl.u32 %v2852, 30
      %v2854 = vshll.u32 %v2853, 30
      %v2855 = vsub.s32 %v2851, %v2854
      %vm2856 = vcmp.lt.s32.totalorder %v2855, 0
      %v2857 = vsub.s32 0, %v2855
      %v2858 = vsel %vm2856, %v2857, %v2855
      %v2859 = vclz %v2858
      %v2860 = vsub.s32 %v2859, 2
      %vm2861 = vcmp.gt.s32.totalorder 0, %v2860
      %v2862 = vsel %vm2861, 0, %v2860
      %v2863 = vsub.s32 32, %v2862
      %v2864 = vshll.u32 %v2855, %v2862
      %v2865 = vshrl.u32 %v2847, %v2863
      %v2866 = vor.u32 %v2864, %v2865
      %v2867 = vsub.s32 4294967266, %v2862
      %v2868 = vadd.s32 %v2867, 127
      %v2869 = vshll.u32 %v2868, 23
      %v2870 = vor.u32 4788187, %v2869
      %v2871 = vand.u32 2147483647, %v2870
      %v2873 = vcvt.s32.f32 %v2866
      %v2874 = vmul.f32 %v2873, %v2871
      %v2875 = vxor.u32 %v2874, 2147483648
      %v2876 = vsel %vm2755, %v2875, %v2874
      %v2877 = vsub.s32 4, %v2853
      %v2878 = vsel %vm2755, %v2877, %v2853
      %v2879 = vsel %vm2754, %v226, %v2876
      %v2880 = vsel %vm2754, 0, %v2878
      %v2881 = vmul.f32 %v2879, %v2879
      %v2882 = vmul.f32 %v2881, -0.001358992
      %v2883 = vadd.f32 %v2882, 0.041655596
      %v2884 = vmul.f32 %v2881, %v2883
      %v2885 = vadd.f32 %v2884, -0.4999988
      %v2886 = vmul.f32 %v2881, %v2885
      %v2887 = vadd.f32 1.0, %v2886
      %v2888 = vmul.f32 %v2879, %v2879
      %v2889 = vmul.f32 %v2888, -0.00019511016
      %v2890 = vadd.f32 %v2889, 0.008332121
      %v2891 = vmul.f32 %v2888, %v2890
      %v2892 = vadd.f32 %v2891, -0.16666654
      %v2893 = vmul.f32 %v2888, %v2892
      %v2894 = vadd.f32 %v2893, 1.0
      %v2895 = vmul.f32 %v2894, %v2879
      %vm2896 = vweird.f32 %v226
      %v2897 = vadd.s32 %v2880, 3
      %v2898 = vand.u32 %v2897, 3
      %vm2899 = vcmp.lt.s32.totalorder %v2898, 2
      %vm2900 = vcmp.eq.s32.totalorder %v2898, 0
      %v2901 = vxor.u32 %v2895, 2147483648
      %v2902 = vsel %vm2900, %v2887, %v2901
      %vm2903 = vcmp.eq.s32.totalorder %v2898, 2
      %v2904 = vxor.u32 %v2887, 2147483648
      %v2905 = vsel %vm2903, %v2904, %v2895
      %v2906 = vsel %vm2899, %v2902, %v2905
      %v2907 = vsel %vm2896, nan, %v2906
      %v2908 = vand.u32 2147483647, %v229
      %vm2909 = vcmp.le.f32.partialorder %v2908, 0.7853982
      %vm2910 = vcmp.lt.s32.totalorder %v229, 0
      %v2911 = vand.u32 %v229, 2139095040
      %v2912 = vshrl.u32 %v2911, 23
      %v2913 = vsub.s32 %v2912, 127
      %v2914 = vand.u32 2147483647, %v229
      %v2915 = vand.u32 %v2914, 8388607
      %v2916 = vor.u32 %v2915, 8388608
      %v2917 = vsub.s32 0, %v2916
      %v2918 = vadd.s32 %v2913, 1
      %vm2919 = vcmp.gt.s32.totalorder %v2918, 0
      %v2920 = vsel %vm2919, %v2918, 0
      %v2921 = vshrl.u32 %v2920, 5
      %v2922 = vand.u32 %v2920, 31
      %v2923 = vsub.s32 32, %v2922
      %v2924 = vshrl.u32 683565275, %v2923
      %v2925 = vshll.u32 683565275, %v2922
      %v2926 = vshrl.u32 2475754826, %v2923
      %v2927 = vor.u32 %v2925, %v2926
      %v2928 = vshll.u32 2475754826, %v2922
      %v2929 = vshrl.u32 2131351028, %v2923
      %v2930 = vor.u32 %v2928, %v2929
      %v2931 = vshll.u32 2131351028, %v2922
      %v2932 = vshrl.u32 2102212464, %v2923
      %v2933 = vor.u32 %v2931, %v2932
      %v2934 = vshll.u32 2102212464, %v2922
      %v2935 = vshrl.u32 920167782, %v2923
      %v2936 = vor.u32 %v2934, %v2935
      %v2937 = vshll.u32 920167782, %v2922
      %v2938 = vshrl.u32 1326507024, %v2923
      %v2939 = vor.u32 %v2937, %v2938
      %vm2940 = vcmp.lt.s32.totalorder %v2921, 1
      %vm2941 = vcmp.lt.s32.totalorder %v2921, 2
      %vm2942 = vcmp.lt.s32.totalorder %v2921, 3
      %vm2943 = vcmp.lt.s32.totalorder %v2921, 4
      %v2944 = vsel %vm2940, %v2924, %v2927
      %v2945 = vsel %vm2943, %v2933, 2102212464
      %v2946 = vsel %vm2942, %v2930, %v2945
      %v2947 = vsel %vm2941, %v2944, %v2946
      %v2948 = vsel %vm2940, %v2927, %v2930
      %v2949 = vsel %vm2943, %v2936, 920167782
      %v2950 = vsel %vm2942, %v2933, %v2949
      %v2951 = vsel %vm2941, %v2948, %v2950
      %v2952 = vsel %vm2940, %v2930, %v2933
      %v2953 = vsel %vm2943, %v2939, 1326507024
      %v2954 = vsel %vm2942, %v2936, %v2953
      %v2955 = vsel %vm2941, %v2952, %v2954
      %v2956 = vshll.u32 %v2916, 8
      %v2957 = vand.u32 %v2956, 65535
      %v2958 = vshrl.u32 %v2956, 16
      %v2959 = vand.u32 %v2955, 65535
      %v2960 = vshrl.u32 %v2955, 16
      %v2961 = vmul.u32 %v2957, %v2959
      %v2962 = vmul.u32 %v2957, %v2960
      %v2963 = vmul.u32 %v2958, %v2959
      %v2964 = vmul.u32 %v2958, %v2960
      %v2965 = vshll.u32 %v2962, 16
      %v2966 = vshrl.u32 %v2962, 16
      %v2967 = vshll.u32 %v2963, 16
      %v2968 = vshrl.u32 %v2963, 16
      %vm2969 = vc.u32 %v2961, %v2965
      %v2970 = vsel %vm2969, 1, 0
      %v2971 = vadd.s32 %v2961, %v2965
      %v2972 = vadd.s32 %v2964, %v2970
      %vm2973 = vc.u32 %v2971, %v2967
      %v2974 = vsel %vm2973, 1, 0
      %v2975 = vadd.s32 %v2971, %v2967
      %v2976 = vadd.s32 %v2972, %v2974
      %v2977 = vadd.s32 %v2976, %v2966
      %v2978 = vadd.s32 %v2977, %v2968
      %v2979 = vand.u32 %v2956, 65535
      %v2980 = vshrl.u32 %v2956, 16
      %v2981 = vand.u32 %v2951, 65535
      %v2982 = vshrl.u32 %v2951, 16
      %v2983 = vmul.u32 %v2979, %v2981
      %v2984 = vmul.u32 %v2979, %v2982
      %v2985 = vmul.u32 %v2980, %v2981
      %v2986 = vmul.u32 %v2980, %v2982
      %v2987 = vshll.u32 %v2984, 16
      %v2988 = vshrl.u32 %v2984, 16
      %v2989 = vshll.u32 %v2985, 16
      %v2990 = vshrl.u32 %v2985, 16
      %vm2991 = vc.u32 %v2983, %v2987
      %v2992 = vsel %vm2991, 1, 0
      %v2993 = vadd.s32 %v2983, %v2987
      %v2994 = vadd.s32 %v2986, %v2992
      %vm2995 = vc.u32 %v2993, %v2989
      %v2996 = vsel %vm2995, 1, 0
      %v2997 = vadd.s32 %v2993, %v2989
      %v2998 = vadd.s32 %v2994, %v2996
      %v2999 = vadd.s32 %v2998, %v2988
      %v3000 = vadd.s32 %v2999, %v2990
      %v3001 = vmul.u32 %v2956, %v2947
      %v3002 = vadd.s32 %v2978, %v2997
      %vm3003 = vc.u32 %v2978, %v2997
      %v3004 = vadd.s32 %v3000, 1
      %v3005 = vsel %vm3003, %v3004, %v3000
      %v3006 = vadd.s32 %v3001, %v3005
      %v3007 = vadd.s32 %v3006, 536870912
      %v3008 = vshrl.u32 %v3007, 30
      %v3009 = vshll.u32 %v3008, 30
      %v3010 = vsub.s32 %v3006, %v3009
      %vm3011 = vcmp.lt.s32.totalorder %v3010, 0
      %v3012 = vsub.s32 0, %v3010
      %v3013 = vsel %vm3011, %v3012, %v3010
      %v3014 = vclz %v3013
      %v3015 = vsub.s32 %v3014, 2
      %vm3016 = vcmp.gt.s32.totalorder 0, %v3015
      %v3017 = vsel %vm3016, 0, %v3015
      %v3018 = vsub.s32 32, %v3017
      %v3019 = vshll.u32 %v3010, %v3017
      %v3020 = vshrl.u32 %v3002, %v3018
      %v3021 = vor.u32 %v3019, %v3020
      %v3022 = vsub.s32 4294967266, %v3017
      %v3023 = vadd.s32 %v3022, 127
      %v3024 = vshll.u32 %v3023, 23
      %v3025 = vor.u32 4788187, %v3024
      %v3026 = vand.u32 2147483647, %v3025
      %v3028 = vcvt.s32.f32 %v3021
      %v3029 = vmul.f32 %v3028, %v3026
      %v3030 = vxor.u32 %v3029, 2147483648
      %v3031 = vsel %vm2910, %v3030, %v3029
      %v3032 = vsub.s32 4, %v3008
      %v3033 = vsel %vm2910, %v3032, %v3008
      %v3034 = vsel %vm2909, %v229, %v3031
      %v3035 = vsel %vm2909, 0, %v3033
      %v3036 = vmul.f32 %v3034, %v3034
      %v3037 = vmul.f32 %v3036, -0.001358992
      %v3038 = vadd.f32 %v3037, 0.041655596
      %v3039 = vmul.f32 %v3036, %v3038
      %v3040 = vadd.f32 %v3039, -0.4999988
      %v3041 = vmul.f32 %v3036, %v3040
      %v3042 = vadd.f32 1.0, %v3041
      %v3043 = vmul.f32 %v3034, %v3034
      %v3044 = vmul.f32 %v3043, -0.00019511016
      %v3045 = vadd.f32 %v3044, 0.008332121
      %v3046 = vmul.f32 %v3043, %v3045
      %v3047 = vadd.f32 %v3046, -0.16666654
      %v3048 = vmul.f32 %v3043, %v3047
      %v3049 = vadd.f32 %v3048, 1.0
      %v3050 = vmul.f32 %v3049, %v3034
      %vm3051 = vweird.f32 %v229
      %v3052 = vadd.s32 %v3035, 3
      %v3053 = vand.u32 %v3052, 3
      %vm3054 = vcmp.lt.s32.totalorder %v3053, 2
      %vm3055 = vcmp.eq.s32.totalorder %v3053, 0
      %v3056 = vxor.u32 %v3050, 2147483648
      %v3057 = vsel %vm3055, %v3042, %v3056
      %vm3058 = vcmp.eq.s32.totalorder %v3053, 2
      %v3059 = vxor.u32 %v3042, 2147483648
      %v3060 = vsel %vm3058, %v3059, %v3050
      %v3061 = vsel %vm3054, %v3057, %v3060
      %v3062 = vsel %vm3051, nan, %v3061
      %v3063 = vand.u32 2147483647, %v232
      %vm3064 = vcmp.le.f32.partialorder %v3063, 0.7853982
      %vm3065 = vcmp.lt.s32.totalorder %v232, 0
      %v3066 = vand.u32 %v232, 2139095040
      %v3067 = vshrl.u32 %v3066, 23
      %v3068 = vsub.s32 %v3067, 127
      %v3069 = vand.u32 2147483647, %v232
      %v3070 = vand.u32 %v3069, 8388607
      %v3071 = vor.u32 %v3070, 8388608
      %v3072 = vsub.s32 0, %v3071
      %v3073 = vadd.s32 %v3068, 1
      %vm3074 = vcmp.gt.s32.totalorder %v3073, 0
      %v3075 = vsel %vm3074, %v3073, 0
      %v3076 = vshrl.u32 %v3075, 5
      %v3077 = vand.u32 %v3075, 31
      %v3078 = vsub.s32 32, %v3077
      %v3079 = vshrl.u32 683565275, %v3078
      %v3080 = vshll.u32 683565275, %v3077
      %v3081 = vshrl.u32 2475754826, %v3078
      %v3082 = vor.u32 %v3080, %v3081
      %v3083 = vshll.u32 2475754826, %v3077
      %v3084 = vshrl.u32 2131351028, %v3078
      %v3085 = vor.u32 %v3083, %v3084
      %v3086 = vshll.u32 2131351028, %v3077
      %v3087 = vshrl.u32 2102212464, %v3078
      %v3088 = vor.u32 %v3086, %v3087
      %v3089 = vshll.u32 2102212464, %v3077
      %v3090 = vshrl.u32 920167782, %v3078
      %v3091 = vor.u32 %v3089, %v3090
      %v3092 = vshll.u32 920167782, %v3077
      %v3093 = vshrl.u32 1326507024, %v3078
      %v3094 = vor.u32 %v3092, %v3093
      %vm3095 = vcmp.lt.s32.totalorder %v3076, 1
      %vm3096 = vcmp.lt.s32.totalorder %v3076, 2
      %vm3097 = vcmp.lt.s32.totalorder %v3076, 3
      %vm3098 = vcmp.lt.s32.totalorder %v3076, 4
      %v3099 = vsel %vm3095, %v3079, %v3082
      %v3100 = vsel %vm3098, %v3088, 2102212464
      %v3101 = vsel %vm3097, %v3085, %v3100
      %v3102 = vsel %vm3096, %v3099, %v3101
      %v3103 = vsel %vm3095, %v3082, %v3085
      %v3104 = vsel %vm3098, %v3091, 920167782
      %v3105 = vsel %vm3097, %v3088, %v3104
      %v3106 = vsel %vm3096, %v3103, %v3105
      %v3107 = vsel %vm3095, %v3085, %v3088
      %v3108 = vsel %vm3098, %v3094, 1326507024
      %v3109 = vsel %vm3097, %v3091, %v3108
      %v3110 = vsel %vm3096, %v3107, %v3109
      %v3111 = vshll.u32 %v3071, 8
      %v3112 = vand.u32 %v3111, 65535
      %v3113 = vshrl.u32 %v3111, 16
      %v3114 = vand.u32 %v3110, 65535
      %v3115 = vshrl.u32 %v3110, 16
      %v3116 = vmul.u32 %v3112, %v3114
      %v3117 = vmul.u32 %v3112, %v3115
      %v3118 = vmul.u32 %v3113, %v3114
      %v3119 = vmul.u32 %v3113, %v3115
      %v3120 = vshll.u32 %v3117, 16
      %v3121 = vshrl.u32 %v3117, 16
      %v3122 = vshll.u32 %v3118, 16
      %v3123 = vshrl.u32 %v3118, 16
      %vm3124 = vc.u32 %v3116, %v3120
      %v3125 = vsel %vm3124, 1, 0
      %v3126 = vadd.s32 %v3116, %v3120
      %v3127 = vadd.s32 %v3119, %v3125
      %vm3128 = vc.u32 %v3126, %v3122
      %v3129 = vsel %vm3128, 1, 0
      %v3130 = vadd.s32 %v3126, %v3122
      %v3131 = vadd.s32 %v3127, %v3129
      %v3132 = vadd.s32 %v3131, %v3121
      %v3133 = vadd.s32 %v3132, %v3123
      %v3134 = vand.u32 %v3111, 65535
      %v3135 = vshrl.u32 %v3111, 16
      %v3136 = vand.u32 %v3106, 65535
      %v3137 = vshrl.u32 %v3106, 16
      %v3138 = vmul.u32 %v3134, %v3136
      %v3139 = vmul.u32 %v3134, %v3137
      %v3140 = vmul.u32 %v3135, %v3136
      %v3141 = vmul.u32 %v3135, %v3137
      %v3142 = vshll.u32 %v3139, 16
      %v3143 = vshrl.u32 %v3139, 16
      %v3144 = vshll.u32 %v3140, 16
      %v3145 = vshrl.u32 %v3140, 16
      %vm3146 = vc.u32 %v3138, %v3142
      %v3147 = vsel %vm3146, 1, 0
      %v3148 = vadd.s32 %v3138, %v3142
      %v3149 = vadd.s32 %v3141, %v3147
      %vm3150 = vc.u32 %v3148, %v3144
      %v3151 = vsel %vm3150, 1, 0
      %v3152 = vadd.s32 %v3148, %v3144
      %v3153 = vadd.s32 %v3149, %v3151
      %v3154 = vadd.s32 %v3153, %v3143
      %v3155 = vadd.s32 %v3154, %v3145
      %v3156 = vmul.u32 %v3111, %v3102
      %v3157 = vadd.s32 %v3133, %v3152
      %vm3158 = vc.u32 %v3133, %v3152
      %v3159 = vadd.s32 %v3155, 1
      %v3160 = vsel %vm3158, %v3159, %v3155
      %v3161 = vadd.s32 %v3156, %v3160
      %v3162 = vadd.s32 %v3161, 536870912
      %v3163 = vshrl.u32 %v3162, 30
      %v3164 = vshll.u32 %v3163, 30
      %v3165 = vsub.s32 %v3161, %v3164
      %vm3166 = vcmp.lt.s32.totalorder %v3165, 0
      %v3167 = vsub.s32 0, %v3165
      %v3168 = vsel %vm3166, %v3167, %v3165
      %v3169 = vclz %v3168
      %v3170 = vsub.s32 %v3169, 2
      %vm3171 = vcmp.gt.s32.totalorder 0, %v3170
      %v3172 = vsel %vm3171, 0, %v3170
      %v3173 = vsub.s32 32, %v3172
      %v3174 = vshll.u32 %v3165, %v3172
      %v3175 = vshrl.u32 %v3157, %v3173
      %v3176 = vor.u32 %v3174, %v3175
      %v3177 = vsub.s32 4294967266, %v3172
      %v3178 = vadd.s32 %v3177, 127
      %v3179 = vshll.u32 %v3178, 23
      %v3180 = vor.u32 4788187, %v3179
      %v3181 = vand.u32 2147483647, %v3180
      %v3183 = vcvt.s32.f32 %v3176
      %v3184 = vmul.f32 %v3183, %v3181
      %v3185 = vxor.u32 %v3184, 2147483648
      %v3186 = vsel %vm3065, %v3185, %v3184
      %v3187 = vsub.s32 4, %v3163
      %v3188 = vsel %vm3065, %v3187, %v3163
      %v3189 = vsel %vm3064, %v232, %v3186
      %v3190 = vsel %vm3064, 0, %v3188
      %v3191 = vmul.f32 %v3189, %v3189
      %v3192 = vmul.f32 %v3191, -0.001358992
      %v3193 = vadd.f32 %v3192, 0.041655596
      %v3194 = vmul.f32 %v3191, %v3193
      %v3195 = vadd.f32 %v3194, -0.4999988
      %v3196 = vmul.f32 %v3191, %v3195
      %v3197 = vadd.f32 1.0, %v3196
      %v3198 = vmul.f32 %v3189, %v3189
      %v3199 = vmul.f32 %v3198, -0.00019511016
      %v3200 = vadd.f32 %v3199, 0.008332121
      %v3201 = vmul.f32 %v3198, %v3200
      %v3202 = vadd.f32 %v3201, -0.16666654
      %v3203 = vmul.f32 %v3198, %v3202
      %v3204 = vadd.f32 %v3203, 1.0
      %v3205 = vmul.f32 %v3204, %v3189
      %vm3206 = vweird.f32 %v232
      %v3207 = vadd.s32 %v3190, 3
      %v3208 = vand.u32 %v3207, 3
      %vm3209 = vcmp.lt.s32.totalorder %v3208, 2
      %vm3210 = vcmp.eq.s32.totalorder %v3208, 0
      %v3211 = vxor.u32 %v3205, 2147483648
      %v3212 = vsel %vm3210, %v3197, %v3211
      %vm3213 = vcmp.eq.s32.totalorder %v3208, 2
      %v3214 = vxor.u32 %v3197, 2147483648
      %v3215 = vsel %vm3213, %v3214, %v3205
      %v3216 = vsel %vm3209, %v3212, %v3215
      %v3217 = vsel %vm3206, nan, %v3216
      %v3218 = vand.u32 2147483647, %v235
      %vm3219 = vcmp.le.f32.partialorder %v3218, 0.7853982
      %vm3220 = vcmp.lt.s32.totalorder %v235, 0
      %v3221 = vand.u32 %v235, 2139095040
      %v3222 = vshrl.u32 %v3221, 23
      %v3223 = vsub.s32 %v3222, 127
      %v3224 = vand.u32 2147483647, %v235
      %v3225 = vand.u32 %v3224, 8388607
      %v3226 = vor.u32 %v3225, 8388608
      %v3227 = vsub.s32 0, %v3226
      %v3228 = vadd.s32 %v3223, 1
      %vm3229 = vcmp.gt.s32.totalorder %v3228, 0
      %v3230 = vsel %vm3229, %v3228, 0
      %v3231 = vshrl.u32 %v3230, 5
      %v3232 = vand.u32 %v3230, 31
      %v3233 = vsub.s32 32, %v3232
      %v3234 = vshrl.u32 683565275, %v3233
      %v3235 = vshll.u32 683565275, %v3232
      %v3236 = vshrl.u32 2475754826, %v3233
      %v3237 = vor.u32 %v3235, %v3236
      %v3238 = vshll.u32 2475754826, %v3232
      %v3239 = vshrl.u32 2131351028, %v3233
      %v3240 = vor.u32 %v3238, %v3239
      %v3241 = vshll.u32 2131351028, %v3232
      %v3242 = vshrl.u32 2102212464, %v3233
      %v3243 = vor.u32 %v3241, %v3242
      %v3244 = vshll.u32 2102212464, %v3232
      %v3245 = vshrl.u32 920167782, %v3233
      %v3246 = vor.u32 %v3244, %v3245
      %v3247 = vshll.u32 920167782, %v3232
      %v3248 = vshrl.u32 1326507024, %v3233
      %v3249 = vor.u32 %v3247, %v3248
      %vm3250 = vcmp.lt.s32.totalorder %v3231, 1
      %vm3251 = vcmp.lt.s32.totalorder %v3231, 2
      %vm3252 = vcmp.lt.s32.totalorder %v3231, 3
      %vm3253 = vcmp.lt.s32.totalorder %v3231, 4
      %v3254 = vsel %vm3250, %v3234, %v3237
      %v3255 = vsel %vm3253, %v3243, 2102212464
      %v3256 = vsel %vm3252, %v3240, %v3255
      %v3257 = vsel %vm3251, %v3254, %v3256
      %v3258 = vsel %vm3250, %v3237, %v3240
      %v3259 = vsel %vm3253, %v3246, 920167782
      %v3260 = vsel %vm3252, %v3243, %v3259
      %v3261 = vsel %vm3251, %v3258, %v3260
      %v3262 = vsel %vm3250, %v3240, %v3243
      %v3263 = vsel %vm3253, %v3249, 1326507024
      %v3264 = vsel %vm3252, %v3246, %v3263
      %v3265 = vsel %vm3251, %v3262, %v3264
      %v3266 = vshll.u32 %v3226, 8
      %v3267 = vand.u32 %v3266, 65535
      %v3268 = vshrl.u32 %v3266, 16
      %v3269 = vand.u32 %v3265, 65535
      %v3270 = vshrl.u32 %v3265, 16
      %v3271 = vmul.u32 %v3267, %v3269
      %v3272 = vmul.u32 %v3267, %v3270
      %v3273 = vmul.u32 %v3268, %v3269
      %v3274 = vmul.u32 %v3268, %v3270
      %v3275 = vshll.u32 %v3272, 16
      %v3276 = vshrl.u32 %v3272, 16
      %v3277 = vshll.u32 %v3273, 16
      %v3278 = vshrl.u32 %v3273, 16
      %vm3279 = vc.u32 %v3271, %v3275
      %v3280 = vsel %vm3279, 1, 0
      %v3281 = vadd.s32 %v3271, %v3275
      %v3282 = vadd.s32 %v3274, %v3280
      %vm3283 = vc.u32 %v3281, %v3277
      %v3284 = vsel %vm3283, 1, 0
      %v3285 = vadd.s32 %v3281, %v3277
      %v3286 = vadd.s32 %v3282, %v3284
      %v3287 = vadd.s32 %v3286, %v3276
      %v3288 = vadd.s32 %v3287, %v3278
      %v3289 = vand.u32 %v3266, 65535
      %v3290 = vshrl.u32 %v3266, 16
      %v3291 = vand.u32 %v3261, 65535
      %v3292 = vshrl.u32 %v3261, 16
      %v3293 = vmul.u32 %v3289, %v3291
      %v3294 = vmul.u32 %v3289, %v3292
      %v3295 = vmul.u32 %v3290, %v3291
      %v3296 = vmul.u32 %v3290, %v3292
      %v3297 = vshll.u32 %v3294, 16
      %v3298 = vshrl.u32 %v3294, 16
      %v3299 = vshll.u32 %v3295, 16
      %v3300 = vshrl.u32 %v3295, 16
      %vm3301 = vc.u32 %v3293, %v3297
      %v3302 = vsel %vm3301, 1, 0
      %v3303 = vadd.s32 %v3293, %v3297
      %v3304 = vadd.s32 %v3296, %v3302
      %vm3305 = vc.u32 %v3303, %v3299
      %v3306 = vsel %vm3305, 1, 0
      %v3307 = vadd.s32 %v3303, %v3299
      %v3308 = vadd.s32 %v3304, %v3306
      %v3309 = vadd.s32 %v3308, %v3298
      %v3310 = vadd.s32 %v3309, %v3300
      %v3311 = vmul.u32 %v3266, %v3257
      %v3312 = vadd.s32 %v3288, %v3307
      %vm3313 = vc.u32 %v3288, %v3307
      %v3314 = vadd.s32 %v3310, 1
      %v3315 = vsel %vm3313, %v3314, %v3310
      %v3316 = vadd.s32 %v3311, %v3315
      %v3317 = vadd.s32 %v3316, 536870912
      %v3318 = vshrl.u32 %v3317, 30
      %v3319 = vshll.u32 %v3318, 30
      %v3320 = vsub.s32 %v3316, %v3319
      %vm3321 = vcmp.lt.s32.totalorder %v3320, 0
      %v3322 = vsub.s32 0, %v3320
      %v3323 = vsel %vm3321, %v3322, %v3320
      %v3324 = vclz %v3323
      %v3325 = vsub.s32 %v3324, 2
      %vm3326 = vcmp.gt.s32.totalorder 0, %v3325
      %v3327 = vsel %vm3326, 0, %v3325
      %v3328 = vsub.s32 32, %v3327
      %v3329 = vshll.u32 %v3320, %v3327
      %v3330 = vshrl.u32 %v3312, %v3328
      %v3331 = vor.u32 %v3329, %v3330
      %v3332 = vsub.s32 4294967266, %v3327
      %v3333 = vadd.s32 %v3332, 127
      %v3334 = vshll.u32 %v3333, 23
      %v3335 = vor.u32 4788187, %v3334
      %v3336 = vand.u32 2147483647, %v3335
      %v3338 = vcvt.s32.f32 %v3331
      %v3339 = vmul.f32 %v3338, %v3336
      %v3340 = vxor.u32 %v3339, 2147483648
      %v3341 = vsel %vm3220, %v3340, %v3339
      %v3342 = vsub.s32 4, %v3318
      %v3343 = vsel %vm3220, %v3342, %v3318
      %v3344 = vsel %vm3219, %v235, %v3341
      %v3345 = vsel %vm3219, 0, %v3343
      %v3346 = vmul.f32 %v3344, %v3344
      %v3347 = vmul.f32 %v3346, -0.001358992
      %v3348 = vadd.f32 %v3347, 0.041655596
      %v3349 = vmul.f32 %v3346, %v3348
      %v3350 = vadd.f32 %v3349, -0.4999988
      %v3351 = vmul.f32 %v3346, %v3350
      %v3352 = vadd.f32 1.0, %v3351
      %v3353 = vmul.f32 %v3344, %v3344
      %v3354 = vmul.f32 %v3353, -0.00019511016
      %v3355 = vadd.f32 %v3354, 0.008332121
      %v3356 = vmul.f32 %v3353, %v3355
      %v3357 = vadd.f32 %v3356, -0.16666654
      %v3358 = vmul.f32 %v3353, %v3357
      %v3359 = vadd.f32 %v3358, 1.0
      %v3360 = vmul.f32 %v3359, %v3344
      %vm3361 = vweird.f32 %v235
      %v3362 = vadd.s32 %v3345, 3
      %v3363 = vand.u32 %v3362, 3
      %vm3364 = vcmp.lt.s32.totalorder %v3363, 2
      %vm3365 = vcmp.eq.s32.totalorder %v3363, 0
      %v3366 = vxor.u32 %v3360, 2147483648
      %v3367 = vsel %vm3365, %v3352, %v3366
      %vm3368 = vcmp.eq.s32.totalorder %v3363, 2
      %v3369 = vxor.u32 %v3352, 2147483648
      %v3370 = vsel %vm3368, %v3369, %v3360
      %v3371 = vsel %vm3364, %v3367, %v3370
      %v3372 = vsel %vm3361, nan, %v3371
      %v3373 = vand.u32 2147483647, %v238
      %vm3374 = vcmp.le.f32.partialorder %v3373, 0.7853982
      %vm3375 = vcmp.lt.s32.totalorder %v238, 0
      %v3376 = vand.u32 %v238, 2139095040
      %v3377 = vshrl.u32 %v3376, 23
      %v3378 = vsub.s32 %v3377, 127
      %v3379 = vand.u32 2147483647, %v238
      %v3380 = vand.u32 %v3379, 8388607
      %v3381 = vor.u32 %v3380, 8388608
      %v3382 = vsub.s32 0, %v3381
      %v3383 = vadd.s32 %v3378, 1
      %vm3384 = vcmp.gt.s32.totalorder %v3383, 0
      %v3385 = vsel %vm3384, %v3383, 0
      %v3386 = vshrl.u32 %v3385, 5
      %v3387 = vand.u32 %v3385, 31
      %v3388 = vsub.s32 32, %v3387
      %v3389 = vshrl.u32 683565275, %v3388
      %v3390 = vshll.u32 683565275, %v3387
      %v3391 = vshrl.u32 2475754826, %v3388
      %v3392 = vor.u32 %v3390, %v3391
      %v3393 = vshll.u32 2475754826, %v3387
      %v3394 = vshrl.u32 2131351028, %v3388
      %v3395 = vor.u32 %v3393, %v3394
      %v3396 = vshll.u32 2131351028, %v3387
      %v3397 = vshrl.u32 2102212464, %v3388
      %v3398 = vor.u32 %v3396, %v3397
      %v3399 = vshll.u32 2102212464, %v3387
      %v3400 = vshrl.u32 920167782, %v3388
      %v3401 = vor.u32 %v3399, %v3400
      %v3402 = vshll.u32 920167782, %v3387
      %v3403 = vshrl.u32 1326507024, %v3388
      %v3404 = vor.u32 %v3402, %v3403
      %vm3405 = vcmp.lt.s32.totalorder %v3386, 1
      %vm3406 = vcmp.lt.s32.totalorder %v3386, 2
      %vm3407 = vcmp.lt.s32.totalorder %v3386, 3
      %vm3408 = vcmp.lt.s32.totalorder %v3386, 4
      %v3409 = vsel %vm3405, %v3389, %v3392
      %v3410 = vsel %vm3408, %v3398, 2102212464
      %v3411 = vsel %vm3407, %v3395, %v3410
      %v3412 = vsel %vm3406, %v3409, %v3411
      %v3413 = vsel %vm3405, %v3392, %v3395
      %v3414 = vsel %vm3408, %v3401, 920167782
      %v3415 = vsel %vm3407, %v3398, %v3414
      %v3416 = vsel %vm3406, %v3413, %v3415
      %v3417 = vsel %vm3405, %v3395, %v3398
      %v3418 = vsel %vm3408, %v3404, 1326507024
      %v3419 = vsel %vm3407, %v3401, %v3418
      %v3420 = vsel %vm3406, %v3417, %v3419
      %v3421 = vshll.u32 %v3381, 8
      %v3422 = vand.u32 %v3421, 65535
      %v3423 = vshrl.u32 %v3421, 16
      %v3424 = vand.u32 %v3420, 65535
      %v3425 = vshrl.u32 %v3420, 16
      %v3426 = vmul.u32 %v3422, %v3424
      %v3427 = vmul.u32 %v3422, %v3425
      %v3428 = vmul.u32 %v3423, %v3424
      %v3429 = vmul.u32 %v3423, %v3425
      %v3430 = vshll.u32 %v3427, 16
      %v3431 = vshrl.u32 %v3427, 16
      %v3432 = vshll.u32 %v3428, 16
      %v3433 = vshrl.u32 %v3428, 16
      %vm3434 = vc.u32 %v3426, %v3430
      %v3435 = vsel %vm3434, 1, 0
      %v3436 = vadd.s32 %v3426, %v3430
      %v3437 = vadd.s32 %v3429, %v3435
      %vm3438 = vc.u32 %v3436, %v3432
      %v3439 = vsel %vm3438, 1, 0
      %v3440 = vadd.s32 %v3436, %v3432
      %v3441 = vadd.s32 %v3437, %v3439
      %v3442 = vadd.s32 %v3441, %v3431
      %v3443 = vadd.s32 %v3442, %v3433
      %v3444 = vand.u32 %v3421, 65535
      %v3445 = vshrl.u32 %v3421, 16
      %v3446 = vand.u32 %v3416, 65535
      %v3447 = vshrl.u32 %v3416, 16
      %v3448 = vmul.u32 %v3444, %v3446
      %v3449 = vmul.u32 %v3444, %v3447
      %v3450 = vmul.u32 %v3445, %v3446
      %v3451 = vmul.u32 %v3445, %v3447
      %v3452 = vshll.u32 %v3449, 16
      %v3453 = vshrl.u32 %v3449, 16
      %v3454 = vshll.u32 %v3450, 16
      %v3455 = vshrl.u32 %v3450, 16
      %vm3456 = vc.u32 %v3448, %v3452
      %v3457 = vsel %vm3456, 1, 0
      %v3458 = vadd.s32 %v3448, %v3452
      %v3459 = vadd.s32 %v3451, %v3457
      %vm3460 = vc.u32 %v3458, %v3454
      %v3461 = vsel %vm3460, 1, 0
      %v3462 = vadd.s32 %v3458, %v3454
      %v3463 = vadd.s32 %v3459, %v3461
      %v3464 = vadd.s32 %v3463, %v3453
      %v3465 = vadd.s32 %v3464, %v3455
      %v3466 = vmul.u32 %v3421, %v3412
      %v3467 = vadd.s32 %v3443, %v3462
      %vm3468 = vc.u32 %v3443, %v3462
      %v3469 = vadd.s32 %v3465, 1
      %v3470 = vsel %vm3468, %v3469, %v3465
      %v3471 = vadd.s32 %v3466, %v3470
      %v3472 = vadd.s32 %v3471, 536870912
      %v3473 = vshrl.u32 %v3472, 30
      %v3474 = vshll.u32 %v3473, 30
      %v3475 = vsub.s32 %v3471, %v3474
      %vm3476 = vcmp.lt.s32.totalorder %v3475, 0
      %v3477 = vsub.s32 0, %v3475
      %v3478 = vsel %vm3476, %v3477, %v3475
      %v3479 = vclz %v3478
      %v3480 = vsub.s32 %v3479, 2
      %vm3481 = vcmp.gt.s32.totalorder 0, %v3480
      %v3482 = vsel %vm3481, 0, %v3480
      %v3483 = vsub.s32 32, %v3482
      %v3484 = vshll.u32 %v3475, %v3482
      %v3485 = vshrl.u32 %v3467, %v3483
      %v3486 = vor.u32 %v3484, %v3485
      %v3487 = vsub.s32 4294967266, %v3482
      %v3488 = vadd.s32 %v3487, 127
      %v3489 = vshll.u32 %v3488, 23
      %v3490 = vor.u32 4788187, %v3489
      %v3491 = vand.u32 2147483647, %v3490
      %v3493 = vcvt.s32.f32 %v3486
      %v3494 = vmul.f32 %v3493, %v3491
      %v3495 = vxor.u32 %v3494, 2147483648
      %v3496 = vsel %vm3375, %v3495, %v3494
      %v3497 = vsub.s32 4, %v3473
      %v3498 = vsel %vm3375, %v3497, %v3473
      %v3499 = vsel %vm3374, %v238, %v3496
      %v3500 = vsel %vm3374, 0, %v3498
      %v3501 = vmul.f32 %v3499, %v3499
      %v3502 = vmul.f32 %v3501, -0.001358992
      %v3503 = vadd.f32 %v3502, 0.041655596
      %v3504 = vmul.f32 %v3501, %v3503
      %v3505 = vadd.f32 %v3504, -0.4999988
      %v3506 = vmul.f32 %v3501, %v3505
      %v3507 = vadd.f32 1.0, %v3506
      %v3508 = vmul.f32 %v3499, %v3499
      %v3509 = vmul.f32 %v3508, -0.00019511016
      %v3510 = vadd.f32 %v3509, 0.008332121
      %v3511 = vmul.f32 %v3508, %v3510
      %v3512 = vadd.f32 %v3511, -0.16666654
      %v3513 = vmul.f32 %v3508, %v3512
      %v3514 = vadd.f32 %v3513, 1.0
      %v3515 = vmul.f32 %v3514, %v3499
      %vm3516 = vweird.f32 %v238
      %v3517 = vadd.s32 %v3500, 3
      %v3518 = vand.u32 %v3517, 3
      %vm3519 = vcmp.lt.s32.totalorder %v3518, 2
      %vm3520 = vcmp.eq.s32.totalorder %v3518, 0
      %v3521 = vxor.u32 %v3515, 2147483648
      %v3522 = vsel %vm3520, %v3507, %v3521
      %vm3523 = vcmp.eq.s32.totalorder %v3518, 2
      %v3524 = vxor.u32 %v3507, 2147483648
      %v3525 = vsel %vm3523, %v3524, %v3515
      %v3526 = vsel %vm3519, %v3522, %v3525
      %v3527 = vsel %vm3516, nan, %v3526
      %v3528 = vand.u32 2147483647, %v241
      %vm3529 = vcmp.le.f32.partialorder %v3528, 0.7853982
      %vm3530 = vcmp.lt.s32.totalorder %v241, 0
      %v3531 = vand.u32 %v241, 2139095040
      %v3532 = vshrl.u32 %v3531, 23
      %v3533 = vsub.s32 %v3532, 127
      %v3534 = vand.u32 2147483647, %v241
      %v3535 = vand.u32 %v3534, 8388607
      %v3536 = vor.u32 %v3535, 8388608
      %v3537 = vsub.s32 0, %v3536
      %v3538 = vadd.s32 %v3533, 1
      %vm3539 = vcmp.gt.s32.totalorder %v3538, 0
      %v3540 = vsel %vm3539, %v3538, 0
      %v3541 = vshrl.u32 %v3540, 5
      %v3542 = vand.u32 %v3540, 31
      %v3543 = vsub.s32 32, %v3542
      %v3544 = vshrl.u32 683565275, %v3543
      %v3545 = vshll.u32 683565275, %v3542
      %v3546 = vshrl.u32 2475754826, %v3543
      %v3547 = vor.u32 %v3545, %v3546
      %v3548 = vshll.u32 2475754826, %v3542
      %v3549 = vshrl.u32 2131351028, %v3543
      %v3550 = vor.u32 %v3548, %v3549
      %v3551 = vshll.u32 2131351028, %v3542
      %v3552 = vshrl.u32 2102212464, %v3543
      %v3553 = vor.u32 %v3551, %v3552
      %v3554 = vshll.u32 2102212464, %v3542
      %v3555 = vshrl.u32 920167782, %v3543
      %v3556 = vor.u32 %v3554, %v3555
      %v3557 = vshll.u32 920167782, %v3542
      %v3558 = vshrl.u32 1326507024, %v3543
      %v3559 = vor.u32 %v3557, %v3558
      %vm3560 = vcmp.lt.s32.totalorder %v3541, 1
      %vm3561 = vcmp.lt.s32.totalorder %v3541, 2
      %vm3562 = vcmp.lt.s32.totalorder %v3541, 3
      %vm3563 = vcmp.lt.s32.totalorder %v3541, 4
      %v3564 = vsel %vm3560, %v3544, %v3547
      %v3565 = vsel %vm3563, %v3553, 2102212464
      %v3566 = vsel %vm3562, %v3550, %v3565
      %v3567 = vsel %vm3561, %v3564, %v3566
      %v3568 = vsel %vm3560, %v3547, %v3550
      %v3569 = vsel %vm3563, %v3556, 920167782
      %v3570 = vsel %vm3562, %v3553, %v3569
      %v3571 = vsel %vm3561, %v3568, %v3570
      %v3572 = vsel %vm3560, %v3550, %v3553
      %v3573 = vsel %vm3563, %v3559, 1326507024
      %v3574 = vsel %vm3562, %v3556, %v3573
      %v3575 = vsel %vm3561, %v3572, %v3574
      %v3576 = vshll.u32 %v3536, 8
      %v3577 = vand.u32 %v3576, 65535
      %v3578 = vshrl.u32 %v3576, 16
      %v3579 = vand.u32 %v3575, 65535
      %v3580 = vshrl.u32 %v3575, 16
      %v3581 = vmul.u32 %v3577, %v3579
      %v3582 = vmul.u32 %v3577, %v3580
      %v3583 = vmul.u32 %v3578, %v3579
      %v3584 = vmul.u32 %v3578, %v3580
      %v3585 = vshll.u32 %v3582, 16
      %v3586 = vshrl.u32 %v3582, 16
      %v3587 = vshll.u32 %v3583, 16
      %v3588 = vshrl.u32 %v3583, 16
      %vm3589 = vc.u32 %v3581, %v3585
      %v3590 = vsel %vm3589, 1, 0
      %v3591 = vadd.s32 %v3581, %v3585
      %v3592 = vadd.s32 %v3584, %v3590
      %vm3593 = vc.u32 %v3591, %v3587
      %v3594 = vsel %vm3593, 1, 0
      %v3595 = vadd.s32 %v3591, %v3587
      %v3596 = vadd.s32 %v3592, %v3594
      %v3597 = vadd.s32 %v3596, %v3586
      %v3598 = vadd.s32 %v3597, %v3588
      %v3599 = vand.u32 %v3576, 65535
      %v3600 = vshrl.u32 %v3576, 16
      %v3601 = vand.u32 %v3571, 65535
      %v3602 = vshrl.u32 %v3571, 16
      %v3603 = vmul.u32 %v3599, %v3601
      %v3604 = vmul.u32 %v3599, %v3602
      %v3605 = vmul.u32 %v3600, %v3601
      %v3606 = vmul.u32 %v3600, %v3602
      %v3607 = vshll.u32 %v3604, 16
      %v3608 = vshrl.u32 %v3604, 16
      %v3609 = vshll.u32 %v3605, 16
      %v3610 = vshrl.u32 %v3605, 16
      %vm3611 = vc.u32 %v3603, %v3607
      %v3612 = vsel %vm3611, 1, 0
      %v3613 = vadd.s32 %v3603, %v3607
      %v3614 = vadd.s32 %v3606, %v3612
      %vm3615 = vc.u32 %v3613, %v3609
      %v3616 = vsel %vm3615, 1, 0
      %v3617 = vadd.s32 %v3613, %v3609
      %v3618 = vadd.s32 %v3614, %v3616
      %v3619 = vadd.s32 %v3618, %v3608
      %v3620 = vadd.s32 %v3619, %v3610
      %v3621 = vmul.u32 %v3576, %v3567
      %v3622 = vadd.s32 %v3598, %v3617
      %vm3623 = vc.u32 %v3598, %v3617
      %v3624 = vadd.s32 %v3620, 1
      %v3625 = vsel %vm3623, %v3624, %v3620
      %v3626 = vadd.s32 %v3621, %v3625
      %v3627 = vadd.s32 %v3626, 536870912
      %v3628 = vshrl.u32 %v3627, 30
      %v3629 = vshll.u32 %v3628, 30
      %v3630 = vsub.s32 %v3626, %v3629
      %vm3631 = vcmp.lt.s32.totalorder %v3630, 0
      %v3632 = vsub.s32 0, %v3630
      %v3633 = vsel %vm3631, %v3632, %v3630
      %v3634 = vclz %v3633
      %v3635 = vsub.s32 %v3634, 2
      %vm3636 = vcmp.gt.s32.totalorder 0, %v3635
      %v3637 = vsel %vm3636, 0, %v3635
      %v3638 = vsub.s32 32, %v3637
      %v3639 = vshll.u32 %v3630, %v3637
      %v3640 = vshrl.u32 %v3622, %v3638
      %v3641 = vor.u32 %v3639, %v3640
      %v3642 = vsub.s32 4294967266, %v3637
      %v3643 = vadd.s32 %v3642, 127
      %v3644 = vshll.u32 %v3643, 23
      %v3645 = vor.u32 4788187, %v3644
      %v3646 = vand.u32 2147483647, %v3645
      %v3648 = vcvt.s32.f32 %v3641
      %v3649 = vmul.f32 %v3648, %v3646
      %v3650 = vxor.u32 %v3649, 2147483648
      %v3651 = vsel %vm3530, %v3650, %v3649
      %v3652 = vsub.s32 4, %v3628
      %v3653 = vsel %vm3530, %v3652, %v3628
      %v3654 = vsel %vm3529, %v241, %v3651
      %v3655 = vsel %vm3529, 0, %v3653
      %v3656 = vmul.f32 %v3654, %v3654
      %v3657 = vmul.f32 %v3656, -0.001358992
      %v3658 = vadd.f32 %v3657, 0.041655596
      %v3659 = vmul.f32 %v3656, %v3658
      %v3660 = vadd.f32 %v3659, -0.4999988
      %v3661 = vmul.f32 %v3656, %v3660
      %v3662 = vadd.f32 1.0, %v3661
      %v3663 = vmul.f32 %v3654, %v3654
      %v3664 = vmul.f32 %v3663, -0.00019511016
      %v3665 = vadd.f32 %v3664, 0.008332121
      %v3666 = vmul.f32 %v3663, %v3665
      %v3667 = vadd.f32 %v3666, -0.16666654
      %v3668 = vmul.f32 %v3663, %v3667
      %v3669 = vadd.f32 %v3668, 1.0
      %v3670 = vmul.f32 %v3669, %v3654
      %vm3671 = vweird.f32 %v241
      %v3672 = vadd.s32 %v3655, 3
      %v3673 = vand.u32 %v3672, 3
      %vm3674 = vcmp.lt.s32.totalorder %v3673, 2
      %vm3675 = vcmp.eq.s32.totalorder %v3673, 0
      %v3676 = vxor.u32 %v3670, 2147483648
      %v3677 = vsel %vm3675, %v3662, %v3676
      %vm3678 = vcmp.eq.s32.totalorder %v3673, 2
      %v3679 = vxor.u32 %v3662, 2147483648
      %v3680 = vsel %vm3678, %v3679, %v3670
      %v3681 = vsel %vm3674, %v3677, %v3680
      %v3682 = vsel %vm3671, nan, %v3681
      %v3683 = vand.u32 2147483647, %v244
      %vm3684 = vcmp.le.f32.partialorder %v3683, 0.7853982
      %vm3685 = vcmp.lt.s32.totalorder %v244, 0
      %v3686 = vand.u32 %v244, 2139095040
      %v3687 = vshrl.u32 %v3686, 23
      %v3688 = vsub.s32 %v3687, 127
      %v3689 = vand.u32 2147483647, %v244
      %v3690 = vand.u32 %v3689, 8388607
      %v3691 = vor.u32 %v3690, 8388608
      %v3692 = vsub.s32 0, %v3691
      %v3693 = vadd.s32 %v3688, 1
      %vm3694 = vcmp.gt.s32.totalorder %v3693, 0
      %v3695 = vsel %vm3694, %v3693, 0
      %v3696 = vshrl.u32 %v3695, 5
      %v3697 = vand.u32 %v3695, 31
      %v3698 = vsub.s32 32, %v3697
      %v3699 = vshrl.u32 683565275, %v3698
      %v3700 = vshll.u32 683565275, %v3697
      %v3701 = vshrl.u32 2475754826, %v3698
      %v3702 = vor.u32 %v3700, %v3701
      %v3703 = vshll.u32 2475754826, %v3697
      %v3704 = vshrl.u32 2131351028, %v3698
      %v3705 = vor.u32 %v3703, %v3704
      %v3706 = vshll.u32 2131351028, %v3697
      %v3707 = vshrl.u32 2102212464, %v3698
      %v3708 = vor.u32 %v3706, %v3707
      %v3709 = vshll.u32 2102212464, %v3697
      %v3710 = vshrl.u32 920167782, %v3698
      %v3711 = vor.u32 %v3709, %v3710
      %v3712 = vshll.u32 920167782, %v3697
      %v3713 = vshrl.u32 1326507024, %v3698
      %v3714 = vor.u32 %v3712, %v3713
      %vm3715 = vcmp.lt.s32.totalorder %v3696, 1
      %vm3716 = vcmp.lt.s32.totalorder %v3696, 2
      %vm3717 = vcmp.lt.s32.totalorder %v3696, 3
      %vm3718 = vcmp.lt.s32.totalorder %v3696, 4
      %v3719 = vsel %vm3715, %v3699, %v3702
      %v3720 = vsel %vm3718, %v3708, 2102212464
      %v3721 = vsel %vm3717, %v3705, %v3720
      %v3722 = vsel %vm3716, %v3719, %v3721
      %v3723 = vsel %vm3715, %v3702, %v3705
      %v3724 = vsel %vm3718, %v3711, 920167782
      %v3725 = vsel %vm3717, %v3708, %v3724
      %v3726 = vsel %vm3716, %v3723, %v3725
      %v3727 = vsel %vm3715, %v3705, %v3708
      %v3728 = vsel %vm3718, %v3714, 1326507024
      %v3729 = vsel %vm3717, %v3711, %v3728
      %v3730 = vsel %vm3716, %v3727, %v3729
      %v3731 = vshll.u32 %v3691, 8
      %v3732 = vand.u32 %v3731, 65535
      %v3733 = vshrl.u32 %v3731, 16
      %v3734 = vand.u32 %v3730, 65535
      %v3735 = vshrl.u32 %v3730, 16
      %v3736 = vmul.u32 %v3732, %v3734
      %v3737 = vmul.u32 %v3732, %v3735
      %v3738 = vmul.u32 %v3733, %v3734
      %v3739 = vmul.u32 %v3733, %v3735
      %v3740 = vshll.u32 %v3737, 16
      %v3741 = vshrl.u32 %v3737, 16
      %v3742 = vshll.u32 %v3738, 16
      %v3743 = vshrl.u32 %v3738, 16
      %vm3744 = vc.u32 %v3736, %v3740
      %v3745 = vsel %vm3744, 1, 0
      %v3746 = vadd.s32 %v3736, %v3740
      %v3747 = vadd.s32 %v3739, %v3745
      %vm3748 = vc.u32 %v3746, %v3742
      %v3749 = vsel %vm3748, 1, 0
      %v3750 = vadd.s32 %v3746, %v3742
      %v3751 = vadd.s32 %v3747, %v3749
      %v3752 = vadd.s32 %v3751, %v3741
      %v3753 = vadd.s32 %v3752, %v3743
      %v3754 = vand.u32 %v3731, 65535
      %v3755 = vshrl.u32 %v3731, 16
      %v3756 = vand.u32 %v3726, 65535
      %v3757 = vshrl.u32 %v3726, 16
      %v3758 = vmul.u32 %v3754, %v3756
      %v3759 = vmul.u32 %v3754, %v3757
      %v3760 = vmul.u32 %v3755, %v3756
      %v3761 = vmul.u32 %v3755, %v3757
      %v3762 = vshll.u32 %v3759, 16
      %v3763 = vshrl.u32 %v3759, 16
      %v3764 = vshll.u32 %v3760, 16
      %v3765 = vshrl.u32 %v3760, 16
      %vm3766 = vc.u32 %v3758, %v3762
      %v3767 = vsel %vm3766, 1, 0
      %v3768 = vadd.s32 %v3758, %v3762
      %v3769 = vadd.s32 %v3761, %v3767
      %vm3770 = vc.u32 %v3768, %v3764
      %v3771 = vsel %vm3770, 1, 0
      %v3772 = vadd.s32 %v3768, %v3764
      %v3773 = vadd.s32 %v3769, %v3771
      %v3774 = vadd.s32 %v3773, %v3763
      %v3775 = vadd.s32 %v3774, %v3765
      %v3776 = vmul.u32 %v3731, %v3722
      %v3777 = vadd.s32 %v3753, %v3772
      %vm3778 = vc.u32 %v3753, %v3772
      %v3779 = vadd.s32 %v3775, 1
      %v3780 = vsel %vm3778, %v3779, %v3775
      %v3781 = vadd.s32 %v3776, %v3780
      %v3782 = vadd.s32 %v3781, 536870912
      %v3783 = vshrl.u32 %v3782, 30
      %v3784 = vshll.u32 %v3783, 30
      %v3785 = vsub.s32 %v3781, %v3784
      %vm3786 = vcmp.lt.s32.totalorder %v3785, 0
      %v3787 = vsub.s32 0, %v3785
      %v3788 = vsel %vm3786, %v3787, %v3785
      %v3789 = vclz %v3788
      %v3790 = vsub.s32 %v3789, 2
      %vm3791 = vcmp.gt.s32.totalorder 0, %v3790
      %v3792 = vsel %vm3791, 0, %v3790
      %v3793 = vsub.s32 32, %v3792
      %v3794 = vshll.u32 %v3785, %v3792
      %v3795 = vshrl.u32 %v3777, %v3793
      %v3796 = vor.u32 %v3794, %v3795
      %v3797 = vsub.s32 4294967266, %v3792
      %v3798 = vadd.s32 %v3797, 127
      %v3799 = vshll.u32 %v3798, 23
      %v3800 = vor.u32 4788187, %v3799
      %v3801 = vand.u32 2147483647, %v3800
      %v3803 = vcvt.s32.f32 %v3796
      %v3804 = vmul.f32 %v3803, %v3801
      %v3805 = vxor.u32 %v3804, 2147483648
      %v3806 = vsel %vm3685, %v3805, %v3804
      %v3807 = vsub.s32 4, %v3783
      %v3808 = vsel %vm3685, %v3807, %v3783
      %v3809 = vsel %vm3684, %v244, %v3806
      %v3810 = vsel %vm3684, 0, %v3808
      %v3811 = vmul.f32 %v3809, %v3809
      %v3812 = vmul.f32 %v3811, -0.001358992
      %v3813 = vadd.f32 %v3812, 0.041655596
      %v3814 = vmul.f32 %v3811, %v3813
      %v3815 = vadd.f32 %v3814, -0.4999988
      %v3816 = vmul.f32 %v3811, %v3815
      %v3817 = vadd.f32 1.0, %v3816
      %v3818 = vmul.f32 %v3809, %v3809
      %v3819 = vmul.f32 %v3818, -0.00019511016
      %v3820 = vadd.f32 %v3819, 0.008332121
      %v3821 = vmul.f32 %v3818, %v3820
      %v3822 = vadd.f32 %v3821, -0.16666654
      %v3823 = vmul.f32 %v3818, %v3822
      %v3824 = vadd.f32 %v3823, 1.0
      %v3825 = vmul.f32 %v3824, %v3809
      %vm3826 = vweird.f32 %v244
      %v3827 = vadd.s32 %v3810, 3
      %v3828 = vand.u32 %v3827, 3
      %vm3829 = vcmp.lt.s32.totalorder %v3828, 2
      %vm3830 = vcmp.eq.s32.totalorder %v3828, 0
      %v3831 = vxor.u32 %v3825, 2147483648
      %v3832 = vsel %vm3830, %v3817, %v3831
      %vm3833 = vcmp.eq.s32.totalorder %v3828, 2
      %v3834 = vxor.u32 %v3817, 2147483648
      %v3835 = vsel %vm3833, %v3834, %v3825
      %v3836 = vsel %vm3829, %v3832, %v3835
      %v3837 = vsel %vm3826, nan, %v3836
      %v3838 = vand.u32 2147483647, %v247
      %vm3839 = vcmp.le.f32.partialorder %v3838, 0.7853982
      %vm3840 = vcmp.lt.s32.totalorder %v247, 0
      %v3841 = vand.u32 %v247, 2139095040
      %v3842 = vshrl.u32 %v3841, 23
      %v3843 = vsub.s32 %v3842, 127
      %v3844 = vand.u32 2147483647, %v247
      %v3845 = vand.u32 %v3844, 8388607
      %v3846 = vor.u32 %v3845, 8388608
      %v3847 = vsub.s32 0, %v3846
      %v3848 = vadd.s32 %v3843, 1
      %vm3849 = vcmp.gt.s32.totalorder %v3848, 0
      %v3850 = vsel %vm3849, %v3848, 0
      %v3851 = vshrl.u32 %v3850, 5
      %v3852 = vand.u32 %v3850, 31
      %v3853 = vsub.s32 32, %v3852
      %v3854 = vshrl.u32 683565275, %v3853
      %v3855 = vshll.u32 683565275, %v3852
      %v3856 = vshrl.u32 2475754826, %v3853
      %v3857 = vor.u32 %v3855, %v3856
      %v3858 = vshll.u32 2475754826, %v3852
      %v3859 = vshrl.u32 2131351028, %v3853
      %v3860 = vor.u32 %v3858, %v3859
      %v3861 = vshll.u32 2131351028, %v3852
      %v3862 = vshrl.u32 2102212464, %v3853
      %v3863 = vor.u32 %v3861, %v3862
      %v3864 = vshll.u32 2102212464, %v3852
      %v3865 = vshrl.u32 920167782, %v3853
      %v3866 = vor.u32 %v3864, %v3865
      %v3867 = vshll.u32 920167782, %v3852
      %v3868 = vshrl.u32 1326507024, %v3853
      %v3869 = vor.u32 %v3867, %v3868
      %vm3870 = vcmp.lt.s32.totalorder %v3851, 1
      %vm3871 = vcmp.lt.s32.totalorder %v3851, 2
      %vm3872 = vcmp.lt.s32.totalorder %v3851, 3
      %vm3873 = vcmp.lt.s32.totalorder %v3851, 4
      %v3874 = vsel %vm3870, %v3854, %v3857
      %v3875 = vsel %vm3873, %v3863, 2102212464
      %v3876 = vsel %vm3872, %v3860, %v3875
      %v3877 = vsel %vm3871, %v3874, %v3876
      %v3878 = vsel %vm3870, %v3857, %v3860
      %v3879 = vsel %vm3873, %v3866, 920167782
      %v3880 = vsel %vm3872, %v3863, %v3879
      %v3881 = vsel %vm3871, %v3878, %v3880
      %v3882 = vsel %vm3870, %v3860, %v3863
      %v3883 = vsel %vm3873, %v3869, 1326507024
      %v3884 = vsel %vm3872, %v3866, %v3883
      %v3885 = vsel %vm3871, %v3882, %v3884
      %v3886 = vshll.u32 %v3846, 8
      %v3887 = vand.u32 %v3886, 65535
      %v3888 = vshrl.u32 %v3886, 16
      %v3889 = vand.u32 %v3885, 65535
      %v3890 = vshrl.u32 %v3885, 16
      %v3891 = vmul.u32 %v3887, %v3889
      %v3892 = vmul.u32 %v3887, %v3890
      %v3893 = vmul.u32 %v3888, %v3889
      %v3894 = vmul.u32 %v3888, %v3890
      %v3895 = vshll.u32 %v3892, 16
      %v3896 = vshrl.u32 %v3892, 16
      %v3897 = vshll.u32 %v3893, 16
      %v3898 = vshrl.u32 %v3893, 16
      %vm3899 = vc.u32 %v3891, %v3895
      %v3900 = vsel %vm3899, 1, 0
      %v3901 = vadd.s32 %v3891, %v3895
      %v3902 = vadd.s32 %v3894, %v3900
      %vm3903 = vc.u32 %v3901, %v3897
      %v3904 = vsel %vm3903, 1, 0
      %v3905 = vadd.s32 %v3901, %v3897
      %v3906 = vadd.s32 %v3902, %v3904
      %v3907 = vadd.s32 %v3906, %v3896
      %v3908 = vadd.s32 %v3907, %v3898
      %v3909 = vand.u32 %v3886, 65535
      %v3910 = vshrl.u32 %v3886, 16
      %v3911 = vand.u32 %v3881, 65535
      %v3912 = vshrl.u32 %v3881, 16
      %v3913 = vmul.u32 %v3909, %v3911
      %v3914 = vmul.u32 %v3909, %v3912
      %v3915 = vmul.u32 %v3910, %v3911
      %v3916 = vmul.u32 %v3910, %v3912
      %v3917 = vshll.u32 %v3914, 16
      %v3918 = vshrl.u32 %v3914, 16
      %v3919 = vshll.u32 %v3915, 16
      %v3920 = vshrl.u32 %v3915, 16
      %vm3921 = vc.u32 %v3913, %v3917
      %v3922 = vsel %vm3921, 1, 0
      %v3923 = vadd.s32 %v3913, %v3917
      %v3924 = vadd.s32 %v3916, %v3922
      %vm3925 = vc.u32 %v3923, %v3919
      %v3926 = vsel %vm3925, 1, 0
      %v3927 = vadd.s32 %v3923, %v3919
      %v3928 = vadd.s32 %v3924, %v3926
      %v3929 = vadd.s32 %v3928, %v3918
      %v3930 = vadd.s32 %v3929, %v3920
      %v3931 = vmul.u32 %v3886, %v3877
      %v3932 = vadd.s32 %v3908, %v3927
      %vm3933 = vc.u32 %v3908, %v3927
      %v3934 = vadd.s32 %v3930, 1
      %v3935 = vsel %vm3933, %v3934, %v3930
      %v3936 = vadd.s32 %v3931, %v3935
      %v3937 = vadd.s32 %v3936, 536870912
      %v3938 = vshrl.u32 %v3937, 30
      %v3939 = vshll.u32 %v3938, 30
      %v3940 = vsub.s32 %v3936, %v3939
      %vm3941 = vcmp.lt.s32.totalorder %v3940, 0
      %v3942 = vsub.s32 0, %v3940
      %v3943 = vsel %vm3941, %v3942, %v3940
      %v3944 = vclz %v3943
      %v3945 = vsub.s32 %v3944, 2
      %vm3946 = vcmp.gt.s32.totalorder 0, %v3945
      %v3947 = vsel %vm3946, 0, %v3945
      %v3948 = vsub.s32 32, %v3947
      %v3949 = vshll.u32 %v3940, %v3947
      %v3950 = vshrl.u32 %v3932, %v3948
      %v3951 = vor.u32 %v3949, %v3950
      %v3952 = vsub.s32 4294967266, %v3947
      %v3953 = vadd.s32 %v3952, 127
      %v3954 = vshll.u32 %v3953, 23
      %v3955 = vor.u32 4788187, %v3954
      %v3956 = vand.u32 2147483647, %v3955
      %v3958 = vcvt.s32.f32 %v3951
      %v3959 = vmul.f32 %v3958, %v3956
      %v3960 = vxor.u32 %v3959, 2147483648
      %v3961 = vsel %vm3840, %v3960, %v3959
      %v3962 = vsub.s32 4, %v3938
      %v3963 = vsel %vm3840, %v3962, %v3938
      %v3964 = vsel %vm3839, %v247, %v3961
      %v3965 = vsel %vm3839, 0, %v3963
      %v3966 = vmul.f32 %v3964, %v3964
      %v3967 = vmul.f32 %v3966, -0.001358992
      %v3968 = vadd.f32 %v3967, 0.041655596
      %v3969 = vmul.f32 %v3966, %v3968
      %v3970 = vadd.f32 %v3969, -0.4999988
      %v3971 = vmul.f32 %v3966, %v3970
      %v3972 = vadd.f32 1.0, %v3971
      %v3973 = vmul.f32 %v3964, %v3964
      %v3974 = vmul.f32 %v3973, -0.00019511016
      %v3975 = vadd.f32 %v3974, 0.008332121
      %v3976 = vmul.f32 %v3973, %v3975
      %v3977 = vadd.f32 %v3976, -0.16666654
      %v3978 = vmul.f32 %v3973, %v3977
      %v3979 = vadd.f32 %v3978, 1.0
      %v3980 = vmul.f32 %v3979, %v3964
      %vm3981 = vweird.f32 %v247
      %v3982 = vadd.s32 %v3965, 3
      %v3983 = vand.u32 %v3982, 3
      %vm3984 = vcmp.lt.s32.totalorder %v3983, 2
      %vm3985 = vcmp.eq.s32.totalorder %v3983, 0
      %v3986 = vxor.u32 %v3980, 2147483648
      %v3987 = vsel %vm3985, %v3972, %v3986
      %vm3988 = vcmp.eq.s32.totalorder %v3983, 2
      %v3989 = vxor.u32 %v3972, 2147483648
      %v3990 = vsel %vm3988, %v3989, %v3980
      %v3991 = vsel %vm3984, %v3987, %v3990
      %v3992 = vsel %vm3981, nan, %v3991
      %v3993 = vand.u32 2147483647, %v250
      %vm3994 = vcmp.le.f32.partialorder %v3993, 0.7853982
      %vm3995 = vcmp.lt.s32.totalorder %v250, 0
      %v3996 = vand.u32 %v250, 2139095040
      %v3997 = vshrl.u32 %v3996, 23
      %v3998 = vsub.s32 %v3997, 127
      %v3999 = vand.u32 2147483647, %v250
      %v4000 = vand.u32 %v3999, 8388607
      %v4001 = vor.u32 %v4000, 8388608
      %v4002 = vsub.s32 0, %v4001
      %v4003 = vadd.s32 %v3998, 1
      %vm4004 = vcmp.gt.s32.totalorder %v4003, 0
      %v4005 = vsel %vm4004, %v4003, 0
      %v4006 = vshrl.u32 %v4005, 5
      %v4007 = vand.u32 %v4005, 31
      %v4008 = vsub.s32 32, %v4007
      %v4009 = vshrl.u32 683565275, %v4008
      %v4010 = vshll.u32 683565275, %v4007
      %v4011 = vshrl.u32 2475754826, %v4008
      %v4012 = vor.u32 %v4010, %v4011
      %v4013 = vshll.u32 2475754826, %v4007
      %v4014 = vshrl.u32 2131351028, %v4008
      %v4015 = vor.u32 %v4013, %v4014
      %v4016 = vshll.u32 2131351028, %v4007
      %v4017 = vshrl.u32 2102212464, %v4008
      %v4018 = vor.u32 %v4016, %v4017
      %v4019 = vshll.u32 2102212464, %v4007
      %v4020 = vshrl.u32 920167782, %v4008
      %v4021 = vor.u32 %v4019, %v4020
      %v4022 = vshll.u32 920167782, %v4007
      %v4023 = vshrl.u32 1326507024, %v4008
      %v4024 = vor.u32 %v4022, %v4023
      %vm4025 = vcmp.lt.s32.totalorder %v4006, 1
      %vm4026 = vcmp.lt.s32.totalorder %v4006, 2
      %vm4027 = vcmp.lt.s32.totalorder %v4006, 3
      %vm4028 = vcmp.lt.s32.totalorder %v4006, 4
      %v4029 = vsel %vm4025, %v4009, %v4012
      %v4030 = vsel %vm4028, %v4018, 2102212464
      %v4031 = vsel %vm4027, %v4015, %v4030
      %v4032 = vsel %vm4026, %v4029, %v4031
      %v4033 = vsel %vm4025, %v4012, %v4015
      %v4034 = vsel %vm4028, %v4021, 920167782
      %v4035 = vsel %vm4027, %v4018, %v4034
      %v4036 = vsel %vm4026, %v4033, %v4035
      %v4037 = vsel %vm4025, %v4015, %v4018
      %v4038 = vsel %vm4028, %v4024, 1326507024
      %v4039 = vsel %vm4027, %v4021, %v4038
      %v4040 = vsel %vm4026, %v4037, %v4039
      %v4041 = vshll.u32 %v4001, 8
      %v4042 = vand.u32 %v4041, 65535
      %v4043 = vshrl.u32 %v4041, 16
      %v4044 = vand.u32 %v4040, 65535
      %v4045 = vshrl.u32 %v4040, 16
      %v4046 = vmul.u32 %v4042, %v4044
      %v4047 = vmul.u32 %v4042, %v4045
      %v4048 = vmul.u32 %v4043, %v4044
      %v4049 = vmul.u32 %v4043, %v4045
      %v4050 = vshll.u32 %v4047, 16
      %v4051 = vshrl.u32 %v4047, 16
      %v4052 = vshll.u32 %v4048, 16
      %v4053 = vshrl.u32 %v4048, 16
      %vm4054 = vc.u32 %v4046, %v4050
      %v4055 = vsel %vm4054, 1, 0
      %v4056 = vadd.s32 %v4046, %v4050
      %v4057 = vadd.s32 %v4049, %v4055
      %vm4058 = vc.u32 %v4056, %v4052
      %v4059 = vsel %vm4058, 1, 0
      %v4060 = vadd.s32 %v4056, %v4052
      %v4061 = vadd.s32 %v4057, %v4059
      %v4062 = vadd.s32 %v4061, %v4051
      %v4063 = vadd.s32 %v4062, %v4053
      %v4064 = vand.u32 %v4041, 65535
      %v4065 = vshrl.u32 %v4041, 16
      %v4066 = vand.u32 %v4036, 65535
      %v4067 = vshrl.u32 %v4036, 16
      %v4068 = vmul.u32 %v4064, %v4066
      %v4069 = vmul.u32 %v4064, %v4067
      %v4070 = vmul.u32 %v4065, %v4066
      %v4071 = vmul.u32 %v4065, %v4067
      %v4072 = vshll.u32 %v4069, 16
      %v4073 = vshrl.u32 %v4069, 16
      %v4074 = vshll.u32 %v4070, 16
      %v4075 = vshrl.u32 %v4070, 16
      %vm4076 = vc.u32 %v4068, %v4072
      %v4077 = vsel %vm4076, 1, 0
      %v4078 = vadd.s32 %v4068, %v4072
      %v4079 = vadd.s32 %v4071, %v4077
      %vm4080 = vc.u32 %v4078, %v4074
      %v4081 = vsel %vm4080, 1, 0
      %v4082 = vadd.s32 %v4078, %v4074
      %v4083 = vadd.s32 %v4079, %v4081
      %v4084 = vadd.s32 %v4083, %v4073
      %v4085 = vadd.s32 %v4084, %v4075
      %v4086 = vmul.u32 %v4041, %v4032
      %v4087 = vadd.s32 %v4063, %v4082
      %vm4088 = vc.u32 %v4063, %v4082
      %v4089 = vadd.s32 %v4085, 1
      %v4090 = vsel %vm4088, %v4089, %v4085
      %v4091 = vadd.s32 %v4086, %v4090
      %v4092 = vadd.s32 %v4091, 536870912
      %v4093 = vshrl.u32 %v4092, 30
      %v4094 = vshll.u32 %v4093, 30
      %v4095 = vsub.s32 %v4091, %v4094
      %vm4096 = vcmp.lt.s32.totalorder %v4095, 0
      %v4097 = vsub.s32 0, %v4095
      %v4098 = vsel %vm4096, %v4097, %v4095
      %v4099 = vclz %v4098
      %v4100 = vsub.s32 %v4099, 2
      %vm4101 = vcmp.gt.s32.totalorder 0, %v4100
      %v4102 = vsel %vm4101, 0, %v4100
      %v4103 = vsub.s32 32, %v4102
      %v4104 = vshll.u32 %v4095, %v4102
      %v4105 = vshrl.u32 %v4087, %v4103
      %v4106 = vor.u32 %v4104, %v4105
      %v4107 = vsub.s32 4294967266, %v4102
      %v4108 = vadd.s32 %v4107, 127
      %v4109 = vshll.u32 %v4108, 23
      %v4110 = vor.u32 4788187, %v4109
      %v4111 = vand.u32 2147483647, %v4110
      %v4113 = vcvt.s32.f32 %v4106
      %v4114 = vmul.f32 %v4113, %v4111
      %v4115 = vxor.u32 %v4114, 2147483648
      %v4116 = vsel %vm3995, %v4115, %v4114
      %v4117 = vsub.s32 4, %v4093
      %v4118 = vsel %vm3995, %v4117, %v4093
      %v4119 = vsel %vm3994, %v250, %v4116
      %v4120 = vsel %vm3994, 0, %v4118
      %v4121 = vmul.f32 %v4119, %v4119
      %v4122 = vmul.f32 %v4121, -0.001358992
      %v4123 = vadd.f32 %v4122, 0.041655596
      %v4124 = vmul.f32 %v4121, %v4123
      %v4125 = vadd.f32 %v4124, -0.4999988
      %v4126 = vmul.f32 %v4121, %v4125
      %v4127 = vadd.f32 1.0, %v4126
      %v4128 = vmul.f32 %v4119, %v4119
      %v4129 = vmul.f32 %v4128, -0.00019511016
      %v4130 = vadd.f32 %v4129, 0.008332121
      %v4131 = vmul.f32 %v4128, %v4130
      %v4132 = vadd.f32 %v4131, -0.16666654
      %v4133 = vmul.f32 %v4128, %v4132
      %v4134 = vadd.f32 %v4133, 1.0
      %v4135 = vmul.f32 %v4134, %v4119
      %vm4136 = vweird.f32 %v250
      %v4137 = vadd.s32 %v4120, 3
      %v4138 = vand.u32 %v4137, 3
      %vm4139 = vcmp.lt.s32.totalorder %v4138, 2
      %vm4140 = vcmp.eq.s32.totalorder %v4138, 0
      %v4141 = vxor.u32 %v4135, 2147483648
      %v4142 = vsel %vm4140, %v4127, %v4141
      %vm4143 = vcmp.eq.s32.totalorder %v4138, 2
      %v4144 = vxor.u32 %v4127, 2147483648
      %v4145 = vsel %vm4143, %v4144, %v4135
      %v4146 = vsel %vm4139, %v4142, %v4145
      %v4147 = vsel %vm4136, nan, %v4146
      %v4148 = vand.u32 2147483647, %v253
      %vm4149 = vcmp.le.f32.partialorder %v4148, 0.7853982
      %vm4150 = vcmp.lt.s32.totalorder %v253, 0
      %v4151 = vand.u32 %v253, 2139095040
      %v4152 = vshrl.u32 %v4151, 23
      %v4153 = vsub.s32 %v4152, 127
      %v4154 = vand.u32 2147483647, %v253
      %v4155 = vand.u32 %v4154, 8388607
      %v4156 = vor.u32 %v4155, 8388608
      %v4157 = vsub.s32 0, %v4156
      %v4158 = vadd.s32 %v4153, 1
      %vm4159 = vcmp.gt.s32.totalorder %v4158, 0
      %v4160 = vsel %vm4159, %v4158, 0
      %v4161 = vshrl.u32 %v4160, 5
      %v4162 = vand.u32 %v4160, 31
      %v4163 = vsub.s32 32, %v4162
      %v4164 = vshrl.u32 683565275, %v4163
      %v4165 = vshll.u32 683565275, %v4162
      %v4166 = vshrl.u32 2475754826, %v4163
      %v4167 = vor.u32 %v4165, %v4166
      %v4168 = vshll.u32 2475754826, %v4162
      %v4169 = vshrl.u32 2131351028, %v4163
      %v4170 = vor.u32 %v4168, %v4169
      %v4171 = vshll.u32 2131351028, %v4162
      %v4172 = vshrl.u32 2102212464, %v4163
      %v4173 = vor.u32 %v4171, %v4172
      %v4174 = vshll.u32 2102212464, %v4162
      %v4175 = vshrl.u32 920167782, %v4163
      %v4176 = vor.u32 %v4174, %v4175
      %v4177 = vshll.u32 920167782, %v4162
      %v4178 = vshrl.u32 1326507024, %v4163
      %v4179 = vor.u32 %v4177, %v4178
      %vm4180 = vcmp.lt.s32.totalorder %v4161, 1
      %vm4181 = vcmp.lt.s32.totalorder %v4161, 2
      %vm4182 = vcmp.lt.s32.totalorder %v4161, 3
      %vm4183 = vcmp.lt.s32.totalorder %v4161, 4
      %v4184 = vsel %vm4180, %v4164, %v4167
      %v4185 = vsel %vm4183, %v4173, 2102212464
      %v4186 = vsel %vm4182, %v4170, %v4185
      %v4187 = vsel %vm4181, %v4184, %v4186
      %v4188 = vsel %vm4180, %v4167, %v4170
      %v4189 = vsel %vm4183, %v4176, 920167782
      %v4190 = vsel %vm4182, %v4173, %v4189
      %v4191 = vsel %vm4181, %v4188, %v4190
      %v4192 = vsel %vm4180, %v4170, %v4173
      %v4193 = vsel %vm4183, %v4179, 1326507024
      %v4194 = vsel %vm4182, %v4176, %v4193
      %v4195 = vsel %vm4181, %v4192, %v4194
      %v4196 = vshll.u32 %v4156, 8
      %v4197 = vand.u32 %v4196, 65535
      %v4198 = vshrl.u32 %v4196, 16
      %v4199 = vand.u32 %v4195, 65535
      %v4200 = vshrl.u32 %v4195, 16
      %v4201 = vmul.u32 %v4197, %v4199
      %v4202 = vmul.u32 %v4197, %v4200
      %v4203 = vmul.u32 %v4198, %v4199
      %v4204 = vmul.u32 %v4198, %v4200
      %v4205 = vshll.u32 %v4202, 16
      %v4206 = vshrl.u32 %v4202, 16
      %v4207 = vshll.u32 %v4203, 16
      %v4208 = vshrl.u32 %v4203, 16
      %vm4209 = vc.u32 %v4201, %v4205
      %v4210 = vsel %vm4209, 1, 0
      %v4211 = vadd.s32 %v4201, %v4205
      %v4212 = vadd.s32 %v4204, %v4210
      %vm4213 = vc.u32 %v4211, %v4207
      %v4214 = vsel %vm4213, 1, 0
      %v4215 = vadd.s32 %v4211, %v4207
      %v4216 = vadd.s32 %v4212, %v4214
      %v4217 = vadd.s32 %v4216, %v4206
      %v4218 = vadd.s32 %v4217, %v4208
      %v4219 = vand.u32 %v4196, 65535
      %v4220 = vshrl.u32 %v4196, 16
      %v4221 = vand.u32 %v4191, 65535
      %v4222 = vshrl.u32 %v4191, 16
      %v4223 = vmul.u32 %v4219, %v4221
      %v4224 = vmul.u32 %v4219, %v4222
      %v4225 = vmul.u32 %v4220, %v4221
      %v4226 = vmul.u32 %v4220, %v4222
      %v4227 = vshll.u32 %v4224, 16
      %v4228 = vshrl.u32 %v4224, 16
      %v4229 = vshll.u32 %v4225, 16
      %v4230 = vshrl.u32 %v4225, 16
      %vm4231 = vc.u32 %v4223, %v4227
      %v4232 = vsel %vm4231, 1, 0
      %v4233 = vadd.s32 %v4223, %v4227
      %v4234 = vadd.s32 %v4226, %v4232
      %vm4235 = vc.u32 %v4233, %v4229
      %v4236 = vsel %vm4235, 1, 0
      %v4237 = vadd.s32 %v4233, %v4229
      %v4238 = vadd.s32 %v4234, %v4236
      %v4239 = vadd.s32 %v4238, %v4228
      %v4240 = vadd.s32 %v4239, %v4230
      %v4241 = vmul.u32 %v4196, %v4187
      %v4242 = vadd.s32 %v4218, %v4237
      %vm4243 = vc.u32 %v4218, %v4237
      %v4244 = vadd.s32 %v4240, 1
      %v4245 = vsel %vm4243, %v4244, %v4240
      %v4246 = vadd.s32 %v4241, %v4245
      %v4247 = vadd.s32 %v4246, 536870912
      %v4248 = vshrl.u32 %v4247, 30
      %v4249 = vshll.u32 %v4248, 30
      %v4250 = vsub.s32 %v4246, %v4249
      %vm4251 = vcmp.lt.s32.totalorder %v4250, 0
      %v4252 = vsub.s32 0, %v4250
      %v4253 = vsel %vm4251, %v4252, %v4250
      %v4254 = vclz %v4253
      %v4255 = vsub.s32 %v4254, 2
      %vm4256 = vcmp.gt.s32.totalorder 0, %v4255
      %v4257 = vsel %vm4256, 0, %v4255
      %v4258 = vsub.s32 32, %v4257
      %v4259 = vshll.u32 %v4250, %v4257
      %v4260 = vshrl.u32 %v4242, %v4258
      %v4261 = vor.u32 %v4259, %v4260
      %v4262 = vsub.s32 4294967266, %v4257
      %v4263 = vadd.s32 %v4262, 127
      %v4264 = vshll.u32 %v4263, 23
      %v4265 = vor.u32 4788187, %v4264
      %v4266 = vand.u32 2147483647, %v4265
      %v4268 = vcvt.s32.f32 %v4261
      %v4269 = vmul.f32 %v4268, %v4266
      %v4270 = vxor.u32 %v4269, 2147483648
      %v4271 = vsel %vm4150, %v4270, %v4269
      %v4272 = vsub.s32 4, %v4248
      %v4273 = vsel %vm4150, %v4272, %v4248
      %v4274 = vsel %vm4149, %v253, %v4271
      %v4275 = vsel %vm4149, 0, %v4273
      %v4276 = vmul.f32 %v4274, %v4274
      %v4277 = vmul.f32 %v4276, -0.001358992
      %v4278 = vadd.f32 %v4277, 0.041655596
      %v4279 = vmul.f32 %v4276, %v4278
      %v4280 = vadd.f32 %v4279, -0.4999988
      %v4281 = vmul.f32 %v4276, %v4280
      %v4282 = vadd.f32 1.0, %v4281
      %v4283 = vmul.f32 %v4274, %v4274
      %v4284 = vmul.f32 %v4283, -0.00019511016
      %v4285 = vadd.f32 %v4284, 0.008332121
      %v4286 = vmul.f32 %v4283, %v4285
      %v4287 = vadd.f32 %v4286, -0.16666654
      %v4288 = vmul.f32 %v4283, %v4287
      %v4289 = vadd.f32 %v4288, 1.0
      %v4290 = vmul.f32 %v4289, %v4274
      %vm4291 = vweird.f32 %v253
      %v4292 = vadd.s32 %v4275, 3
      %v4293 = vand.u32 %v4292, 3
      %vm4294 = vcmp.lt.s32.totalorder %v4293, 2
      %vm4295 = vcmp.eq.s32.totalorder %v4293, 0
      %v4296 = vxor.u32 %v4290, 2147483648
      %v4297 = vsel %vm4295, %v4282, %v4296
      %vm4298 = vcmp.eq.s32.totalorder %v4293, 2
      %v4299 = vxor.u32 %v4282, 2147483648
      %v4300 = vsel %vm4298, %v4299, %v4290
      %v4301 = vsel %vm4294, %v4297, %v4300
      %v4302 = vsel %vm4291, nan, %v4301
      %v4303 = vand.u32 2147483647, %v256
      %vm4304 = vcmp.le.f32.partialorder %v4303, 0.7853982
      %vm4305 = vcmp.lt.s32.totalorder %v256, 0
      %v4306 = vand.u32 %v256, 2139095040
      %v4307 = vshrl.u32 %v4306, 23
      %v4308 = vsub.s32 %v4307, 127
      %v4309 = vand.u32 2147483647, %v256
      %v4310 = vand.u32 %v4309, 8388607
      %v4311 = vor.u32 %v4310, 8388608
      %v4312 = vsub.s32 0, %v4311
      %v4313 = vadd.s32 %v4308, 1
      %vm4314 = vcmp.gt.s32.totalorder %v4313, 0
      %v4315 = vsel %vm4314, %v4313, 0
      %v4316 = vshrl.u32 %v4315, 5
      %v4317 = vand.u32 %v4315, 31
      %v4318 = vsub.s32 32, %v4317
      %v4319 = vshrl.u32 683565275, %v4318
      %v4320 = vshll.u32 683565275, %v4317
      %v4321 = vshrl.u32 2475754826, %v4318
      %v4322 = vor.u32 %v4320, %v4321
      %v4323 = vshll.u32 2475754826, %v4317
      %v4324 = vshrl.u32 2131351028, %v4318
      %v4325 = vor.u32 %v4323, %v4324
      %v4326 = vshll.u32 2131351028, %v4317
      %v4327 = vshrl.u32 2102212464, %v4318
      %v4328 = vor.u32 %v4326, %v4327
      %v4329 = vshll.u32 2102212464, %v4317
      %v4330 = vshrl.u32 920167782, %v4318
      %v4331 = vor.u32 %v4329, %v4330
      %v4332 = vshll.u32 920167782, %v4317
      %v4333 = vshrl.u32 1326507024, %v4318
      %v4334 = vor.u32 %v4332, %v4333
      %vm4335 = vcmp.lt.s32.totalorder %v4316, 1
      %vm4336 = vcmp.lt.s32.totalorder %v4316, 2
      %vm4337 = vcmp.lt.s32.totalorder %v4316, 3
      %vm4338 = vcmp.lt.s32.totalorder %v4316, 4
      %v4339 = vsel %vm4335, %v4319, %v4322
      %v4340 = vsel %vm4338, %v4328, 2102212464
      %v4341 = vsel %vm4337, %v4325, %v4340
      %v4342 = vsel %vm4336, %v4339, %v4341
      %v4343 = vsel %vm4335, %v4322, %v4325
      %v4344 = vsel %vm4338, %v4331, 920167782
      %v4345 = vsel %vm4337, %v4328, %v4344
      %v4346 = vsel %vm4336, %v4343, %v4345
      %v4347 = vsel %vm4335, %v4325, %v4328
      %v4348 = vsel %vm4338, %v4334, 1326507024
      %v4349 = vsel %vm4337, %v4331, %v4348
      %v4350 = vsel %vm4336, %v4347, %v4349
      %v4351 = vshll.u32 %v4311, 8
      %v4352 = vand.u32 %v4351, 65535
      %v4353 = vshrl.u32 %v4351, 16
      %v4354 = vand.u32 %v4350, 65535
      %v4355 = vshrl.u32 %v4350, 16
      %v4356 = vmul.u32 %v4352, %v4354
      %v4357 = vmul.u32 %v4352, %v4355
      %v4358 = vmul.u32 %v4353, %v4354
      %v4359 = vmul.u32 %v4353, %v4355
      %v4360 = vshll.u32 %v4357, 16
      %v4361 = vshrl.u32 %v4357, 16
      %v4362 = vshll.u32 %v4358, 16
      %v4363 = vshrl.u32 %v4358, 16
      %vm4364 = vc.u32 %v4356, %v4360
      %v4365 = vsel %vm4364, 1, 0
      %v4366 = vadd.s32 %v4356, %v4360
      %v4367 = vadd.s32 %v4359, %v4365
      %vm4368 = vc.u32 %v4366, %v4362
      %v4369 = vsel %vm4368, 1, 0
      %v4370 = vadd.s32 %v4366, %v4362
      %v4371 = vadd.s32 %v4367, %v4369
      %v4372 = vadd.s32 %v4371, %v4361
      %v4373 = vadd.s32 %v4372, %v4363
      %v4374 = vand.u32 %v4351, 65535
      %v4375 = vshrl.u32 %v4351, 16
      %v4376 = vand.u32 %v4346, 65535
      %v4377 = vshrl.u32 %v4346, 16
      %v4378 = vmul.u32 %v4374, %v4376
      %v4379 = vmul.u32 %v4374, %v4377
      %v4380 = vmul.u32 %v4375, %v4376
      %v4381 = vmul.u32 %v4375, %v4377
      %v4382 = vshll.u32 %v4379, 16
      %v4383 = vshrl.u32 %v4379, 16
      %v4384 = vshll.u32 %v4380, 16
      %v4385 = vshrl.u32 %v4380, 16
      %vm4386 = vc.u32 %v4378, %v4382
      %v4387 = vsel %vm4386, 1, 0
      %v4388 = vadd.s32 %v4378, %v4382
      %v4389 = vadd.s32 %v4381, %v4387
      %vm4390 = vc.u32 %v4388, %v4384
      %v4391 = vsel %vm4390, 1, 0
      %v4392 = vadd.s32 %v4388, %v4384
      %v4393 = vadd.s32 %v4389, %v4391
      %v4394 = vadd.s32 %v4393, %v4383
      %v4395 = vadd.s32 %v4394, %v4385
      %v4396 = vmul.u32 %v4351, %v4342
      %v4397 = vadd.s32 %v4373, %v4392
      %vm4398 = vc.u32 %v4373, %v4392
      %v4399 = vadd.s32 %v4395, 1
      %v4400 = vsel %vm4398, %v4399, %v4395
      %v4401 = vadd.s32 %v4396, %v4400
      %v4402 = vadd.s32 %v4401, 536870912
      %v4403 = vshrl.u32 %v4402, 30
      %v4404 = vshll.u32 %v4403, 30
      %v4405 = vsub.s32 %v4401, %v4404
      %vm4406 = vcmp.lt.s32.totalorder %v4405, 0
      %v4407 = vsub.s32 0, %v4405
      %v4408 = vsel %vm4406, %v4407, %v4405
      %v4409 = vclz %v4408
      %v4410 = vsub.s32 %v4409, 2
      %vm4411 = vcmp.gt.s32.totalorder 0, %v4410
      %v4412 = vsel %vm4411, 0, %v4410
      %v4413 = vsub.s32 32, %v4412
      %v4414 = vshll.u32 %v4405, %v4412
      %v4415 = vshrl.u32 %v4397, %v4413
      %v4416 = vor.u32 %v4414, %v4415
      %v4417 = vsub.s32 4294967266, %v4412
      %v4418 = vadd.s32 %v4417, 127
      %v4419 = vshll.u32 %v4418, 23
      %v4420 = vor.u32 4788187, %v4419
      %v4421 = vand.u32 2147483647, %v4420
      %v4423 = vcvt.s32.f32 %v4416
      %v4424 = vmul.f32 %v4423, %v4421
      %v4425 = vxor.u32 %v4424, 2147483648
      %v4426 = vsel %vm4305, %v4425, %v4424
      %v4427 = vsub.s32 4, %v4403
      %v4428 = vsel %vm4305, %v4427, %v4403
      %v4429 = vsel %vm4304, %v256, %v4426
      %v4430 = vsel %vm4304, 0, %v4428
      %v4431 = vmul.f32 %v4429, %v4429
      %v4432 = vmul.f32 %v4431, -0.001358992
      %v4433 = vadd.f32 %v4432, 0.041655596
      %v4434 = vmul.f32 %v4431, %v4433
      %v4435 = vadd.f32 %v4434, -0.4999988
      %v4436 = vmul.f32 %v4431, %v4435
      %v4437 = vadd.f32 1.0, %v4436
      %v4438 = vmul.f32 %v4429, %v4429
      %v4439 = vmul.f32 %v4438, -0.00019511016
      %v4440 = vadd.f32 %v4439, 0.008332121
      %v4441 = vmul.f32 %v4438, %v4440
      %v4442 = vadd.f32 %v4441, -0.16666654
      %v4443 = vmul.f32 %v4438, %v4442
      %v4444 = vadd.f32 %v4443, 1.0
      %v4445 = vmul.f32 %v4444, %v4429
      %vm4446 = vweird.f32 %v256
      %v4447 = vadd.s32 %v4430, 3
      %v4448 = vand.u32 %v4447, 3
      %vm4449 = vcmp.lt.s32.totalorder %v4448, 2
      %vm4450 = vcmp.eq.s32.totalorder %v4448, 0
      %v4451 = vxor.u32 %v4445, 2147483648
      %v4452 = vsel %vm4450, %v4437, %v4451
      %vm4453 = vcmp.eq.s32.totalorder %v4448, 2
      %v4454 = vxor.u32 %v4437, 2147483648
      %v4455 = vsel %vm4453, %v4454, %v4445
      %v4456 = vsel %vm4449, %v4452, %v4455
      %v4457 = vsel %vm4446, nan, %v4456
      %v4458 = vand.u32 2147483647, %v259
      %vm4459 = vcmp.le.f32.partialorder %v4458, 0.7853982
      %vm4460 = vcmp.lt.s32.totalorder %v259, 0
      %v4461 = vand.u32 %v259, 2139095040
      %v4462 = vshrl.u32 %v4461, 23
      %v4463 = vsub.s32 %v4462, 127
      %v4464 = vand.u32 2147483647, %v259
      %v4465 = vand.u32 %v4464, 8388607
      %v4466 = vor.u32 %v4465, 8388608
      %v4467 = vsub.s32 0, %v4466
      %v4468 = vadd.s32 %v4463, 1
      %vm4469 = vcmp.gt.s32.totalorder %v4468, 0
      %v4470 = vsel %vm4469, %v4468, 0
      %v4471 = vshrl.u32 %v4470, 5
      %v4472 = vand.u32 %v4470, 31
      %v4473 = vsub.s32 32, %v4472
      %v4474 = vshrl.u32 683565275, %v4473
      %v4475 = vshll.u32 683565275, %v4472
      %v4476 = vshrl.u32 2475754826, %v4473
      %v4477 = vor.u32 %v4475, %v4476
      %v4478 = vshll.u32 2475754826, %v4472
      %v4479 = vshrl.u32 2131351028, %v4473
      %v4480 = vor.u32 %v4478, %v4479
      %v4481 = vshll.u32 2131351028, %v4472
      %v4482 = vshrl.u32 2102212464, %v4473
      %v4483 = vor.u32 %v4481, %v4482
      %v4484 = vshll.u32 2102212464, %v4472
      %v4485 = vshrl.u32 920167782, %v4473
      %v4486 = vor.u32 %v4484, %v4485
      %v4487 = vshll.u32 920167782, %v4472
      %v4488 = vshrl.u32 1326507024, %v4473
      %v4489 = vor.u32 %v4487, %v4488
      %vm4490 = vcmp.lt.s32.totalorder %v4471, 1
      %vm4491 = vcmp.lt.s32.totalorder %v4471, 2
      %vm4492 = vcmp.lt.s32.totalorder %v4471, 3
      %vm4493 = vcmp.lt.s32.totalorder %v4471, 4
      %v4494 = vsel %vm4490, %v4474, %v4477
      %v4495 = vsel %vm4493, %v4483, 2102212464
      %v4496 = vsel %vm4492, %v4480, %v4495
      %v4497 = vsel %vm4491, %v4494, %v4496
      %v4498 = vsel %vm4490, %v4477, %v4480
      %v4499 = vsel %vm4493, %v4486, 920167782
      %v4500 = vsel %vm4492, %v4483, %v4499
      %v4501 = vsel %vm4491, %v4498, %v4500
      %v4502 = vsel %vm4490, %v4480, %v4483
      %v4503 = vsel %vm4493, %v4489, 1326507024
      %v4504 = vsel %vm4492, %v4486, %v4503
      %v4505 = vsel %vm4491, %v4502, %v4504
      %v4506 = vshll.u32 %v4466, 8
      %v4507 = vand.u32 %v4506, 65535
      %v4508 = vshrl.u32 %v4506, 16
      %v4509 = vand.u32 %v4505, 65535
      %v4510 = vshrl.u32 %v4505, 16
      %v4511 = vmul.u32 %v4507, %v4509
      %v4512 = vmul.u32 %v4507, %v4510
      %v4513 = vmul.u32 %v4508, %v4509
      %v4514 = vmul.u32 %v4508, %v4510
      %v4515 = vshll.u32 %v4512, 16
      %v4516 = vshrl.u32 %v4512, 16
      %v4517 = vshll.u32 %v4513, 16
      %v4518 = vshrl.u32 %v4513, 16
      %vm4519 = vc.u32 %v4511, %v4515
      %v4520 = vsel %vm4519, 1, 0
      %v4521 = vadd.s32 %v4511, %v4515
      %v4522 = vadd.s32 %v4514, %v4520
      %vm4523 = vc.u32 %v4521, %v4517
      %v4524 = vsel %vm4523, 1, 0
      %v4525 = vadd.s32 %v4521, %v4517
      %v4526 = vadd.s32 %v4522, %v4524
      %v4527 = vadd.s32 %v4526, %v4516
      %v4528 = vadd.s32 %v4527, %v4518
      %v4529 = vand.u32 %v4506, 65535
      %v4530 = vshrl.u32 %v4506, 16
      %v4531 = vand.u32 %v4501, 65535
      %v4532 = vshrl.u32 %v4501, 16
      %v4533 = vmul.u32 %v4529, %v4531
      %v4534 = vmul.u32 %v4529, %v4532
      %v4535 = vmul.u32 %v4530, %v4531
      %v4536 = vmul.u32 %v4530, %v4532
      %v4537 = vshll.u32 %v4534, 16
      %v4538 = vshrl.u32 %v4534, 16
      %v4539 = vshll.u32 %v4535, 16
      %v4540 = vshrl.u32 %v4535, 16
      %vm4541 = vc.u32 %v4533, %v4537
      %v4542 = vsel %vm4541, 1, 0
      %v4543 = vadd.s32 %v4533, %v4537
      %v4544 = vadd.s32 %v4536, %v4542
      %vm4545 = vc.u32 %v4543, %v4539
      %v4546 = vsel %vm4545, 1, 0
      %v4547 = vadd.s32 %v4543, %v4539
      %v4548 = vadd.s32 %v4544, %v4546
      %v4549 = vadd.s32 %v4548, %v4538
      %v4550 = vadd.s32 %v4549, %v4540
      %v4551 = vmul.u32 %v4506, %v4497
      %v4552 = vadd.s32 %v4528, %v4547
      %vm4553 = vc.u32 %v4528, %v4547
      %v4554 = vadd.s32 %v4550, 1
      %v4555 = vsel %vm4553, %v4554, %v4550
      %v4556 = vadd.s32 %v4551, %v4555
      %v4557 = vadd.s32 %v4556, 536870912
      %v4558 = vshrl.u32 %v4557, 30
      %v4559 = vshll.u32 %v4558, 30
      %v4560 = vsub.s32 %v4556, %v4559
      %vm4561 = vcmp.lt.s32.totalorder %v4560, 0
      %v4562 = vsub.s32 0, %v4560
      %v4563 = vsel %vm4561, %v4562, %v4560
      %v4564 = vclz %v4563
      %v4565 = vsub.s32 %v4564, 2
      %vm4566 = vcmp.gt.s32.totalorder 0, %v4565
      %v4567 = vsel %vm4566, 0, %v4565
      %v4568 = vsub.s32 32, %v4567
      %v4569 = vshll.u32 %v4560, %v4567
      %v4570 = vshrl.u32 %v4552, %v4568
      %v4571 = vor.u32 %v4569, %v4570
      %v4572 = vsub.s32 4294967266, %v4567
      %v4573 = vadd.s32 %v4572, 127
      %v4574 = vshll.u32 %v4573, 23
      %v4575 = vor.u32 4788187, %v4574
      %v4576 = vand.u32 2147483647, %v4575
      %v4578 = vcvt.s32.f32 %v4571
      %v4579 = vmul.f32 %v4578, %v4576
      %v4580 = vxor.u32 %v4579, 2147483648
      %v4581 = vsel %vm4460, %v4580, %v4579
      %v4582 = vsub.s32 4, %v4558
      %v4583 = vsel %vm4460, %v4582, %v4558
      %v4584 = vsel %vm4459, %v259, %v4581
      %v4585 = vsel %vm4459, 0, %v4583
      %v4586 = vmul.f32 %v4584, %v4584
      %v4587 = vmul.f32 %v4586, -0.001358992
      %v4588 = vadd.f32 %v4587, 0.041655596
      %v4589 = vmul.f32 %v4586, %v4588
      %v4590 = vadd.f32 %v4589, -0.4999988
      %v4591 = vmul.f32 %v4586, %v4590
      %v4592 = vadd.f32 1.0, %v4591
      %v4593 = vmul.f32 %v4584, %v4584
      %v4594 = vmul.f32 %v4593, -0.00019511016
      %v4595 = vadd.f32 %v4594, 0.008332121
      %v4596 = vmul.f32 %v4593, %v4595
      %v4597 = vadd.f32 %v4596, -0.16666654
      %v4598 = vmul.f32 %v4593, %v4597
      %v4599 = vadd.f32 %v4598, 1.0
      %v4600 = vmul.f32 %v4599, %v4584
      %vm4601 = vweird.f32 %v259
      %v4602 = vadd.s32 %v4585, 3
      %v4603 = vand.u32 %v4602, 3
      %vm4604 = vcmp.lt.s32.totalorder %v4603, 2
      %vm4605 = vcmp.eq.s32.totalorder %v4603, 0
      %v4606 = vxor.u32 %v4600, 2147483648
      %v4607 = vsel %vm4605, %v4592, %v4606
      %vm4608 = vcmp.eq.s32.totalorder %v4603, 2
      %v4609 = vxor.u32 %v4592, 2147483648
      %v4610 = vsel %vm4608, %v4609, %v4600
      %v4611 = vsel %vm4604, %v4607, %v4610
      %v4612 = vsel %vm4601, nan, %v4611
      %v4613 = vand.u32 2147483647, %v262
      %vm4614 = vcmp.le.f32.partialorder %v4613, 0.7853982
      %vm4615 = vcmp.lt.s32.totalorder %v262, 0
      %v4616 = vand.u32 %v262, 2139095040
      %v4617 = vshrl.u32 %v4616, 23
      %v4618 = vsub.s32 %v4617, 127
      %v4619 = vand.u32 2147483647, %v262
      %v4620 = vand.u32 %v4619, 8388607
      %v4621 = vor.u32 %v4620, 8388608
      %v4622 = vsub.s32 0, %v4621
      %v4623 = vadd.s32 %v4618, 1
      %vm4624 = vcmp.gt.s32.totalorder %v4623, 0
      %v4625 = vsel %vm4624, %v4623, 0
      %v4626 = vshrl.u32 %v4625, 5
      %v4627 = vand.u32 %v4625, 31
      %v4628 = vsub.s32 32, %v4627
      %v4629 = vshrl.u32 683565275, %v4628
      %v4630 = vshll.u32 683565275, %v4627
      %v4631 = vshrl.u32 2475754826, %v4628
      %v4632 = vor.u32 %v4630, %v4631
      %v4633 = vshll.u32 2475754826, %v4627
      %v4634 = vshrl.u32 2131351028, %v4628
      %v4635 = vor.u32 %v4633, %v4634
      %v4636 = vshll.u32 2131351028, %v4627
      %v4637 = vshrl.u32 2102212464, %v4628
      %v4638 = vor.u32 %v4636, %v4637
      %v4639 = vshll.u32 2102212464, %v4627
      %v4640 = vshrl.u32 920167782, %v4628
      %v4641 = vor.u32 %v4639, %v4640
      %v4642 = vshll.u32 920167782, %v4627
      %v4643 = vshrl.u32 1326507024, %v4628
      %v4644 = vor.u32 %v4642, %v4643
      %vm4645 = vcmp.lt.s32.totalorder %v4626, 1
      %vm4646 = vcmp.lt.s32.totalorder %v4626, 2
      %vm4647 = vcmp.lt.s32.totalorder %v4626, 3
      %vm4648 = vcmp.lt.s32.totalorder %v4626, 4
      %v4649 = vsel %vm4645, %v4629, %v4632
      %v4650 = vsel %vm4648, %v4638, 2102212464
      %v4651 = vsel %vm4647, %v4635, %v4650
      %v4652 = vsel %vm4646, %v4649, %v4651
      %v4653 = vsel %vm4645, %v4632, %v4635
      %v4654 = vsel %vm4648, %v4641, 920167782
      %v4655 = vsel %vm4647, %v4638, %v4654
      %v4656 = vsel %vm4646, %v4653, %v4655
      %v4657 = vsel %vm4645, %v4635, %v4638
      %v4658 = vsel %vm4648, %v4644, 1326507024
      %v4659 = vsel %vm4647, %v4641, %v4658
      %v4660 = vsel %vm4646, %v4657, %v4659
      %v4661 = vshll.u32 %v4621, 8
      %v4662 = vand.u32 %v4661, 65535
      %v4663 = vshrl.u32 %v4661, 16
      %v4664 = vand.u32 %v4660, 65535
      %v4665 = vshrl.u32 %v4660, 16
      %v4666 = vmul.u32 %v4662, %v4664
      %v4667 = vmul.u32 %v4662, %v4665
      %v4668 = vmul.u32 %v4663, %v4664
      %v4669 = vmul.u32 %v4663, %v4665
      %v4670 = vshll.u32 %v4667, 16
      %v4671 = vshrl.u32 %v4667, 16
      %v4672 = vshll.u32 %v4668, 16
      %v4673 = vshrl.u32 %v4668, 16
      %vm4674 = vc.u32 %v4666, %v4670
      %v4675 = vsel %vm4674, 1, 0
      %v4676 = vadd.s32 %v4666, %v4670
      %v4677 = vadd.s32 %v4669, %v4675
      %vm4678 = vc.u32 %v4676, %v4672
      %v4679 = vsel %vm4678, 1, 0
      %v4680 = vadd.s32 %v4676, %v4672
      %v4681 = vadd.s32 %v4677, %v4679
      %v4682 = vadd.s32 %v4681, %v4671
      %v4683 = vadd.s32 %v4682, %v4673
      %v4684 = vand.u32 %v4661, 65535
      %v4685 = vshrl.u32 %v4661, 16
      %v4686 = vand.u32 %v4656, 65535
      %v4687 = vshrl.u32 %v4656, 16
      %v4688 = vmul.u32 %v4684, %v4686
      %v4689 = vmul.u32 %v4684, %v4687
      %v4690 = vmul.u32 %v4685, %v4686
      %v4691 = vmul.u32 %v4685, %v4687
      %v4692 = vshll.u32 %v4689, 16
      %v4693 = vshrl.u32 %v4689, 16
      %v4694 = vshll.u32 %v4690, 16
      %v4695 = vshrl.u32 %v4690, 16
      %vm4696 = vc.u32 %v4688, %v4692
      %v4697 = vsel %vm4696, 1, 0
      %v4698 = vadd.s32 %v4688, %v4692
      %v4699 = vadd.s32 %v4691, %v4697
      %vm4700 = vc.u32 %v4698, %v4694
      %v4701 = vsel %vm4700, 1, 0
      %v4702 = vadd.s32 %v4698, %v4694
      %v4703 = vadd.s32 %v4699, %v4701
      %v4704 = vadd.s32 %v4703, %v4693
      %v4705 = vadd.s32 %v4704, %v4695
      %v4706 = vmul.u32 %v4661, %v4652
      %v4707 = vadd.s32 %v4683, %v4702
      %vm4708 = vc.u32 %v4683, %v4702
      %v4709 = vadd.s32 %v4705, 1
      %v4710 = vsel %vm4708, %v4709, %v4705
      %v4711 = vadd.s32 %v4706, %v4710
      %v4712 = vadd.s32 %v4711, 536870912
      %v4713 = vshrl.u32 %v4712, 30
      %v4714 = vshll.u32 %v4713, 30
      %v4715 = vsub.s32 %v4711, %v4714
      %vm4716 = vcmp.lt.s32.totalorder %v4715, 0
      %v4717 = vsub.s32 0, %v4715
      %v4718 = vsel %vm4716, %v4717, %v4715
      %v4719 = vclz %v4718
      %v4720 = vsub.s32 %v4719, 2
      %vm4721 = vcmp.gt.s32.totalorder 0, %v4720
      %v4722 = vsel %vm4721, 0, %v4720
      %v4723 = vsub.s32 32, %v4722
      %v4724 = vshll.u32 %v4715, %v4722
      %v4725 = vshrl.u32 %v4707, %v4723
      %v4726 = vor.u32 %v4724, %v4725
      %v4727 = vsub.s32 4294967266, %v4722
      %v4728 = vadd.s32 %v4727, 127
      %v4729 = vshll.u32 %v4728, 23
      %v4730 = vor.u32 4788187, %v4729
      %v4731 = vand.u32 2147483647, %v4730
      %v4733 = vcvt.s32.f32 %v4726
      %v4734 = vmul.f32 %v4733, %v4731
      %v4735 = vxor.u32 %v4734, 2147483648
      %v4736 = vsel %vm4615, %v4735, %v4734
      %v4737 = vsub.s32 4, %v4713
      %v4738 = vsel %vm4615, %v4737, %v4713
      %v4739 = vsel %vm4614, %v262, %v4736
      %v4740 = vsel %vm4614, 0, %v4738
      %v4741 = vmul.f32 %v4739, %v4739
      %v4742 = vmul.f32 %v4741, -0.001358992
      %v4743 = vadd.f32 %v4742, 0.041655596
      %v4744 = vmul.f32 %v4741, %v4743
      %v4745 = vadd.f32 %v4744, -0.4999988
      %v4746 = vmul.f32 %v4741, %v4745
      %v4747 = vadd.f32 1.0, %v4746
      %v4748 = vmul.f32 %v4739, %v4739
      %v4749 = vmul.f32 %v4748, -0.00019511016
      %v4750 = vadd.f32 %v4749, 0.008332121
      %v4751 = vmul.f32 %v4748, %v4750
      %v4752 = vadd.f32 %v4751, -0.16666654
      %v4753 = vmul.f32 %v4748, %v4752
      %v4754 = vadd.f32 %v4753, 1.0
      %v4755 = vmul.f32 %v4754, %v4739
      %vm4756 = vweird.f32 %v262
      %v4757 = vadd.s32 %v4740, 3
      %v4758 = vand.u32 %v4757, 3
      %vm4759 = vcmp.lt.s32.totalorder %v4758, 2
      %vm4760 = vcmp.eq.s32.totalorder %v4758, 0
      %v4761 = vxor.u32 %v4755, 2147483648
      %v4762 = vsel %vm4760, %v4747, %v4761
      %vm4763 = vcmp.eq.s32.totalorder %v4758, 2
      %v4764 = vxor.u32 %v4747, 2147483648
      %v4765 = vsel %vm4763, %v4764, %v4755
      %v4766 = vsel %vm4759, %v4762, %v4765
      %v4767 = vsel %vm4756, nan, %v4766
      %v4768 = vand.u32 2147483647, %v265
      %vm4769 = vcmp.le.f32.partialorder %v4768, 0.7853982
      %vm4770 = vcmp.lt.s32.totalorder %v265, 0
      %v4771 = vand.u32 %v265, 2139095040
      %v4772 = vshrl.u32 %v4771, 23
      %v4773 = vsub.s32 %v4772, 127
      %v4774 = vand.u32 2147483647, %v265
      %v4775 = vand.u32 %v4774, 8388607
      %v4776 = vor.u32 %v4775, 8388608
      %v4777 = vsub.s32 0, %v4776
      %v4778 = vadd.s32 %v4773, 1
      %vm4779 = vcmp.gt.s32.totalorder %v4778, 0
      %v4780 = vsel %vm4779, %v4778, 0
      %v4781 = vshrl.u32 %v4780, 5
      %v4782 = vand.u32 %v4780, 31
      %v4783 = vsub.s32 32, %v4782
      %v4784 = vshrl.u32 683565275, %v4783
      %v4785 = vshll.u32 683565275, %v4782
      %v4786 = vshrl.u32 2475754826, %v4783
      %v4787 = vor.u32 %v4785, %v4786
      %v4788 = vshll.u32 2475754826, %v4782
      %v4789 = vshrl.u32 2131351028, %v4783
      %v4790 = vor.u32 %v4788, %v4789
      %v4791 = vshll.u32 2131351028, %v4782
      %v4792 = vshrl.u32 2102212464, %v4783
      %v4793 = vor.u32 %v4791, %v4792
      %v4794 = vshll.u32 2102212464, %v4782
      %v4795 = vshrl.u32 920167782, %v4783
      %v4796 = vor.u32 %v4794, %v4795
      %v4797 = vshll.u32 920167782, %v4782
      %v4798 = vshrl.u32 1326507024, %v4783
      %v4799 = vor.u32 %v4797, %v4798
      %vm4800 = vcmp.lt.s32.totalorder %v4781, 1
      %vm4801 = vcmp.lt.s32.totalorder %v4781, 2
      %vm4802 = vcmp.lt.s32.totalorder %v4781, 3
      %vm4803 = vcmp.lt.s32.totalorder %v4781, 4
      %v4804 = vsel %vm4800, %v4784, %v4787
      %v4805 = vsel %vm4803, %v4793, 2102212464
      %v4806 = vsel %vm4802, %v4790, %v4805
      %v4807 = vsel %vm4801, %v4804, %v4806
      %v4808 = vsel %vm4800, %v4787, %v4790
      %v4809 = vsel %vm4803, %v4796, 920167782
      %v4810 = vsel %vm4802, %v4793, %v4809
      %v4811 = vsel %vm4801, %v4808, %v4810
      %v4812 = vsel %vm4800, %v4790, %v4793
      %v4813 = vsel %vm4803, %v4799, 1326507024
      %v4814 = vsel %vm4802, %v4796, %v4813
      %v4815 = vsel %vm4801, %v4812, %v4814
      %v4816 = vshll.u32 %v4776, 8
      %v4817 = vand.u32 %v4816, 65535
      %v4818 = vshrl.u32 %v4816, 16
      %v4819 = vand.u32 %v4815, 65535
      %v4820 = vshrl.u32 %v4815, 16
      %v4821 = vmul.u32 %v4817, %v4819
      %v4822 = vmul.u32 %v4817, %v4820
      %v4823 = vmul.u32 %v4818, %v4819
      %v4824 = vmul.u32 %v4818, %v4820
      %v4825 = vshll.u32 %v4822, 16
      %v4826 = vshrl.u32 %v4822, 16
      %v4827 = vshll.u32 %v4823, 16
      %v4828 = vshrl.u32 %v4823, 16
      %vm4829 = vc.u32 %v4821, %v4825
      %v4830 = vsel %vm4829, 1, 0
      %v4831 = vadd.s32 %v4821, %v4825
      %v4832 = vadd.s32 %v4824, %v4830
      %vm4833 = vc.u32 %v4831, %v4827
      %v4834 = vsel %vm4833, 1, 0
      %v4835 = vadd.s32 %v4831, %v4827
      %v4836 = vadd.s32 %v4832, %v4834
      %v4837 = vadd.s32 %v4836, %v4826
      %v4838 = vadd.s32 %v4837, %v4828
      %v4839 = vand.u32 %v4816, 65535
      %v4840 = vshrl.u32 %v4816, 16
      %v4841 = vand.u32 %v4811, 65535
      %v4842 = vshrl.u32 %v4811, 16
      %v4843 = vmul.u32 %v4839, %v4841
      %v4844 = vmul.u32 %v4839, %v4842
      %v4845 = vmul.u32 %v4840, %v4841
      %v4846 = vmul.u32 %v4840, %v4842
      %v4847 = vshll.u32 %v4844, 16
      %v4848 = vshrl.u32 %v4844, 16
      %v4849 = vshll.u32 %v4845, 16
      %v4850 = vshrl.u32 %v4845, 16
      %vm4851 = vc.u32 %v4843, %v4847
      %v4852 = vsel %vm4851, 1, 0
      %v4853 = vadd.s32 %v4843, %v4847
      %v4854 = vadd.s32 %v4846, %v4852
      %vm4855 = vc.u32 %v4853, %v4849
      %v4856 = vsel %vm4855, 1, 0
      %v4857 = vadd.s32 %v4853, %v4849
      %v4858 = vadd.s32 %v4854, %v4856
      %v4859 = vadd.s32 %v4858, %v4848
      %v4860 = vadd.s32 %v4859, %v4850
      %v4861 = vmul.u32 %v4816, %v4807
      %v4862 = vadd.s32 %v4838, %v4857
      %vm4863 = vc.u32 %v4838, %v4857
      %v4864 = vadd.s32 %v4860, 1
      %v4865 = vsel %vm4863, %v4864, %v4860
      %v4866 = vadd.s32 %v4861, %v4865
      %v4867 = vadd.s32 %v4866, 536870912
      %v4868 = vshrl.u32 %v4867, 30
      %v4869 = vshll.u32 %v4868, 30
      %v4870 = vsub.s32 %v4866, %v4869
      %vm4871 = vcmp.lt.s32.totalorder %v4870, 0
      %v4872 = vsub.s32 0, %v4870
      %v4873 = vsel %vm4871, %v4872, %v4870
      %v4874 = vclz %v4873
      %v4875 = vsub.s32 %v4874, 2
      %vm4876 = vcmp.gt.s32.totalorder 0, %v4875
      %v4877 = vsel %vm4876, 0, %v4875
      %v4878 = vsub.s32 32, %v4877
      %v4879 = vshll.u32 %v4870, %v4877
      %v4880 = vshrl.u32 %v4862, %v4878
      %v4881 = vor.u32 %v4879, %v4880
      %v4882 = vsub.s32 4294967266, %v4877
      %v4883 = vadd.s32 %v4882, 127
      %v4884 = vshll.u32 %v4883, 23
      %v4885 = vor.u32 4788187, %v4884
      %v4886 = vand.u32 2147483647, %v4885
      %v4888 = vcvt.s32.f32 %v4881
      %v4889 = vmul.f32 %v4888, %v4886
      %v4890 = vxor.u32 %v4889, 2147483648
      %v4891 = vsel %vm4770, %v4890, %v4889
      %v4892 = vsub.s32 4, %v4868
      %v4893 = vsel %vm4770, %v4892, %v4868
      %v4894 = vsel %vm4769, %v265, %v4891
      %v4895 = vsel %vm4769, 0, %v4893
      %v4896 = vmul.f32 %v4894, %v4894
      %v4897 = vmul.f32 %v4896, -0.001358992
      %v4898 = vadd.f32 %v4897, 0.041655596
      %v4899 = vmul.f32 %v4896, %v4898
      %v4900 = vadd.f32 %v4899, -0.4999988
      %v4901 = vmul.f32 %v4896, %v4900
      %v4902 = vadd.f32 1.0, %v4901
      %v4903 = vmul.f32 %v4894, %v4894
      %v4904 = vmul.f32 %v4903, -0.00019511016
      %v4905 = vadd.f32 %v4904, 0.008332121
      %v4906 = vmul.f32 %v4903, %v4905
      %v4907 = vadd.f32 %v4906, -0.16666654
      %v4908 = vmul.f32 %v4903, %v4907
      %v4909 = vadd.f32 %v4908, 1.0
      %v4910 = vmul.f32 %v4909, %v4894
      %vm4911 = vweird.f32 %v265
      %v4912 = vadd.s32 %v4895, 3
      %v4913 = vand.u32 %v4912, 3
      %vm4914 = vcmp.lt.s32.totalorder %v4913, 2
      %vm4915 = vcmp.eq.s32.totalorder %v4913, 0
      %v4916 = vxor.u32 %v4910, 2147483648
      %v4917 = vsel %vm4915, %v4902, %v4916
      %vm4918 = vcmp.eq.s32.totalorder %v4913, 2
      %v4919 = vxor.u32 %v4902, 2147483648
      %v4920 = vsel %vm4918, %v4919, %v4910
      %v4921 = vsel %vm4914, %v4917, %v4920
      %v4922 = vsel %vm4911, nan, %v4921
      %v4923 = vand.u32 2147483647, %v268
      %vm4924 = vcmp.le.f32.partialorder %v4923, 0.7853982
      %vm4925 = vcmp.lt.s32.totalorder %v268, 0
      %v4926 = vand.u32 %v268, 2139095040
      %v4927 = vshrl.u32 %v4926, 23
      %v4928 = vsub.s32 %v4927, 127
      %v4929 = vand.u32 2147483647, %v268
      %v4930 = vand.u32 %v4929, 8388607
      %v4931 = vor.u32 %v4930, 8388608
      %v4932 = vsub.s32 0, %v4931
      %v4933 = vadd.s32 %v4928, 1
      %vm4934 = vcmp.gt.s32.totalorder %v4933, 0
      %v4935 = vsel %vm4934, %v4933, 0
      %v4936 = vshrl.u32 %v4935, 5
      %v4937 = vand.u32 %v4935, 31
      %v4938 = vsub.s32 32, %v4937
      %v4939 = vshrl.u32 683565275, %v4938
      %v4940 = vshll.u32 683565275, %v4937
      %v4941 = vshrl.u32 2475754826, %v4938
      %v4942 = vor.u32 %v4940, %v4941
      %v4943 = vshll.u32 2475754826, %v4937
      %v4944 = vshrl.u32 2131351028, %v4938
      %v4945 = vor.u32 %v4943, %v4944
      %v4946 = vshll.u32 2131351028, %v4937
      %v4947 = vshrl.u32 2102212464, %v4938
      %v4948 = vor.u32 %v4946, %v4947
      %v4949 = vshll.u32 2102212464, %v4937
      %v4950 = vshrl.u32 920167782, %v4938
      %v4951 = vor.u32 %v4949, %v4950
      %v4952 = vshll.u32 920167782, %v4937
      %v4953 = vshrl.u32 1326507024, %v4938
      %v4954 = vor.u32 %v4952, %v4953
      %vm4955 = vcmp.lt.s32.totalorder %v4936, 1
      %vm4956 = vcmp.lt.s32.totalorder %v4936, 2
      %vm4957 = vcmp.lt.s32.totalorder %v4936, 3
      %vm4958 = vcmp.lt.s32.totalorder %v4936, 4
      %v4959 = vsel %vm4955, %v4939, %v4942
      %v4960 = vsel %vm4958, %v4948, 2102212464
      %v4961 = vsel %vm4957, %v4945, %v4960
      %v4962 = vsel %vm4956, %v4959, %v4961
      %v4963 = vsel %vm4955, %v4942, %v4945
      %v4964 = vsel %vm4958, %v4951, 920167782
      %v4965 = vsel %vm4957, %v4948, %v4964
      %v4966 = vsel %vm4956, %v4963, %v4965
      %v4967 = vsel %vm4955, %v4945, %v4948
      %v4968 = vsel %vm4958, %v4954, 1326507024
      %v4969 = vsel %vm4957, %v4951, %v4968
      %v4970 = vsel %vm4956, %v4967, %v4969
      %v4971 = vshll.u32 %v4931, 8
      %v4972 = vand.u32 %v4971, 65535
      %v4973 = vshrl.u32 %v4971, 16
      %v4974 = vand.u32 %v4970, 65535
      %v4975 = vshrl.u32 %v4970, 16
      %v4976 = vmul.u32 %v4972, %v4974
      %v4977 = vmul.u32 %v4972, %v4975
      %v4978 = vmul.u32 %v4973, %v4974
      %v4979 = vmul.u32 %v4973, %v4975
      %v4980 = vshll.u32 %v4977, 16
      %v4981 = vshrl.u32 %v4977, 16
      %v4982 = vshll.u32 %v4978, 16
      %v4983 = vshrl.u32 %v4978, 16
      %vm4984 = vc.u32 %v4976, %v4980
      %v4985 = vsel %vm4984, 1, 0
      %v4986 = vadd.s32 %v4976, %v4980
      %v4987 = vadd.s32 %v4979, %v4985
      %vm4988 = vc.u32 %v4986, %v4982
      %v4989 = vsel %vm4988, 1, 0
      %v4990 = vadd.s32 %v4986, %v4982
      %v4991 = vadd.s32 %v4987, %v4989
      %v4992 = vadd.s32 %v4991, %v4981
      %v4993 = vadd.s32 %v4992, %v4983
      %v4994 = vand.u32 %v4971, 65535
      %v4995 = vshrl.u32 %v4971, 16
      %v4996 = vand.u32 %v4966, 65535
      %v4997 = vshrl.u32 %v4966, 16
      %v4998 = vmul.u32 %v4994, %v4996
      %v4999 = vmul.u32 %v4994, %v4997
      %v5000 = vmul.u32 %v4995, %v4996
      %v5001 = vmul.u32 %v4995, %v4997
      %v5002 = vshll.u32 %v4999, 16
      %v5003 = vshrl.u32 %v4999, 16
      %v5004 = vshll.u32 %v5000, 16
      %v5005 = vshrl.u32 %v5000, 16
      %vm5006 = vc.u32 %v4998, %v5002
      %v5007 = vsel %vm5006, 1, 0
      %v5008 = vadd.s32 %v4998, %v5002
      %v5009 = vadd.s32 %v5001, %v5007
      %vm5010 = vc.u32 %v5008, %v5004
      %v5011 = vsel %vm5010, 1, 0
      %v5012 = vadd.s32 %v5008, %v5004
      %v5013 = vadd.s32 %v5009, %v5011
      %v5014 = vadd.s32 %v5013, %v5003
      %v5015 = vadd.s32 %v5014, %v5005
      %v5016 = vmul.u32 %v4971, %v4962
      %v5017 = vadd.s32 %v4993, %v5012
      %vm5018 = vc.u32 %v4993, %v5012
      %v5019 = vadd.s32 %v5015, 1
      %v5020 = vsel %vm5018, %v5019, %v5015
      %v5021 = vadd.s32 %v5016, %v5020
      %v5022 = vadd.s32 %v5021, 536870912
      %v5023 = vshrl.u32 %v5022, 30
      %v5024 = vshll.u32 %v5023, 30
      %v5025 = vsub.s32 %v5021, %v5024
      %vm5026 = vcmp.lt.s32.totalorder %v5025, 0
      %v5027 = vsub.s32 0, %v5025
      %v5028 = vsel %vm5026, %v5027, %v5025
      %v5029 = vclz %v5028
      %v5030 = vsub.s32 %v5029, 2
      %vm5031 = vcmp.gt.s32.totalorder 0, %v5030
      %v5032 = vsel %vm5031, 0, %v5030
      %v5033 = vsub.s32 32, %v5032
      %v5034 = vshll.u32 %v5025, %v5032
      %v5035 = vshrl.u32 %v5017, %v5033
      %v5036 = vor.u32 %v5034, %v5035
      %v5037 = vsub.s32 4294967266, %v5032
      %v5038 = vadd.s32 %v5037, 127
      %v5039 = vshll.u32 %v5038, 23
      %v5040 = vor.u32 4788187, %v5039
      %v5041 = vand.u32 2147483647, %v5040
      %v5043 = vcvt.s32.f32 %v5036
      %v5044 = vmul.f32 %v5043, %v5041
      %v5045 = vxor.u32 %v5044, 2147483648
      %v5046 = vsel %vm4925, %v5045, %v5044
      %v5047 = vsub.s32 4, %v5023
      %v5048 = vsel %vm4925, %v5047, %v5023
      %v5049 = vsel %vm4924, %v268, %v5046
      %v5050 = vsel %vm4924, 0, %v5048
      %v5051 = vmul.f32 %v5049, %v5049
      %v5052 = vmul.f32 %v5051, -0.001358992
      %v5053 = vadd.f32 %v5052, 0.041655596
      %v5054 = vmul.f32 %v5051, %v5053
      %v5055 = vadd.f32 %v5054, -0.4999988
      %v5056 = vmul.f32 %v5051, %v5055
      %v5057 = vadd.f32 1.0, %v5056
      %v5058 = vmul.f32 %v5049, %v5049
      %v5059 = vmul.f32 %v5058, -0.00019511016
      %v5060 = vadd.f32 %v5059, 0.008332121
      %v5061 = vmul.f32 %v5058, %v5060
      %v5062 = vadd.f32 %v5061, -0.16666654
      %v5063 = vmul.f32 %v5058, %v5062
      %v5064 = vadd.f32 %v5063, 1.0
      %v5065 = vmul.f32 %v5064, %v5049
      %vm5066 = vweird.f32 %v268
      %v5067 = vadd.s32 %v5050, 3
      %v5068 = vand.u32 %v5067, 3
      %vm5069 = vcmp.lt.s32.totalorder %v5068, 2
      %vm5070 = vcmp.eq.s32.totalorder %v5068, 0
      %v5071 = vxor.u32 %v5065, 2147483648
      %v5072 = vsel %vm5070, %v5057, %v5071
      %vm5073 = vcmp.eq.s32.totalorder %v5068, 2
      %v5074 = vxor.u32 %v5057, 2147483648
      %v5075 = vsel %vm5073, %v5074, %v5065
      %v5076 = vsel %vm5069, %v5072, %v5075
      %v5077 = vsel %vm5066, nan, %v5076
      %v5078 = vand.u32 2147483647, %v271
      %vm5079 = vcmp.le.f32.partialorder %v5078, 0.7853982
      %vm5080 = vcmp.lt.s32.totalorder %v271, 0
      %v5081 = vand.u32 %v271, 2139095040
      %v5082 = vshrl.u32 %v5081, 23
      %v5083 = vsub.s32 %v5082, 127
      %v5084 = vand.u32 2147483647, %v271
      %v5085 = vand.u32 %v5084, 8388607
      %v5086 = vor.u32 %v5085, 8388608
      %v5087 = vsub.s32 0, %v5086
      %v5088 = vadd.s32 %v5083, 1
      %vm5089 = vcmp.gt.s32.totalorder %v5088, 0
      %v5090 = vsel %vm5089, %v5088, 0
      %v5091 = vshrl.u32 %v5090, 5
      %v5092 = vand.u32 %v5090, 31
      %v5093 = vsub.s32 32, %v5092
      %v5094 = vshrl.u32 683565275, %v5093
      %v5095 = vshll.u32 683565275, %v5092
      %v5096 = vshrl.u32 2475754826, %v5093
      %v5097 = vor.u32 %v5095, %v5096
      %v5098 = vshll.u32 2475754826, %v5092
      %v5099 = vshrl.u32 2131351028, %v5093
      %v5100 = vor.u32 %v5098, %v5099
      %v5101 = vshll.u32 2131351028, %v5092
      %v5102 = vshrl.u32 2102212464, %v5093
      %v5103 = vor.u32 %v5101, %v5102
      %v5104 = vshll.u32 2102212464, %v5092
      %v5105 = vshrl.u32 920167782, %v5093
      %v5106 = vor.u32 %v5104, %v5105
      %v5107 = vshll.u32 920167782, %v5092
      %v5108 = vshrl.u32 1326507024, %v5093
      %v5109 = vor.u32 %v5107, %v5108
      %vm5110 = vcmp.lt.s32.totalorder %v5091, 1
      %vm5111 = vcmp.lt.s32.totalorder %v5091, 2
      %vm5112 = vcmp.lt.s32.totalorder %v5091, 3
      %vm5113 = vcmp.lt.s32.totalorder %v5091, 4
      %v5114 = vsel %vm5110, %v5094, %v5097
      %v5115 = vsel %vm5113, %v5103, 2102212464
      %v5116 = vsel %vm5112, %v5100, %v5115
      %v5117 = vsel %vm5111, %v5114, %v5116
      %v5118 = vsel %vm5110, %v5097, %v5100
      %v5119 = vsel %vm5113, %v5106, 920167782
      %v5120 = vsel %vm5112, %v5103, %v5119
      %v5121 = vsel %vm5111, %v5118, %v5120
      %v5122 = vsel %vm5110, %v5100, %v5103
      %v5123 = vsel %vm5113, %v5109, 1326507024
      %v5124 = vsel %vm5112, %v5106, %v5123
      %v5125 = vsel %vm5111, %v5122, %v5124
      %v5126 = vshll.u32 %v5086, 8
      %v5127 = vand.u32 %v5126, 65535
      %v5128 = vshrl.u32 %v5126, 16
      %v5129 = vand.u32 %v5125, 65535
      %v5130 = vshrl.u32 %v5125, 16
      %v5131 = vmul.u32 %v5127, %v5129
      %v5132 = vmul.u32 %v5127, %v5130
      %v5133 = vmul.u32 %v5128, %v5129
      %v5134 = vmul.u32 %v5128, %v5130
      %v5135 = vshll.u32 %v5132, 16
      %v5136 = vshrl.u32 %v5132, 16
      %v5137 = vshll.u32 %v5133, 16
      %v5138 = vshrl.u32 %v5133, 16
      %vm5139 = vc.u32 %v5131, %v5135
      %v5140 = vsel %vm5139, 1, 0
      %v5141 = vadd.s32 %v5131, %v5135
      %v5142 = vadd.s32 %v5134, %v5140
      %vm5143 = vc.u32 %v5141, %v5137
      %v5144 = vsel %vm5143, 1, 0
      %v5145 = vadd.s32 %v5141, %v5137
      %v5146 = vadd.s32 %v5142, %v5144
      %v5147 = vadd.s32 %v5146, %v5136
      %v5148 = vadd.s32 %v5147, %v5138
      %v5149 = vand.u32 %v5126, 65535
      %v5150 = vshrl.u32 %v5126, 16
      %v5151 = vand.u32 %v5121, 65535
      %v5152 = vshrl.u32 %v5121, 16
      %v5153 = vmul.u32 %v5149, %v5151
      %v5154 = vmul.u32 %v5149, %v5152
      %v5155 = vmul.u32 %v5150, %v5151
      %v5156 = vmul.u32 %v5150, %v5152
      %v5157 = vshll.u32 %v5154, 16
      %v5158 = vshrl.u32 %v5154, 16
      %v5159 = vshll.u32 %v5155, 16
      %v5160 = vshrl.u32 %v5155, 16
      %vm5161 = vc.u32 %v5153, %v5157
      %v5162 = vsel %vm5161, 1, 0
      %v5163 = vadd.s32 %v5153, %v5157
      %v5164 = vadd.s32 %v5156, %v5162
      %vm5165 = vc.u32 %v5163, %v5159
      %v5166 = vsel %vm5165, 1, 0
      %v5167 = vadd.s32 %v5163, %v5159
      %v5168 = vadd.s32 %v5164, %v5166
      %v5169 = vadd.s32 %v5168, %v5158
      %v5170 = vadd.s32 %v5169, %v5160
      %v5171 = vmul.u32 %v5126, %v5117
      %v5172 = vadd.s32 %v5148, %v5167
      %vm5173 = vc.u32 %v5148, %v5167
      %v5174 = vadd.s32 %v5170, 1
      %v5175 = vsel %vm5173, %v5174, %v5170
      %v5176 = vadd.s32 %v5171, %v5175
      %v5177 = vadd.s32 %v5176, 536870912
      %v5178 = vshrl.u32 %v5177, 30
      %v5179 = vshll.u32 %v5178, 30
      %v5180 = vsub.s32 %v5176, %v5179
      %vm5181 = vcmp.lt.s32.totalorder %v5180, 0
      %v5182 = vsub.s32 0, %v5180
      %v5183 = vsel %vm5181, %v5182, %v5180
      %v5184 = vclz %v5183
      %v5185 = vsub.s32 %v5184, 2
      %vm5186 = vcmp.gt.s32.totalorder 0, %v5185
      %v5187 = vsel %vm5186, 0, %v5185
      %v5188 = vsub.s32 32, %v5187
      %v5189 = vshll.u32 %v5180, %v5187
      %v5190 = vshrl.u32 %v5172, %v5188
      %v5191 = vor.u32 %v5189, %v5190
      %v5192 = vsub.s32 4294967266, %v5187
      %v5193 = vadd.s32 %v5192, 127
      %v5194 = vshll.u32 %v5193, 23
      %v5195 = vor.u32 4788187, %v5194
      %v5196 = vand.u32 2147483647, %v5195
      %v5198 = vcvt.s32.f32 %v5191
      %v5199 = vmul.f32 %v5198, %v5196
      %v5200 = vxor.u32 %v5199, 2147483648
      %v5201 = vsel %vm5080, %v5200, %v5199
      %v5202 = vsub.s32 4, %v5178
      %v5203 = vsel %vm5080, %v5202, %v5178
      %v5204 = vsel %vm5079, %v271, %v5201
      %v5205 = vsel %vm5079, 0, %v5203
      %v5206 = vmul.f32 %v5204, %v5204
      %v5207 = vmul.f32 %v5206, -0.001358992
      %v5208 = vadd.f32 %v5207, 0.041655596
      %v5209 = vmul.f32 %v5206, %v5208
      %v5210 = vadd.f32 %v5209, -0.4999988
      %v5211 = vmul.f32 %v5206, %v5210
      %v5212 = vadd.f32 1.0, %v5211
      %v5213 = vmul.f32 %v5204, %v5204
      %v5214 = vmul.f32 %v5213, -0.00019511016
      %v5215 = vadd.f32 %v5214, 0.008332121
      %v5216 = vmul.f32 %v5213, %v5215
      %v5217 = vadd.f32 %v5216, -0.16666654
      %v5218 = vmul.f32 %v5213, %v5217
      %v5219 = vadd.f32 %v5218, 1.0
      %v5220 = vmul.f32 %v5219, %v5204
      %vm5221 = vweird.f32 %v271
      %v5222 = vadd.s32 %v5205, 3
      %v5223 = vand.u32 %v5222, 3
      %vm5224 = vcmp.lt.s32.totalorder %v5223, 2
      %vm5225 = vcmp.eq.s32.totalorder %v5223, 0
      %v5226 = vxor.u32 %v5220, 2147483648
      %v5227 = vsel %vm5225, %v5212, %v5226
      %vm5228 = vcmp.eq.s32.totalorder %v5223, 2
      %v5229 = vxor.u32 %v5212, 2147483648
      %v5230 = vsel %vm5228, %v5229, %v5220
      %v5231 = vsel %vm5224, %v5227, %v5230
      %v5232 = vsel %vm5221, nan, %v5231
      %v5233 = vpack.c.bf16 %v427, %v427
      %v5234 = vpack.c.bf16 %v582, %v582
      %v5235 = vpack.c.bf16 %v737, %v737
      %v5236 = vpack.c.bf16 %v892, %v892
      %v5237 = vpack.c.bf16 %v1047, %v1047
      %v5238 = vpack.c.bf16 %v1202, %v1202
      %v5239 = vpack.c.bf16 %v1357, %v1357
      %v5240 = vpack.c.bf16 %v1512, %v1512
      %v5241 = vpack.c.bf16 %v1667, %v1667
      %v5242 = vpack.c.bf16 %v1822, %v1822
      %v5243 = vpack.c.bf16 %v1977, %v1977
      %v5244 = vpack.c.bf16 %v2132, %v2132
      %v5245 = vpack.c.bf16 %v2287, %v2287
      %v5246 = vpack.c.bf16 %v2442, %v2442
      %v5247 = vpack.c.bf16 %v2597, %v2597
      %v5248 = vpack.c.bf16 %v2752, %v2752
      %v5249 = vpack.c.bf16 %v2907, %v2907
      %v5250 = vpack.c.bf16 %v3062, %v3062
      %v5251 = vpack.c.bf16 %v3217, %v3217
      %v5252 = vpack.c.bf16 %v3372, %v3372
      %v5253 = vpack.c.bf16 %v3527, %v3527
      %v5254 = vpack.c.bf16 %v3682, %v3682
      %v5255 = vpack.c.bf16 %v3837, %v3837
      %v5256 = vpack.c.bf16 %v3992, %v3992
      %v5257 = vpack.c.bf16 %v4147, %v4147
      %v5258 = vpack.c.bf16 %v4302, %v4302
      %v5259 = vpack.c.bf16 %v4457, %v4457
      %v5260 = vpack.c.bf16 %v4612, %v4612
      %v5261 = vpack.c.bf16 %v4767, %v4767
      %v5262 = vpack.c.bf16 %v4922, %v4922
      %v5263 = vpack.c.bf16 %v5077, %v5077
      %v5264 = vpack.c.bf16 %v5232, %v5232
      %s5265 = sshra.s32 %s21, 7
      %s5266 = sand.u32 %s21, 127
      %s5267 = smul.addr %s5265, 4
      %s5268 = scalar_lea.vmem [#allocation2], %s5267
      %5269 = vst [vmem:[%s5268] sm:$0xf] %v5233
      %5270 = vst [vmem:[%s5268 + $0x4] sm:$0xf] %v5234
      %5271 = vst [vmem:[%s5268 + $0x8] sm:$0xf] %v5235
      %5272 = vst [vmem:[%s5268 + $0xc] sm:$0xf] %v5236
      %5273 = vst [vmem:[%s5268 + $0x10] sm:$0xf] %v5237
      %5274 = vst [vmem:[%s5268 + $0x14] sm:$0xf] %v5238
      %5275 = vst [vmem:[%s5268 + $0x18] sm:$0xf] %v5239
      %5276 = vst [vmem:[%s5268 + $0x1c] sm:$0xf] %v5240
      %5277 = vst [vmem:[%s5268 + $0x20] sm:$0xf] %v5241
      %5278 = vst [vmem:[%s5268 + $0x24] sm:$0xf] %v5242
      %5279 = vst [vmem:[%s5268 + $0x28] sm:$0xf] %v5243
      %5280 = vst [vmem:[%s5268 + $0x2c] sm:$0xf] %v5244
      %5281 = vst [vmem:[%s5268 + $0x30] sm:$0xf] %v5245
      %5282 = vst [vmem:[%s5268 + $0x34] sm:$0xf] %v5246
      %5283 = vst [vmem:[%s5268 + $0x38] sm:$0xf] %v5247
      %5284 = vst [vmem:[%s5268 + $0x3c] sm:$0xf] %v5248
      %5285 = vst [vmem:[%s5268 + $0x40] sm:$0xf] %v5249
      %5286 = vst [vmem:[%s5268 + $0x44] sm:$0xf] %v5250
      %5287 = vst [vmem:[%s5268 + $0x48] sm:$0xf] %v5251
      %5288 = vst [vmem:[%s5268 + $0x4c] sm:$0xf] %v5252
      %5289 = vst [vmem:[%s5268 + $0x50] sm:$0xf] %v5253
      %5290 = vst [vmem:[%s5268 + $0x54] sm:$0xf] %v5254
      %5291 = vst [vmem:[%s5268 + $0x58] sm:$0xf] %v5255
      %5292 = vst [vmem:[%s5268 + $0x5c] sm:$0xf] %v5256
      %5293 = vst [vmem:[%s5268 + $0x60] sm:$0xf] %v5257
      %5294 = vst [vmem:[%s5268 + $0x64] sm:$0xf] %v5258
      %5295 = vst [vmem:[%s5268 + $0x68] sm:$0xf] %v5259
      %5296 = vst [vmem:[%s5268 + $0x6c] sm:$0xf] %v5260
      %5297 = vst [vmem:[%s5268 + $0x70] sm:$0xf] %v5261
      %5298 = vst [vmem:[%s5268 + $0x74] sm:$0xf] %v5262
      %5299 = vst [vmem:[%s5268 + $0x78] sm:$0xf] %v5263
      %5300 = vst [vmem:[%s5268 + $0x7c] sm:$0xf] %v5264
    $region25: #{tpu_custom_call.1} parent=1 // pred_fallthru
      _
    %p5301 = scmp.eq.s32.totalorder 0, 0
    // Predicated region
    $region26: #{tpu_custom_call.1} parent=1 // pred_check
      %p5302 = pneg %p5301
    $region27: #{tpu_custom_call.1} parent=1 // pred_check_branch
      %5304 = sbr.rel (%p5302) target = $region29
    $region28: #{tpu_custom_call.1} parent=1 // pred_region
      %5305 = vst [vmem:[#allocation3] sm:$0xff] 0.0
      %5306 = vst [vmem:[#allocation3 + $0x8] sm:$0xff] 0.0
      %5307 = vst [vmem:[#allocation3 + $0x10] sm:$0xff] 0.0
      %5308 = vst [vmem:[#allocation3 + $0x18] sm:$0xff] 0.0
      %5309 = vst [vmem:[#allocation3 + $0x20] sm:$0xff] 0.0
      %5310 = vst [vmem:[#allocation3 + $0x28] sm:$0xff] 0.0
      %5311 = vst [vmem:[#allocation3 + $0x30] sm:$0xff] 0.0
      %5312 = vst [vmem:[#allocation3 + $0x38] sm:$0xff] 0.0
      %5313 = vst [vmem:[#allocation3 + $0x40] sm:$0xff] 0.0
      %5314 = vst [vmem:[#allocation3 + $0x48] sm:$0xff] 0.0
      %5315 = vst [vmem:[#allocation3 + $0x50] sm:$0xff] 0.0
      %5316 = vst [vmem:[#allocation3 + $0x58] sm:$0xff] 0.0
      %5317 = vst [vmem:[#allocation3 + $0x60] sm:$0xff] 0.0
      %5318 = vst [vmem:[#allocation3 + $0x68] sm:$0xff] 0.0
      %5319 = vst [vmem:[#allocation3 + $0x70] sm:$0xff] 0.0
      %5320 = vst [vmem:[#allocation3 + $0x78] sm:$0xff] 0.0
      %5321 = vst [vmem:[#allocation3 + $0x80] sm:$0xff] 0.0
      %5322 = vst [vmem:[#allocation3 + $0x88] sm:$0xff] 0.0
      %5323 = vst [vmem:[#allocation3 + $0x90] sm:$0xff] 0.0
      %5324 = vst [vmem:[#allocation3 + $0x98] sm:$0xff] 0.0
      %5325 = vst [vmem:[#allocation3 + $0xa0] sm:$0xff] 0.0
      %5326 = vst [vmem:[#allocation3 + $0xa8] sm:$0xff] 0.0
      %5327 = vst [vmem:[#allocation3 + $0xb0] sm:$0xff] 0.0
      %5328 = vst [vmem:[#allocation3 + $0xb8] sm:$0xff] 0.0
      %5329 = vst [vmem:[#allocation3 + $0xc0] sm:$0xff] 0.0
      %5330 = vst [vmem:[#allocation3 + $0xc8] sm:$0xff] 0.0
      %5331 = vst [vmem:[#allocation3 + $0xd0] sm:$0xff] 0.0
      %5332 = vst [vmem:[#allocation3 + $0xd8] sm:$0xff] 0.0
      %5333 = vst [vmem:[#allocation3 + $0xe0] sm:$0xff] 0.0
      %5334 = vst [vmem:[#allocation3 + $0xe8] sm:$0xff] 0.0
      %5335 = vst [vmem:[#allocation3 + $0xf0] sm:$0xff] 0.0
      %5336 = vst [vmem:[#allocation3 + $0xf8] sm:$0xff] 0.0
      %5337 = vst [vmem:[#allocation3 + $0x100] sm:$0xff] 0.0
      %5338 = vst [vmem:[#allocation3 + $0x108] sm:$0xff] 0.0
      %5339 = vst [vmem:[#allocation3 + $0x110] sm:$0xff] 0.0
      %5340 = vst [vmem:[#allocation3 + $0x118] sm:$0xff] 0.0
      %5341 = vst [vmem:[#allocation3 + $0x120] sm:$0xff] 0.0
      %5342 = vst [vmem:[#allocation3 + $0x128] sm:$0xff] 0.0
      %5343 = vst [vmem:[#allocation3 + $0x130] sm:$0xff] 0.0
      %5344 = vst [vmem:[#allocation3 + $0x138] sm:$0xff] 0.0
      %5345 = vst [vmem:[#allocation3 + $0x140] sm:$0xff] 0.0
      %5346 = vst [vmem:[#allocation3 + $0x148] sm:$0xff] 0.0
      %5347 = vst [vmem:[#allocation3 + $0x150] sm:$0xff] 0.0
      %5348 = vst [vmem:[#allocation3 + $0x158] sm:$0xff] 0.0
      %5349 = vst [vmem:[#allocation3 + $0x160] sm:$0xff] 0.0
      %5350 = vst [vmem:[#allocation3 + $0x168] sm:$0xff] 0.0
      %5351 = vst [vmem:[#allocation3 + $0x170] sm:$0xff] 0.0
      %5352 = vst [vmem:[#allocation3 + $0x178] sm:$0xff] 0.0
      %5353 = vst [vmem:[#allocation3 + $0x180] sm:$0xff] 0.0
      %5354 = vst [vmem:[#allocation3 + $0x188] sm:$0xff] 0.0
      %5355 = vst [vmem:[#allocation3 + $0x190] sm:$0xff] 0.0
      %5356 = vst [vmem:[#allocation3 + $0x198] sm:$0xff] 0.0
      %5357 = vst [vmem:[#allocation3 + $0x1a0] sm:$0xff] 0.0
      %5358 = vst [vmem:[#allocation3 + $0x1a8] sm:$0xff] 0.0
      %5359 = vst [vmem:[#allocation3 + $0x1b0] sm:$0xff] 0.0
      %5360 = vst [vmem:[#allocation3 + $0x1b8] sm:$0xff] 0.0
      %5361 = vst [vmem:[#allocation3 + $0x1c0] sm:$0xff] 0.0
      %5362 = vst [vmem:[#allocation3 + $0x1c8] sm:$0xff] 0.0
      %5363 = vst [vmem:[#allocation3 + $0x1d0] sm:$0xff] 0.0
      %5364 = vst [vmem:[#allocation3 + $0x1d8] sm:$0xff] 0.0
      %5365 = vst [vmem:[#allocation3 + $0x1e0] sm:$0xff] 0.0
      %5366 = vst [vmem:[#allocation3 + $0x1e8] sm:$0xff] 0.0
      %5367 = vst [vmem:[#allocation3 + $0x1f0] sm:$0xff] 0.0
      %5368 = vst [vmem:[#allocation3 + $0x1f8] sm:$0xff] 0.0
    $region29: #{tpu_custom_call.1} parent=1 // pred_fallthru
      _
    %s5369 = sshra.s32 %s21, 7
    %s5370 = sand.u32 %s21, 127
    %s5371 = smul.addr %s5369, 4
    %s5372 = scalar_lea.vmem [#allocation2], %s5371
    %v5373 = vld [vmem:[%s5372] sm:$0xf]
    %v5374 = vld [vmem:[%s5372 + $0x4] sm:$0xf]
    %v5375 = vld [vmem:[%s5372 + $0x8] sm:$0xf]
    %v5376 = vld [vmem:[%s5372 + $0xc] sm:$0xf]
    %v5377 = vld [vmem:[%s5372 + $0x10] sm:$0xf]
    %v5378 = vld [vmem:[%s5372 + $0x14] sm:$0xf]
    %v5379 = vld [vmem:[%s5372 + $0x18] sm:$0xf]
    %v5380 = vld [vmem:[%s5372 + $0x1c] sm:$0xf]
    %v5381 = vld [vmem:[%s5372 + $0x20] sm:$0xf]
    %v5382 = vld [vmem:[%s5372 + $0x24] sm:$0xf]
    %v5383 = vld [vmem:[%s5372 + $0x28] sm:$0xf]
    %v5384 = vld [vmem:[%s5372 + $0x2c] sm:$0xf]
    %v5385 = vld [vmem:[%s5372 + $0x30] sm:$0xf]
    %v5386 = vld [vmem:[%s5372 + $0x34] sm:$0xf]
    %v5387 = vld [vmem:[%s5372 + $0x38] sm:$0xf]
    %v5388 = vld [vmem:[%s5372 + $0x3c] sm:$0xf]
    %v5389 = vld [vmem:[%s5372 + $0x40] sm:$0xf]
    %v5390 = vld [vmem:[%s5372 + $0x44] sm:$0xf]
    %v5391 = vld [vmem:[%s5372 + $0x48] sm:$0xf]
    %v5392 = vld [vmem:[%s5372 + $0x4c] sm:$0xf]
    %v5393 = vld [vmem:[%s5372 + $0x50] sm:$0xf]
    %v5394 = vld [vmem:[%s5372 + $0x54] sm:$0xf]
    %v5395 = vld [vmem:[%s5372 + $0x58] sm:$0xf]
    %v5396 = vld [vmem:[%s5372 + $0x5c] sm:$0xf]
    %v5397 = vld [vmem:[%s5372 + $0x60] sm:$0xf]
    %v5398 = vld [vmem:[%s5372 + $0x64] sm:$0xf]
    %v5399 = vld [vmem:[%s5372 + $0x68] sm:$0xf]
    %v5400 = vld [vmem:[%s5372 + $0x6c] sm:$0xf]
    %v5401 = vld [vmem:[%s5372 + $0x70] sm:$0xf]
    %v5402 = vld [vmem:[%s5372 + $0x74] sm:$0xf]
    %v5403 = vld [vmem:[%s5372 + $0x78] sm:$0xf]
    %v5404 = vld [vmem:[%s5372 + $0x7c] sm:$0xf]
    %v5405 = vld [vmem:[#allocation3] sm:$0xff]
    %v5406 = vld [vmem:[#allocation3 + $0x8] sm:$0xff]
    %v5407 = vld [vmem:[#allocation3 + $0x10] sm:$0xff]
    %v5408 = vld [vmem:[#allocation3 + $0x18] sm:$0xff]
    %v5409 = vld [vmem:[#allocation3 + $0x20] sm:$0xff]
    %v5410 = vld [vmem:[#allocation3 + $0x28] sm:$0xff]
    %v5411 = vld [vmem:[#allocation3 + $0x30] sm:$0xff]
    %v5412 = vld [vmem:[#allocation3 + $0x38] sm:$0xff]
    %v5413 = vld [vmem:[#allocation3 + $0x40] sm:$0xff]
    %v5414 = vld [vmem:[#allocation3 + $0x48] sm:$0xff]
    %v5415 = vld [vmem:[#allocation3 + $0x50] sm:$0xff]
    %v5416 = vld [vmem:[#allocation3 + $0x58] sm:$0xff]
    %v5417 = vld [vmem:[#allocation3 + $0x60] sm:$0xff]
    %v5418 = vld [vmem:[#allocation3 + $0x68] sm:$0xff]
    %v5419 = vld [vmem:[#allocation3 + $0x70] sm:$0xff]
    %v5420 = vld [vmem:[#allocation3 + $0x78] sm:$0xff]
    %v5421 = vld [vmem:[#allocation3 + $0x80] sm:$0xff]
    %v5422 = vld [vmem:[#allocation3 + $0x88] sm:$0xff]
    %v5423 = vld [vmem:[#allocation3 + $0x90] sm:$0xff]
    %v5424 = vld [vmem:[#allocation3 + $0x98] sm:$0xff]
    %v5425 = vld [vmem:[#allocation3 + $0xa0] sm:$0xff]
    %v5426 = vld [vmem:[#allocation3 + $0xa8] sm:$0xff]
    %v5427 = vld [vmem:[#allocation3 + $0xb0] sm:$0xff]
    %v5428 = vld [vmem:[#allocation3 + $0xb8] sm:$0xff]
    %v5429 = vld [vmem:[#allocation3 + $0xc0] sm:$0xff]
    %v5430 = vld [vmem:[#allocation3 + $0xc8] sm:$0xff]
    %v5431 = vld [vmem:[#allocation3 + $0xd0] sm:$0xff]
    %v5432 = vld [vmem:[#allocation3 + $0xd8] sm:$0xff]
    %v5433 = vld [vmem:[#allocation3 + $0xe0] sm:$0xff]
    %v5434 = vld [vmem:[#allocation3 + $0xe8] sm:$0xff]
    %v5435 = vld [vmem:[#allocation3 + $0xf0] sm:$0xff]
    %v5436 = vld [vmem:[#allocation3 + $0xf8] sm:$0xff]
    %v5437 = vld [vmem:[#allocation3 + $0x100] sm:$0xff]
    %v5438 = vld [vmem:[#allocation3 + $0x108] sm:$0xff]
    %v5439 = vld [vmem:[#allocation3 + $0x110] sm:$0xff]
    %v5440 = vld [vmem:[#allocation3 + $0x118] sm:$0xff]
    %v5441 = vld [vmem:[#allocation3 + $0x120] sm:$0xff]
    %v5442 = vld [vmem:[#allocation3 + $0x128] sm:$0xff]
    %v5443 = vld [vmem:[#allocation3 + $0x130] sm:$0xff]
    %v5444 = vld [vmem:[#allocation3 + $0x138] sm:$0xff]
    %v5445 = vld [vmem:[#allocation3 + $0x140] sm:$0xff]
    %v5446 = vld [vmem:[#allocation3 + $0x148] sm:$0xff]
    %v5447 = vld [vmem:[#allocation3 + $0x150] sm:$0xff]
    %v5448 = vld [vmem:[#allocation3 + $0x158] sm:$0xff]
    %v5449 = vld [vmem:[#allocation3 + $0x160] sm:$0xff]
    %v5450 = vld [vmem:[#allocation3 + $0x168] sm:$0xff]
    %v5451 = vld [vmem:[#allocation3 + $0x170] sm:$0xff]
    %v5452 = vld [vmem:[#allocation3 + $0x178] sm:$0xff]
    %v5453 = vld [vmem:[#allocation3 + $0x180] sm:$0xff]
    %v5454 = vld [vmem:[#allocation3 + $0x188] sm:$0xff]
    %v5455 = vld [vmem:[#allocation3 + $0x190] sm:$0xff]
    %v5456 = vld [vmem:[#allocation3 + $0x198] sm:$0xff]
    %v5457 = vld [vmem:[#allocation3 + $0x1a0] sm:$0xff]
    %v5458 = vld [vmem:[#allocation3 + $0x1a8] sm:$0xff]
    %v5459 = vld [vmem:[#allocation3 + $0x1b0] sm:$0xff]
    %v5460 = vld [vmem:[#allocation3 + $0x1b8] sm:$0xff]
    %v5461 = vld [vmem:[#allocation3 + $0x1c0] sm:$0xff]
    %v5462 = vld [vmem:[#allocation3 + $0x1c8] sm:$0xff]
    %v5463 = vld [vmem:[#allocation3 + $0x1d0] sm:$0xff]
    %v5464 = vld [vmem:[#allocation3 + $0x1d8] sm:$0xff]
    %v5465 = vld [vmem:[#allocation3 + $0x1e0] sm:$0xff]
    %v5466 = vld [vmem:[#allocation3 + $0x1e8] sm:$0xff]
    %v5467 = vld [vmem:[#allocation3 + $0x1f0] sm:$0xff]
    %v5468 = vld [vmem:[#allocation3 + $0x1f8] sm:$0xff]
    %v5469 = vld [vmem:[%s3] sm:$0xff]
    %v5470 = vld [vmem:[%s3 + $0x8] sm:$0xff]
    %v5471 = vld [vmem:[%s3 + $0x10] sm:$0xff]
    %v5472 = vld [vmem:[%s3 + $0x18] sm:$0xff]
    %v5473 = vld [vmem:[%s3 + $0x20] sm:$0xff]
    %v5474 = vld [vmem:[%s3 + $0x28] sm:$0xff]
    %v5475 = vld [vmem:[%s3 + $0x30] sm:$0xff]
    %v5476 = vld [vmem:[%s3 + $0x38] sm:$0xff]
    %v5477 = vld [vmem:[%s3 + $0x40] sm:$0xff]
    %v5478 = vld [vmem:[%s3 + $0x48] sm:$0xff]
    %v5479 = vld [vmem:[%s3 + $0x50] sm:$0xff]
    %v5480 = vld [vmem:[%s3 + $0x58] sm:$0xff]
    %v5481 = vld [vmem:[%s3 + $0x60] sm:$0xff]
    %v5482 = vld [vmem:[%s3 + $0x68] sm:$0xff]
    %v5483 = vld [vmem:[%s3 + $0x70] sm:$0xff]
    %v5484 = vld [vmem:[%s3 + $0x78] sm:$0xff]
    %v5517 = vunpack.c.l.b16 %v5373
    %v5518 = vunpack.c.l.b16 %v5374
    %v5519 = vunpack.c.l.b16 %v5375
    %v5520 = vunpack.c.l.b16 %v5376
    %v5521 = vunpack.c.l.b16 %v5377
    %v5522 = vunpack.c.l.b16 %v5378
    %v5523 = vunpack.c.l.b16 %v5379
    %v5524 = vunpack.c.l.b16 %v5380
    %v5525 = vunpack.c.l.b16 %v5381
    %v5526 = vunpack.c.l.b16 %v5382
    %v5527 = vunpack.c.l.b16 %v5383
    %v5528 = vunpack.c.l.b16 %v5384
    %v5529 = vunpack.c.l.b16 %v5385
    %v5530 = vunpack.c.l.b16 %v5386
    %v5531 = vunpack.c.l.b16 %v5387
    %v5532 = vunpack.c.l.b16 %v5388
    %v5533 = vunpack.c.l.b16 %v5389
    %v5534 = vunpack.c.l.b16 %v5390
    %v5535 = vunpack.c.l.b16 %v5391
    %v5536 = vunpack.c.l.b16 %v5392
    %v5537 = vunpack.c.l.b16 %v5393
    %v5538 = vunpack.c.l.b16 %v5394
    %v5539 = vunpack.c.l.b16 %v5395
    %v5540 = vunpack.c.l.b16 %v5396
    %v5541 = vunpack.c.l.b16 %v5397
    %v5542 = vunpack.c.l.b16 %v5398
    %v5543 = vunpack.c.l.b16 %v5399
    %v5544 = vunpack.c.l.b16 %v5400
    %v5545 = vunpack.c.l.b16 %v5401
    %v5546 = vunpack.c.l.b16 %v5402
    %v5547 = vunpack.c.l.b16 %v5403
    %v5548 = vunpack.c.l.b16 %v5404
    %v5549 = vpack.c.b16 %v5518, %v5517
    %v5550 = vpack.c.b16 %v5520, %v5519
    %v5551 = vpack.c.b16 %v5522, %v5521
    %v5552 = vpack.c.b16 %v5524, %v5523
    %v5553 = vpack.c.b16 %v5526, %v5525
    %v5554 = vpack.c.b16 %v5528, %v5527
    %v5555 = vpack.c.b16 %v5530, %v5529
    %v5556 = vpack.c.b16 %v5532, %v5531
    %v5557 = vpack.c.b16 %v5534, %v5533
    %v5558 = vpack.c.b16 %v5536, %v5535
    %v5559 = vpack.c.b16 %v5538, %v5537
    %v5560 = vpack.c.b16 %v5540, %v5539
    %v5561 = vpack.c.b16 %v5542, %v5541
    %v5562 = vpack.c.b16 %v5544, %v5543
    %v5563 = vpack.c.b16 %v5546, %v5545
    %v5564 = vpack.c.b16 %v5548, %v5547
    %v5597 = vunpack.c.l.b16 %v5469
    %v5598 = vunpack.c.h.b16 %v5469
    %v5599 = vunpack.c.l.b16 %v5470
    %v5600 = vunpack.c.h.b16 %v5470
    %v5601 = vunpack.c.l.b16 %v5471
    %v5602 = vunpack.c.h.b16 %v5471
    %v5603 = vunpack.c.l.b16 %v5472
    %v5604 = vunpack.c.h.b16 %v5472
    %v5605 = vunpack.c.l.b16 %v5473
    %v5606 = vunpack.c.h.b16 %v5473
    %v5607 = vunpack.c.l.b16 %v5474
    %v5608 = vunpack.c.h.b16 %v5474
    %v5609 = vunpack.c.l.b16 %v5475
    %v5610 = vunpack.c.h.b16 %v5475
    %v5611 = vunpack.c.l.b16 %v5476
    %v5612 = vunpack.c.h.b16 %v5476
    %v5613 = vunpack.c.l.b16 %v5477
    %v5614 = vunpack.c.h.b16 %v5477
    %v5615 = vunpack.c.l.b16 %v5478
    %v5616 = vunpack.c.h.b16 %v5478
    %v5617 = vunpack.c.l.b16 %v5479
    %v5618 = vunpack.c.h.b16 %v5479
    %v5619 = vunpack.c.l.b16 %v5480
    %v5620 = vunpack.c.h.b16 %v5480
    %v5621 = vunpack.c.l.b16 %v5481
    %v5622 = vunpack.c.h.b16 %v5481
    %v5623 = vunpack.c.l.b16 %v5482
    %v5624 = vunpack.c.h.b16 %v5482
    %v5625 = vunpack.c.l.b16 %v5483
    %v5626 = vunpack.c.h.b16 %v5483
    %v5627 = vunpack.c.l.b16 %v5484
    %v5628 = vunpack.c.h.b16 %v5484
    %v5629 = vpack.c.b16 %v5599, %v5597
    %v5630 = vpack.c.b16 %v5600, %v5598
    %v5631 = vpack.c.b16 %v5603, %v5601
    %v5632 = vpack.c.b16 %v5604, %v5602
    %v5633 = vpack.c.b16 %v5607, %v5605
    %v5634 = vpack.c.b16 %v5608, %v5606
    %v5635 = vpack.c.b16 %v5611, %v5609
    %v5636 = vpack.c.b16 %v5612, %v5610
    %v5637 = vpack.c.b16 %v5615, %v5613
    %v5638 = vpack.c.b16 %v5616, %v5614
    %v5639 = vpack.c.b16 %v5619, %v5617
    %v5640 = vpack.c.b16 %v5620, %v5618
    %v5641 = vpack.c.b16 %v5623, %v5621
    %v5642 = vpack.c.b16 %v5624, %v5622
    %v5643 = vpack.c.b16 %v5627, %v5625
    %v5644 = vpack.c.b16 %v5628, %v5626
    %5661 = vmatpush.bf16.msra.mxu0 %v5643
    %5662 = vmatpush.bf16.msra.mxu0 %v5641
    %5663 = vmatpush.bf16.msra.mxu0 %v5639
    %5664 = vmatpush.bf16.msra.mxu0 %v5637
    %5665 = vmatpush.bf16.msra.mxu0 %v5635
    %5666 = vmatpush.bf16.msra.mxu0 %v5633
    %5667 = vmatpush.bf16.msra.mxu0 %v5631
    %5668 = vmatpush.bf16.msra.mxu0 %v5629
    %5669 = vmatmul.bf16.gmra.mxu0 %v5549
    %v5670 = vpop.f32.mrf.mxu0
    %v5671 = vadd.f32 0.0, %v5670
    %v5672 = vpop.f32.mrf.mxu0
    %v5673 = vadd.f32 0.0, %v5672
    %5674 = vmatmul.bf16.gmra.mxu0 %v5550
    %v5675 = vpop.f32.mrf.mxu0
    %v5676 = vadd.f32 0.0, %v5675
    %v5677 = vpop.f32.mrf.mxu0
    %v5678 = vadd.f32 0.0, %v5677
    %5679 = vmatmul.bf16.gmra.mxu0 %v5551
    %v5680 = vpop.f32.mrf.mxu0
    %v5681 = vadd.f32 0.0, %v5680
    %v5682 = vpop.f32.mrf.mxu0
    %v5683 = vadd.f32 0.0, %v5682
    %5684 = vmatmul.bf16.gmra.mxu0 %v5552
    %v5685 = vpop.f32.mrf.mxu0
    %v5686 = vadd.f32 0.0, %v5685
    %v5687 = vpop.f32.mrf.mxu0
    %v5688 = vadd.f32 0.0, %v5687
    %5689 = vmatmul.bf16.gmra.mxu0 %v5553
    %v5690 = vpop.f32.mrf.mxu0
    %v5691 = vadd.f32 0.0, %v5690
    %v5692 = vpop.f32.mrf.mxu0
    %v5693 = vadd.f32 0.0, %v5692
    %5694 = vmatmul.bf16.gmra.mxu0 %v5554
    %v5695 = vpop.f32.mrf.mxu0
    %v5696 = vadd.f32 0.0, %v5695
    %v5697 = vpop.f32.mrf.mxu0
    %v5698 = vadd.f32 0.0, %v5697
    %5699 = vmatmul.bf16.gmra.mxu0 %v5555
    %v5700 = vpop.f32.mrf.mxu0
    %v5701 = vadd.f32 0.0, %v5700
    %v5702 = vpop.f32.mrf.mxu0
    %v5703 = vadd.f32 0.0, %v5702
    %5704 = vmatmul.bf16.gmra.mxu0 %v5556
    %v5705 = vpop.f32.mrf.mxu0
    %v5706 = vadd.f32 0.0, %v5705
    %v5707 = vpop.f32.mrf.mxu0
    %v5708 = vadd.f32 0.0, %v5707
    %5709 = vmatmul.bf16.gmra.mxu0 %v5557
    %v5710 = vpop.f32.mrf.mxu0
    %v5711 = vadd.f32 0.0, %v5710
    %v5712 = vpop.f32.mrf.mxu0
    %v5713 = vadd.f32 0.0, %v5712
    %5714 = vmatmul.bf16.gmra.mxu0 %v5558
    %v5715 = vpop.f32.mrf.mxu0
    %v5716 = vadd.f32 0.0, %v5715
    %v5717 = vpop.f32.mrf.mxu0
    %v5718 = vadd.f32 0.0, %v5717
    %5719 = vmatmul.bf16.gmra.mxu0 %v5559
    %v5720 = vpop.f32.mrf.mxu0
    %v5721 = vadd.f32 0.0, %v5720
    %v5722 = vpop.f32.mrf.mxu0
    %v5723 = vadd.f32 0.0, %v5722
    %5724 = vmatmul.bf16.gmra.mxu0 %v5560
    %v5725 = vpop.f32.mrf.mxu0
    %v5726 = vadd.f32 0.0, %v5725
    %v5727 = vpop.f32.mrf.mxu0
    %v5728 = vadd.f32 0.0, %v5727
    %5729 = vmatmul.bf16.gmra.mxu0 %v5561
    %v5730 = vpop.f32.mrf.mxu0
    %v5731 = vadd.f32 0.0, %v5730
    %v5732 = vpop.f32.mrf.mxu0
    %v5733 = vadd.f32 0.0, %v5732
    %5734 = vmatmul.bf16.gmra.mxu0 %v5562
    %v5735 = vpop.f32.mrf.mxu0
    %v5736 = vadd.f32 0.0, %v5735
    %v5737 = vpop.f32.mrf.mxu0
    %v5738 = vadd.f32 0.0, %v5737
    %5739 = vmatmul.bf16.gmra.mxu0 %v5563
    %v5740 = vpop.f32.mrf.mxu0
    %v5741 = vadd.f32 0.0, %v5740
    %v5742 = vpop.f32.mrf.mxu0
    %v5743 = vadd.f32 0.0, %v5742
    %5744 = vmatmul.bf16.gmra.mxu0 %v5564
    %v5745 = vpop.f32.mrf.mxu0
    %v5746 = vadd.f32 0.0, %v5745
    %v5747 = vpop.f32.mrf.mxu0
    %v5748 = vadd.f32 0.0, %v5747
    %5749 = vdwg.mxu0
    %5750 = vmatpush.bf16.msra.mxu0 %v5644
    %5751 = vmatpush.bf16.msra.mxu0 %v5642
    %5752 = vmatpush.bf16.msra.mxu0 %v5640
    %5753 = vmatpush.bf16.msra.mxu0 %v5638
    %5754 = vmatpush.bf16.msra.mxu0 %v5636
    %5755 = vmatpush.bf16.msra.mxu0 %v5634
    %5756 = vmatpush.bf16.msra.mxu0 %v5632
    %5757 = vmatpush.bf16.msra.mxu0 %v5630
    %5758 = vmatmul.bf16.gmra.mxu0 %v5549
    %v5759 = vpop.f32.mrf.mxu0
    %v5760 = vadd.f32 0.0, %v5759
    %v5761 = vpop.f32.mrf.mxu0
    %v5762 = vadd.f32 0.0, %v5761
    %5763 = vmatmul.bf16.gmra.mxu0 %v5550
    %v5764 = vpop.f32.mrf.mxu0
    %v5765 = vadd.f32 0.0, %v5764
    %v5766 = vpop.f32.mrf.mxu0
    %v5767 = vadd.f32 0.0, %v5766
    %5768 = vmatmul.bf16.gmra.mxu0 %v5551
    %v5769 = vpop.f32.mrf.mxu0
    %v5770 = vadd.f32 0.0, %v5769
    %v5771 = vpop.f32.mrf.mxu0
    %v5772 = vadd.f32 0.0, %v5771
    %5773 = vmatmul.bf16.gmra.mxu0 %v5552
    %v5774 = vpop.f32.mrf.mxu0
    %v5775 = vadd.f32 0.0, %v5774
    %v5776 = vpop.f32.mrf.mxu0
    %v5777 = vadd.f32 0.0, %v5776
    %5778 = vmatmul.bf16.gmra.mxu0 %v5553
    %v5779 = vpop.f32.mrf.mxu0
    %v5780 = vadd.f32 0.0, %v5779
    %v5781 = vpop.f32.mrf.mxu0
    %v5782 = vadd.f32 0.0, %v5781
    %5783 = vmatmul.bf16.gmra.mxu0 %v5554
    %v5784 = vpop.f32.mrf.mxu0
    %v5785 = vadd.f32 0.0, %v5784
    %v5786 = vpop.f32.mrf.mxu0
    %v5787 = vadd.f32 0.0, %v5786
    %5788 = vmatmul.bf16.gmra.mxu0 %v5555
    %v5789 = vpop.f32.mrf.mxu0
    %v5790 = vadd.f32 0.0, %v5789
    %v5791 = vpop.f32.mrf.mxu0
    %v5792 = vadd.f32 0.0, %v5791
    %5793 = vmatmul.bf16.gmra.mxu0 %v5556
    %v5794 = vpop.f32.mrf.mxu0
    %v5795 = vadd.f32 0.0, %v5794
    %v5796 = vpop.f32.mrf.mxu0
    %v5797 = vadd.f32 0.0, %v5796
    %5798 = vmatmul.bf16.gmra.mxu0 %v5557
    %v5799 = vpop.f32.mrf.mxu0
    %v5800 = vadd.f32 0.0, %v5799
    %v5801 = vpop.f32.mrf.mxu0
    %v5802 = vadd.f32 0.0, %v5801
    %5803 = vmatmul.bf16.gmra.mxu0 %v5558
    %v5804 = vpop.f32.mrf.mxu0
    %v5805 = vadd.f32 0.0, %v5804
    %v5806 = vpop.f32.mrf.mxu0
    %v5807 = vadd.f32 0.0, %v5806
    %5808 = vmatmul.bf16.gmra.mxu0 %v5559
    %v5809 = vpop.f32.mrf.mxu0
    %v5810 = vadd.f32 0.0, %v5809
    %v5811 = vpop.f32.mrf.mxu0
    %v5812 = vadd.f32 0.0, %v5811
    %5813 = vmatmul.bf16.gmra.mxu0 %v5560
    %v5814 = vpop.f32.mrf.mxu0
    %v5815 = vadd.f32 0.0, %v5814
    %v5816 = vpop.f32.mrf.mxu0
    %v5817 = vadd.f32 0.0, %v5816
    %5818 = vmatmul.bf16.gmra.mxu0 %v5561
    %v5819 = vpop.f32.mrf.mxu0
    %v5820 = vadd.f32 0.0, %v5819
    %v5821 = vpop.f32.mrf.mxu0
    %v5822 = vadd.f32 0.0, %v5821
    %5823 = vmatmul.bf16.gmra.mxu0 %v5562
    %v5824 = vpop.f32.mrf.mxu0
    %v5825 = vadd.f32 0.0, %v5824
    %v5826 = vpop.f32.mrf.mxu0
    %v5827 = vadd.f32 0.0, %v5826
    %5828 = vmatmul.bf16.gmra.mxu0 %v5563
    %v5829 = vpop.f32.mrf.mxu0
    %v5830 = vadd.f32 0.0, %v5829
    %v5831 = vpop.f32.mrf.mxu0
    %v5832 = vadd.f32 0.0, %v5831
    %5833 = vmatmul.bf16.gmra.mxu0 %v5564
    %v5834 = vpop.f32.mrf.mxu0
    %v5835 = vadd.f32 0.0, %v5834
    %v5836 = vpop.f32.mrf.mxu0
    %v5837 = vadd.f32 0.0, %v5836
    %5838 = vdwg.mxu0
    %v5839 = vadd.f32 %v5405, %v5671
    %v5840 = vadd.f32 %v5406, %v5760
    %v5841 = vadd.f32 %v5407, %v5673
    %v5842 = vadd.f32 %v5408, %v5762
    %v5843 = vadd.f32 %v5409, %v5676
    %v5844 = vadd.f32 %v5410, %v5765
    %v5845 = vadd.f32 %v5411, %v5678
    %v5846 = vadd.f32 %v5412, %v5767
    %v5847 = vadd.f32 %v5413, %v5681
    %v5848 = vadd.f32 %v5414, %v5770
    %v5849 = vadd.f32 %v5415, %v5683
    %v5850 = vadd.f32 %v5416, %v5772
    %v5851 = vadd.f32 %v5417, %v5686
    %v5852 = vadd.f32 %v5418, %v5775
    %v5853 = vadd.f32 %v5419, %v5688
    %v5854 = vadd.f32 %v5420, %v5777
    %v5855 = vadd.f32 %v5421, %v5691
    %v5856 = vadd.f32 %v5422, %v5780
    %v5857 = vadd.f32 %v5423, %v5693
    %v5858 = vadd.f32 %v5424, %v5782
    %v5859 = vadd.f32 %v5425, %v5696
    %v5860 = vadd.f32 %v5426, %v5785
    %v5861 = vadd.f32 %v5427, %v5698
    %v5862 = vadd.f32 %v5428, %v5787
    %v5863 = vadd.f32 %v5429, %v5701
    %v5864 = vadd.f32 %v5430, %v5790
    %v5865 = vadd.f32 %v5431, %v5703
    %v5866 = vadd.f32 %v5432, %v5792
    %v5867 = vadd.f32 %v5433, %v5706
    %v5868 = vadd.f32 %v5434, %v5795
    %v5869 = vadd.f32 %v5435, %v5708
    %v5870 = vadd.f32 %v5436, %v5797
    %v5871 = vadd.f32 %v5437, %v5711
    %v5872 = vadd.f32 %v5438, %v5800
    %v5873 = vadd.f32 %v5439, %v5713
    %v5874 = vadd.f32 %v5440, %v5802
    %v5875 = vadd.f32 %v5441, %v5716
    %v5876 = vadd.f32 %v5442, %v5805
    %v5877 = vadd.f32 %v5443, %v5718
    %v5878 = vadd.f32 %v5444, %v5807
    %v5879 = vadd.f32 %v5445, %v5721
    %v5880 = vadd.f32 %v5446, %v5810
    %v5881 = vadd.f32 %v5447, %v5723
    %v5882 = vadd.f32 %v5448, %v5812
    %v5883 = vadd.f32 %v5449, %v5726
    %v5884 = vadd.f32 %v5450, %v5815
    %v5885 = vadd.f32 %v5451, %v5728
    %v5886 = vadd.f32 %v5452, %v5817
    %v5887 = vadd.f32 %v5453, %v5731
    %v5888 = vadd.f32 %v5454, %v5820
    %v5889 = vadd.f32 %v5455, %v5733
    %v5890 = vadd.f32 %v5456, %v5822
    %v5891 = vadd.f32 %v5457, %v5736
    %v5892 = vadd.f32 %v5458, %v5825
    %v5893 = vadd.f32 %v5459, %v5738
    %v5894 = vadd.f32 %v5460, %v5827
    %v5895 = vadd.f32 %v5461, %v5741
    %v5896 = vadd.f32 %v5462, %v5830
    %v5897 = vadd.f32 %v5463, %v5743
    %v5898 = vadd.f32 %v5464, %v5832
    %v5899 = vadd.f32 %v5465, %v5746
    %v5900 = vadd.f32 %v5466, %v5835
    %v5901 = vadd.f32 %v5467, %v5748
    %v5902 = vadd.f32 %v5468, %v5837
    %5903 = vst [vmem:[#allocation3] sm:$0xff] %v5839
    %5904 = vst [vmem:[#allocation3 + $0x8] sm:$0xff] %v5840
    %5905 = vst [vmem:[#allocation3 + $0x10] sm:$0xff] %v5841
    %5906 = vst [vmem:[#allocation3 + $0x18] sm:$0xff] %v5842
    %5907 = vst [vmem:[#allocation3 + $0x20] sm:$0xff] %v5843
    %5908 = vst [vmem:[#allocation3 + $0x28] sm:$0xff] %v5844
    %5909 = vst [vmem:[#allocation3 + $0x30] sm:$0xff] %v5845
    %5910 = vst [vmem:[#allocation3 + $0x38] sm:$0xff] %v5846
    %5911 = vst [vmem:[#allocation3 + $0x40] sm:$0xff] %v5847
    %5912 = vst [vmem:[#allocation3 + $0x48] sm:$0xff] %v5848
    %5913 = vst [vmem:[#allocation3 + $0x50] sm:$0xff] %v5849
    %5914 = vst [vmem:[#allocation3 + $0x58] sm:$0xff] %v5850
    %5915 = vst [vmem:[#allocation3 + $0x60] sm:$0xff] %v5851
    %5916 = vst [vmem:[#allocation3 + $0x68] sm:$0xff] %v5852
    %5917 = vst [vmem:[#allocation3 + $0x70] sm:$0xff] %v5853
    %5918 = vst [vmem:[#allocation3 + $0x78] sm:$0xff] %v5854
    %5919 = vst [vmem:[#allocation3 + $0x80] sm:$0xff] %v5855
    %5920 = vst [vmem:[#allocation3 + $0x88] sm:$0xff] %v5856
    %5921 = vst [vmem:[#allocation3 + $0x90] sm:$0xff] %v5857
    %5922 = vst [vmem:[#allocation3 + $0x98] sm:$0xff] %v5858
    %5923 = vst [vmem:[#allocation3 + $0xa0] sm:$0xff] %v5859
    %5924 = vst [vmem:[#allocation3 + $0xa8] sm:$0xff] %v5860
    %5925 = vst [vmem:[#allocation3 + $0xb0] sm:$0xff] %v5861
    %5926 = vst [vmem:[#allocation3 + $0xb8] sm:$0xff] %v5862
    %5927 = vst [vmem:[#allocation3 + $0xc0] sm:$0xff] %v5863
    %5928 = vst [vmem:[#allocation3 + $0xc8] sm:$0xff] %v5864
    %5929 = vst [vmem:[#allocation3 + $0xd0] sm:$0xff] %v5865
    %5930 = vst [vmem:[#allocation3 + $0xd8] sm:$0xff] %v5866
    %5931 = vst [vmem:[#allocation3 + $0xe0] sm:$0xff] %v5867
    %5932 = vst [vmem:[#allocation3 + $0xe8] sm:$0xff] %v5868
    %5933 = vst [vmem:[#allocation3 + $0xf0] sm:$0xff] %v5869
    %5934 = vst [vmem:[#allocation3 + $0xf8] sm:$0xff] %v5870
    %5935 = vst [vmem:[#allocation3 + $0x100] sm:$0xff] %v5871
    %5936 = vst [vmem:[#allocation3 + $0x108] sm:$0xff] %v5872
    %5937 = vst [vmem:[#allocation3 + $0x110] sm:$0xff] %v5873
    %5938 = vst [vmem:[#allocation3 + $0x118] sm:$0xff] %v5874
    %5939 = vst [vmem:[#allocation3 + $0x120] sm:$0xff] %v5875
    %5940 = vst [vmem:[#allocation3 + $0x128] sm:$0xff] %v5876
    %5941 = vst [vmem:[#allocation3 + $0x130] sm:$0xff] %v5877
    %5942 = vst [vmem:[#allocation3 + $0x138] sm:$0xff] %v5878
    %5943 = vst [vmem:[#allocation3 + $0x140] sm:$0xff] %v5879
    %5944 = vst [vmem:[#allocation3 + $0x148] sm:$0xff] %v5880
    %5945 = vst [vmem:[#allocation3 + $0x150] sm:$0xff] %v5881
    %5946 = vst [vmem:[#allocation3 + $0x158] sm:$0xff] %v5882
    %5947 = vst [vmem:[#allocation3 + $0x160] sm:$0xff] %v5883
    %5948 = vst [vmem:[#allocation3 + $0x168] sm:$0xff] %v5884
    %5949 = vst [vmem:[#allocation3 + $0x170] sm:$0xff] %v5885
    %5950 = vst [vmem:[#allocation3 + $0x178] sm:$0xff] %v5886
    %5951 = vst [vmem:[#allocation3 + $0x180] sm:$0xff] %v5887
    %5952 = vst [vmem:[#allocation3 + $0x188] sm:$0xff] %v5888
    %5953 = vst [vmem:[#allocation3 + $0x190] sm:$0xff] %v5889
    %5954 = vst [vmem:[#allocation3 + $0x198] sm:$0xff] %v5890
    %5955 = vst [vmem:[#allocation3 + $0x1a0] sm:$0xff] %v5891
    %5956 = vst [vmem:[#allocation3 + $0x1a8] sm:$0xff] %v5892
    %5957 = vst [vmem:[#allocation3 + $0x1b0] sm:$0xff] %v5893
    %5958 = vst [vmem:[#allocation3 + $0x1b8] sm:$0xff] %v5894
    %5959 = vst [vmem:[#allocation3 + $0x1c0] sm:$0xff] %v5895
    %5960 = vst [vmem:[#allocation3 + $0x1c8] sm:$0xff] %v5896
    %5961 = vst [vmem:[#allocation3 + $0x1d0] sm:$0xff] %v5897
    %5962 = vst [vmem:[#allocation3 + $0x1d8] sm:$0xff] %v5898
    %5963 = vst [vmem:[#allocation3 + $0x1e0] sm:$0xff] %v5899
    %5964 = vst [vmem:[#allocation3 + $0x1e8] sm:$0xff] %v5900
    %5965 = vst [vmem:[#allocation3 + $0x1f0] sm:$0xff] %v5901
    %5966 = vst [vmem:[#allocation3 + $0x1f8] sm:$0xff] %v5902
    // Predicated region
    $region30: #{tpu_custom_call.1} parent=1 // pred_check
      %p5967 = pneg %p5301
    $region31: #{tpu_custom_call.1} parent=1 // pred_check_branch
      %5969 = sbr.rel (%p5967) target = $region33
    $region32: #{tpu_custom_call.1} parent=1 // pred_region
      %v5970 = vld [vmem:[#allocation3] sm:$0xff]
      %v5971 = vld [vmem:[#allocation3 + $0x8] sm:$0xff]
      %v5972 = vld [vmem:[#allocation3 + $0x10] sm:$0xff]
      %v5973 = vld [vmem:[#allocation3 + $0x18] sm:$0xff]
      %v5974 = vld [vmem:[#allocation3 + $0x20] sm:$0xff]
      %v5975 = vld [vmem:[#allocation3 + $0x28] sm:$0xff]
      %v5976 = vld [vmem:[#allocation3 + $0x30] sm:$0xff]
      %v5977 = vld [vmem:[#allocation3 + $0x38] sm:$0xff]
      %v5978 = vld [vmem:[#allocation3 + $0x40] sm:$0xff]
      %v5979 = vld [vmem:[#allocation3 + $0x48] sm:$0xff]
      %v5980 = vld [vmem:[#allocation3 + $0x50] sm:$0xff]
      %v5981 = vld [vmem:[#allocation3 + $0x58] sm:$0xff]
      %v5982 = vld [vmem:[#allocation3 + $0x60] sm:$0xff]
      %v5983 = vld [vmem:[#allocation3 + $0x68] sm:$0xff]
      %v5984 = vld [vmem:[#allocation3 + $0x70] sm:$0xff]
      %v5985 = vld [vmem:[#allocation3 + $0x78] sm:$0xff]
      %v5986 = vld [vmem:[#allocation3 + $0x80] sm:$0xff]
      %v5987 = vld [vmem:[#allocation3 + $0x88] sm:$0xff]
      %v5988 = vld [vmem:[#allocation3 + $0x90] sm:$0xff]
      %v5989 = vld [vmem:[#allocation3 + $0x98] sm:$0xff]
      %v5990 = vld [vmem:[#allocation3 + $0xa0] sm:$0xff]
      %v5991 = vld [vmem:[#allocation3 + $0xa8] sm:$0xff]
      %v5992 = vld [vmem:[#allocation3 + $0xb0] sm:$0xff]
      %v5993 = vld [vmem:[#allocation3 + $0xb8] sm:$0xff]
      %v5994 = vld [vmem:[#allocation3 + $0xc0] sm:$0xff]
      %v5995 = vld [vmem:[#allocation3 + $0xc8] sm:$0xff]
      %v5996 = vld [vmem:[#allocation3 + $0xd0] sm:$0xff]
      %v5997 = vld [vmem:[#allocation3 + $0xd8] sm:$0xff]
      %v5998 = vld [vmem:[#allocation3 + $0xe0] sm:$0xff]
      %v5999 = vld [vmem:[#allocation3 + $0xe8] sm:$0xff]
      %v6000 = vld [vmem:[#allocation3 + $0xf0] sm:$0xff]
      %v6001 = vld [vmem:[#allocation3 + $0xf8] sm:$0xff]
      %v6002 = vld [vmem:[#allocation3 + $0x100] sm:$0xff]
      %v6003 = vld [vmem:[#allocation3 + $0x108] sm:$0xff]
      %v6004 = vld [vmem:[#allocation3 + $0x110] sm:$0xff]
      %v6005 = vld [vmem:[#allocation3 + $0x118] sm:$0xff]
      %v6006 = vld [vmem:[#allocation3 + $0x120] sm:$0xff]
      %v6007 = vld [vmem:[#allocation3 + $0x128] sm:$0xff]
      %v6008 = vld [vmem:[#allocation3 + $0x130] sm:$0xff]
      %v6009 = vld [vmem:[#allocation3 + $0x138] sm:$0xff]
      %v6010 = vld [vmem:[#allocation3 + $0x140] sm:$0xff]
      %v6011 = vld [vmem:[#allocation3 + $0x148] sm:$0xff]
      %v6012 = vld [vmem:[#allocation3 + $0x150] sm:$0xff]
      %v6013 = vld [vmem:[#allocation3 + $0x158] sm:$0xff]
      %v6014 = vld [vmem:[#allocation3 + $0x160] sm:$0xff]
      %v6015 = vld [vmem:[#allocation3 + $0x168] sm:$0xff]
      %v6016 = vld [vmem:[#allocation3 + $0x170] sm:$0xff]
      %v6017 = vld [vmem:[#allocation3 + $0x178] sm:$0xff]
      %v6018 = vld [vmem:[#allocation3 + $0x180] sm:$0xff]
      %v6019 = vld [vmem:[#allocation3 + $0x188] sm:$0xff]
      %v6020 = vld [vmem:[#allocation3 + $0x190] sm:$0xff]
      %v6021 = vld [vmem:[#allocation3 + $0x198] sm:$0xff]
      %v6022 = vld [vmem:[#allocation3 + $0x1a0] sm:$0xff]
      %v6023 = vld [vmem:[#allocation3 + $0x1a8] sm:$0xff]
      %v6024 = vld [vmem:[#allocation3 + $0x1b0] sm:$0xff]
      %v6025 = vld [vmem:[#allocation3 + $0x1b8] sm:$0xff]
      %v6026 = vld [vmem:[#allocation3 + $0x1c0] sm:$0xff]
      %v6027 = vld [vmem:[#allocation3 + $0x1c8] sm:$0xff]
      %v6028 = vld [vmem:[#allocation3 + $0x1d0] sm:$0xff]
      %v6029 = vld [vmem:[#allocation3 + $0x1d8] sm:$0xff]
      %v6030 = vld [vmem:[#allocation3 + $0x1e0] sm:$0xff]
      %v6031 = vld [vmem:[#allocation3 + $0x1e8] sm:$0xff]
      %v6032 = vld [vmem:[#allocation3 + $0x1f0] sm:$0xff]
      %v6033 = vld [vmem:[#allocation3 + $0x1f8] sm:$0xff]
      %v6034 = vld [vmem:[%s4] sm:$0x3]
      %v6036 = vperm.slane %v6034, 0
      %v6037 = vperm.slane %v6034, 1
      %v6040 = vadd.f32 %v5970, %v6036
      %v6041 = vadd.f32 %v5971, %v6037
      %v6042 = vadd.f32 %v5972, %v6036
      %v6043 = vadd.f32 %v5973, %v6037
      %v6044 = vadd.f32 %v5974, %v6036
      %v6045 = vadd.f32 %v5975, %v6037
      %v6046 = vadd.f32 %v5976, %v6036
      %v6047 = vadd.f32 %v5977, %v6037
      %v6048 = vadd.f32 %v5978, %v6036
      %v6049 = vadd.f32 %v5979, %v6037
      %v6050 = vadd.f32 %v5980, %v6036
      %v6051 = vadd.f32 %v5981, %v6037
      %v6052 = vadd.f32 %v5982, %v6036
      %v6053 = vadd.f32 %v5983, %v6037
      %v6054 = vadd.f32 %v5984, %v6036
      %v6055 = vadd.f32 %v5985, %v6037
      %v6056 = vadd.f32 %v5986, %v6036
      %v6057 = vadd.f32 %v5987, %v6037
      %v6058 = vadd.f32 %v5988, %v6036
      %v6059 = vadd.f32 %v5989, %v6037
      %v6060 = vadd.f32 %v5990, %v6036
      %v6061 = vadd.f32 %v5991, %v6037
      %v6062 = vadd.f32 %v5992, %v6036
      %v6063 = vadd.f32 %v5993, %v6037
      %v6064 = vadd.f32 %v5994, %v6036
      %v6065 = vadd.f32 %v5995, %v6037
      %v6066 = vadd.f32 %v5996, %v6036
      %v6067 = vadd.f32 %v5997, %v6037
      %v6068 = vadd.f32 %v5998, %v6036
      %v6069 = vadd.f32 %v5999, %v6037
      %v6070 = vadd.f32 %v6000, %v6036
      %v6071 = vadd.f32 %v6001, %v6037
      %v6072 = vadd.f32 %v6002, %v6036
      %v6073 = vadd.f32 %v6003, %v6037
      %v6074 = vadd.f32 %v6004, %v6036
      %v6075 = vadd.f32 %v6005, %v6037
      %v6076 = vadd.f32 %v6006, %v6036
      %v6077 = vadd.f32 %v6007, %v6037
      %v6078 = vadd.f32 %v6008, %v6036
      %v6079 = vadd.f32 %v6009, %v6037
      %v6080 = vadd.f32 %v6010, %v6036
      %v6081 = vadd.f32 %v6011, %v6037
      %v6082 = vadd.f32 %v6012, %v6036
      %v6083 = vadd.f32 %v6013, %v6037
      %v6084 = vadd.f32 %v6014, %v6036
      %v6085 = vadd.f32 %v6015, %v6037
      %v6086 = vadd.f32 %v6016, %v6036
      %v6087 = vadd.f32 %v6017, %v6037
      %v6088 = vadd.f32 %v6018, %v6036
      %v6089 = vadd.f32 %v6019, %v6037
      %v6090 = vadd.f32 %v6020, %v6036
      %v6091 = vadd.f32 %v6021, %v6037
      %v6092 = vadd.f32 %v6022, %v6036
      %v6093 = vadd.f32 %v6023, %v6037
      %v6094 = vadd.f32 %v6024, %v6036
      %v6095 = vadd.f32 %v6025, %v6037
      %v6096 = vadd.f32 %v6026, %v6036
      %v6097 = vadd.f32 %v6027, %v6037
      %v6098 = vadd.f32 %v6028, %v6036
      %v6099 = vadd.f32 %v6029, %v6037
      %v6100 = vadd.f32 %v6030, %v6036
      %v6101 = vadd.f32 %v6031, %v6037
      %v6102 = vadd.f32 %v6032, %v6036
      %v6103 = vadd.f32 %v6033, %v6037
      %6104 = vst [vmem:[#allocation4] sm:$0xff] %v6040
      %6105 = vst [vmem:[#allocation4 + $0x8] sm:$0xff] %v6041
      %6106 = vst [vmem:[#allocation4 + $0x10] sm:$0xff] %v6042
      %6107 = vst [vmem:[#allocation4 + $0x18] sm:$0xff] %v6043
      %6108 = vst [vmem:[#allocation4 + $0x20] sm:$0xff] %v6044
      %6109 = vst [vmem:[#allocation4 + $0x28] sm:$0xff] %v6045
      %6110 = vst [vmem:[#allocation4 + $0x30] sm:$0xff] %v6046
      %6111 = vst [vmem:[#allocation4 + $0x38] sm:$0xff] %v6047
      %6112 = vst [vmem:[#allocation4 + $0x40] sm:$0xff] %v6048
      %6113 = vst [vmem:[#allocation4 + $0x48] sm:$0xff] %v6049
      %6114 = vst [vmem:[#allocation4 + $0x50] sm:$0xff] %v6050
      %6115 = vst [vmem:[#allocation4 + $0x58] sm:$0xff] %v6051
      %6116 = vst [vmem:[#allocation4 + $0x60] sm:$0xff] %v6052
      %6117 = vst [vmem:[#allocation4 + $0x68] sm:$0xff] %v6053
      %6118 = vst [vmem:[#allocation4 + $0x70] sm:$0xff] %v6054
      %6119 = vst [vmem:[#allocation4 + $0x78] sm:$0xff] %v6055
      %6120 = vst [vmem:[#allocation4 + $0x80] sm:$0xff] %v6056
      %6121 = vst [vmem:[#allocation4 + $0x88] sm:$0xff] %v6057
      %6122 = vst [vmem:[#allocation4 + $0x90] sm:$0xff] %v6058
      %6123 = vst [vmem:[#allocation4 + $0x98] sm:$0xff] %v6059
      %6124 = vst [vmem:[#allocation4 + $0xa0] sm:$0xff] %v6060
      %6125 = vst [vmem:[#allocation4 + $0xa8] sm:$0xff] %v6061
      %6126 = vst [vmem:[#allocation4 + $0xb0] sm:$0xff] %v6062
      %6127 = vst [vmem:[#allocation4 + $0xb8] sm:$0xff] %v6063
      %6128 = vst [vmem:[#allocation4 + $0xc0] sm:$0xff] %v6064
      %6129 = vst [vmem:[#allocation4 + $0xc8] sm:$0xff] %v6065
      %6130 = vst [vmem:[#allocation4 + $0xd0] sm:$0xff] %v6066
      %6131 = vst [vmem:[#allocation4 + $0xd8] sm:$0xff] %v6067
      %6132 = vst [vmem:[#allocation4 + $0xe0] sm:$0xff] %v6068
      %6133 = vst [vmem:[#allocation4 + $0xe8] sm:$0xff] %v6069
      %6134 = vst [vmem:[#allocation4 + $0xf0] sm:$0xff] %v6070
      %6135 = vst [vmem:[#allocation4 + $0xf8] sm:$0xff] %v6071
      %6136 = vst [vmem:[#allocation4 + $0x100] sm:$0xff] %v6072
      %6137 = vst [vmem:[#allocation4 + $0x108] sm:$0xff] %v6073
      %6138 = vst [vmem:[#allocation4 + $0x110] sm:$0xff] %v6074
      %6139 = vst [vmem:[#allocation4 + $0x118] sm:$0xff] %v6075
      %6140 = vst [vmem:[#allocation4 + $0x120] sm:$0xff] %v6076
      %6141 = vst [vmem:[#allocation4 + $0x128] sm:$0xff] %v6077
      %6142 = vst [vmem:[#allocation4 + $0x130] sm:$0xff] %v6078
      %6143 = vst [vmem:[#allocation4 + $0x138] sm:$0xff] %v6079
      %6144 = vst [vmem:[#allocation4 + $0x140] sm:$0xff] %v6080
      %6145 = vst [vmem:[#allocation4 + $0x148] sm:$0xff] %v6081
      %6146 = vst [vmem:[#allocation4 + $0x150] sm:$0xff] %v6082
      %6147 = vst [vmem:[#allocation4 + $0x158] sm:$0xff] %v6083
      %6148 = vst [vmem:[#allocation4 + $0x160] sm:$0xff] %v6084
      %6149 = vst [vmem:[#allocation4 + $0x168] sm:$0xff] %v6085
      %6150 = vst [vmem:[#allocation4 + $0x170] sm:$0xff] %v6086
      %6151 = vst [vmem:[#allocation4 + $0x178] sm:$0xff] %v6087
      %6152 = vst [vmem:[#allocation4 + $0x180] sm:$0xff] %v6088
      %6153 = vst [vmem:[#allocation4 + $0x188] sm:$0xff] %v6089
      %6154 = vst [vmem:[#allocation4 + $0x190] sm:$0xff] %v6090
      %6155 = vst [vmem:[#allocation4 + $0x198] sm:$0xff] %v6091
      %6156 = vst [vmem:[#allocation4 + $0x1a0] sm:$0xff] %v6092
      %6157 = vst [vmem:[#allocation4 + $0x1a8] sm:$0xff] %v6093
      %6158 = vst [vmem:[#allocation4 + $0x1b0] sm:$0xff] %v6094
      %6159 = vst [vmem:[#allocation4 + $0x1b8] sm:$0xff] %v6095
      %6160 = vst [vmem:[#allocation4 + $0x1c0] sm:$0xff] %v6096
      %6161 = vst [vmem:[#allocation4 + $0x1c8] sm:$0xff] %v6097
      %6162 = vst [vmem:[#allocation4 + $0x1d0] sm:$0xff] %v6098
      %6163 = vst [vmem:[#allocation4 + $0x1d8] sm:$0xff] %v6099
      %6164 = vst [vmem:[#allocation4 + $0x1e0] sm:$0xff] %v6100
      %6165 = vst [vmem:[#allocation4 + $0x1e8] sm:$0xff] %v6101
      %6166 = vst [vmem:[#allocation4 + $0x1f0] sm:$0xff] %v6102
      %6167 = vst [vmem:[#allocation4 + $0x1f8] sm:$0xff] %v6103
    $region33: #{tpu_custom_call.1} parent=1 // pred_fallthru
      _
    // Predicated region
    $region34: #{tpu_custom_call.1} parent=1 // pred_check
      _
    $region35: #{tpu_custom_call.1} parent=1 // pred_check_branch
      %6169 = sbr.rel (0) target = $region37
    $region36: #{tpu_custom_call.1} parent=1 // pred_region
      %6171 = vsyncadd [#allocation5], 0
      %s6172 = sshll.u32 [#allocation4], 4
      %s6173 = int_to_ptr.vmem [resolvable:$true] %s6172
      %s6174 = sshll.u32 %s5, 4
      %s6175 = int_to_ptr.hbm [resolvable:$true] %s6174
      %6180 = dma.vmem_to_hbm [thread:$0]  %s6173, 8192, %s6175, [#allocation5], 256, 256, 16
    $region37: #{tpu_custom_call.1} parent=1 // pred_fallthru
      _
    // Predicated region
    $region38: #{tpu_custom_call.1} parent=1 // pred_check
      _
    $region39: #{tpu_custom_call.1} parent=1 // pred_check_branch
      %6182 = sbr.rel (0) target = $region41
    $region40: #{tpu_custom_call.1} parent=1 // pred_region
      %6184 = dma.done [#allocation5], 8192
    $region41: #{tpu_custom_call.1} parent=1 // pred_fallthru
      _
    %6185 = vsyncpa [#allocation5], 1

</llo_original>
